<compile_context>
chip_gen: v7x
topology: tpu7x:2x2x1
jax: 0.10.0
libtpu: 0.0.40
codegen_flags: <defaults>
</compile_context>

<pallas_src>
import jax
import jax.numpy as jnp
from jax.experimental import pallas as pl
from jax.experimental.pallas import tpu as pltpu

# ---------------- model hyper-parameters (small, consistent with module) ----
B = 2                 # batch
T = 8                 # sequence length
CNN_EMBED_DIM = 32    # LSTM input size
H_RNN_LAYERS = 3      # num LSTM layers
H_RNN = 32            # LSTM hidden size
H_FC_DIM = 32         # fc1 output
NUM_CLASSES = 16      # fc2 output
DROP_P = 0.3          # dropout prob (identity in eval mode)

B_PAD = 8             # batch padded to a full sublane tile
C_PAD = 128           # lane-dense fc2 output width
GW = 4 * H_RNN        # gate width (= 128 lanes)

# Row offsets inside the packed bf16 weight slab (all multiples of 8).
_OFF_WIH0 = 0
_OFF_WHH0 = _OFF_WIH0 + CNN_EMBED_DIM
_OFF_WIH1 = _OFF_WHH0 + H_RNN
_OFF_WHH1 = _OFF_WIH1 + H_RNN
_OFF_WIH2 = _OFF_WHH1 + H_RNN
_OFF_WHH2 = _OFF_WIH2 + H_RNN
_OFF_FC1 = _OFF_WHH2 + H_RNN
_OFF_FC2 = _OFF_FC1 + H_RNN
_W_ROWS = _OFF_FC2 + C_PAD          # fc2 block row-padded to 128


def decoder_rnn_kernel(x_ref,       # (T*B_PAD, D)   bf16, time-major, batch padded to 8
                       w_ref,       # (_W_ROWS, 128) bf16 packed weight slab
                       b_ref,       # (8, 128)       f32 packed bias slab
                       out_ref):    # (B_PAD, C_PAD) f32
    H = H_RNN
    f32 = jnp.float32

    # ---- hoisted weight / bias loads (static slices of the packed slabs) ----
    whh0 = w_ref[_OFF_WHH0:_OFF_WHH0 + H, :]
    wih1 = w_ref[_OFF_WIH1:_OFF_WIH1 + H, :]
    whh1 = w_ref[_OFF_WHH1:_OFF_WHH1 + H, :]
    wih2 = w_ref[_OFF_WIH2:_OFF_WIH2 + H, :]
    whh2 = w_ref[_OFF_WHH2:_OFF_WHH2 + H, :]
    b1 = jnp.broadcast_to(b_ref[1:2, :], (B_PAD, GW))   # broadcast once, not per step
    b2 = jnp.broadcast_to(b_ref[2:3, :], (B_PAD, GW))

    # ---- layer-0 input projection: no recurrent dependency, one big matmul ----
    xg0 = (jnp.dot(x_ref[...], w_ref[_OFF_WIH0:_OFF_WIH0 + CNN_EMBED_DIM, :],
                   preferred_element_type=f32)
           + jnp.broadcast_to(b_ref[0:1, :], (T * B_PAD, GW)))       # (T*8, 4H)

    def bdot(a, w_bf16):
        # bf16 operands -> one MXU pass; accumulate in f32.
        return jnp.dot(a.astype(jnp.bfloat16), w_bf16, preferred_element_type=f32)

    def cell(gates, c):
        # Full-width activations over the (8, 4H) gate vreg, then static lane slices;
        # PyTorch gate order i, f, g, o.  Elementwise math stays f32 (v5e-friendly).
        sg = pl.reciprocal(1.0 + jnp.exp(-gates), approx=True)       # sigmoid (EUP vrcp)
        tg = jnp.tanh(gates)
        i = sg[:, 0 * H:1 * H]
        f = sg[:, 1 * H:2 * H]
        g = tg[:, 2 * H:3 * H]
        o = sg[:, 3 * H:4 * H]
        c_new = f * c + i * g
        h_new = o * jnp.tanh(c_new)
        return h_new, c_new

    zero = jnp.zeros((B_PAD, H), f32)
    h0 = c0 = h1 = c1 = h2 = c2 = zero          # h0,c0 = None in PyTorch -> zeros

    # ---- layer/time wavefront, statically unrolled --------------------------
    # Step s runs (layer0, t=s), (layer1, t=s-1), (layer2, t=s-2); all three read
    # only *previous-step* state, so they are mutually independent and pipeline
    # through the MXU/EUP.  Serial chain: T + L - 1 = 10 cells.
    for s in range(T + H_RNN_LAYERS - 1):
        h0_in, h1_in = h0, h1                   # state as of step entry
        if s < T:                               # layer 0 @ t = s
            g0 = xg0[s * B_PAD:(s + 1) * B_PAD, :] + bdot(h0_in, whh0)
            h0, c0 = cell(g0, c0)
        if 1 <= s <= T:                         # layer 1 @ t = s - 1
            g1 = bdot(h0_in, wih1) + bdot(h1_in, whh1) + b1
            h1, c1 = cell(g1, c1)
        if 2 <= s <= T + 1:                     # layer 2 @ t = s - 2
            g2 = bdot(h1_in, wih2) + bdot(h2, whh2) + b2
            h2, c2 = cell(g2, c2)

    # ---- head: fc1 -> relu -> dropout(eval: identity) -> fc2 (lane-dense) ----
    # TODO(synk): training-mode stochastic dropout not implemented (eval semantics).
    z = bdot(h2, w_ref[_OFF_FC1:_OFF_FC1 + H_RNN, :]) + b_ref[3:4, :]
    z = jnp.maximum(z, 0.0)                     # padded lanes stay exactly 0
    out = bdot(z, w_ref[_OFF_FC2:_OFF_FC2 + C_PAD, :]) + b_ref[4:5, :]
    out_ref[...] = out.astype(out_ref.dtype)    # lane-dense (8, 128) store


def decoder_rnn_forward(x_btd, params):
    """x_btd: (B, T, D) float32 (PyTorch batch_first convention)."""
    # Wrapper-side layout plumbing: time-major, batch padded to 8 sublanes, bf16.
    x_tbd = jnp.transpose(x_btd, (1, 0, 2))                           # (T, B, D)
    x_pad = jnp.zeros((T, B_PAD, CNN_EMBED_DIM), jnp.float32)
    x_pad = x_pad.at[:, :B, :].set(x_tbd)
    x2d = x_pad.reshape(T * B_PAD, CNN_EMBED_DIM).astype(jnp.bfloat16)

    def lane_pad(w, width=C_PAD):
        return jnp.zeros((w.shape[0], width), jnp.float32).at[:, :w.shape[1]].set(w)

    # Single bf16 weight slab (static row slices inside the kernel) + f32 bias slab.
    fc2w_pad = jnp.zeros((C_PAD, C_PAD), jnp.float32).at[
        :H_FC_DIM, :NUM_CLASSES].set(params["fc2w"])
    w_slab = jnp.concatenate([
        params["wih0"], params["whh0"],
        params["wih1"], params["whh1"],
        params["wih2"], params["whh2"],
        lane_pad(params["fc1w"]),
        fc2w_pad,
    ], axis=0).astype(jnp.bfloat16)                                   # (_W_ROWS, 128)
    assert w_slab.shape == (_W_ROWS, C_PAD)

    b_slab = jnp.zeros((8, C_PAD), jnp.float32)
    b_slab = b_slab.at[0, :GW].set(params["b0"][0])
    b_slab = b_slab.at[1, :GW].set(params["b1"][0])
    b_slab = b_slab.at[2, :GW].set(params["b2"][0])
    b_slab = b_slab.at[3, :H_FC_DIM].set(params["fc1b"][0])
    b_slab = b_slab.at[4, :NUM_CLASSES].set(params["fc2b"][0])

    vmem = pl.BlockSpec(memory_space=pltpu.MemorySpace.VMEM)
    out_pad = pl.pallas_call(
        decoder_rnn_kernel,
        out_shape=jax.ShapeDtypeStruct((B_PAD, C_PAD), jnp.float32),
        in_specs=[vmem, vmem, vmem],
        out_specs=vmem,
    )(x2d, w_slab, b_slab)
    return out_pad[:B, :NUM_CLASSES]


def init_params(key):
    """Deterministic synthetic parameters (PyTorch-style uniform init)."""
    params = {}
    k = 1.0 / jnp.sqrt(jnp.float32(H_RNN))

    def uni(key, shape, bound):
        return jax.random.uniform(key, shape, jnp.float32, -bound, bound)

    keys = jax.random.split(key, 4 * H_RNN_LAYERS + 4)
    ki = 0
    for l in range(H_RNN_LAYERS):
        d_in = CNN_EMBED_DIM if l == 0 else H_RNN
        # PyTorch stores weight_ih as (4H, d_in); we keep the transposed (d_in, 4H).
        params[f"wih{l}"] = uni(keys[ki], (d_in, 4 * H_RNN), k); ki += 1
        params[f"whh{l}"] = uni(keys[ki], (H_RNN, 4 * H_RNN), k); ki += 1
        b_ih = uni(keys[ki], (1, 4 * H_RNN), k); ki += 1
        b_hh = uni(keys[ki], (1, 4 * H_RNN), k); ki += 1
        params[f"b{l}"] = b_ih + b_hh                     # biases always summed
    k1 = 1.0 / jnp.sqrt(jnp.float32(H_RNN))
    params["fc1w"] = uni(keys[ki], (H_RNN, H_FC_DIM), k1); ki += 1
    params["fc1b"] = uni(keys[ki], (1, H_FC_DIM), k1); ki += 1
    k2 = 1.0 / jnp.sqrt(jnp.float32(H_FC_DIM))
    params["fc2w"] = uni(keys[ki], (H_FC_DIM, NUM_CLASSES), k2); ki += 1
    params["fc2b"] = uni(keys[ki], (1, NUM_CLASSES), k2); ki += 1
    return params


def _ref_cell(inp, h, c, wih, whh, b):
    gates = inp @ wih + h @ whh + b
    H = h.shape[-1]
    i = jax.nn.sigmoid(gates[:, 0 * H:1 * H])
    f = jax.nn.sigmoid(gates[:, 1 * H:2 * H])
    g = jnp.tanh(gates[:, 2 * H:3 * H])
    o = jax.nn.sigmoid(gates[:, 3 * H:4 * H])
    c_new = f * c + i * g
    return o * jnp.tanh(c_new), c_new


def reference_forward(x_btd, params):
    """Pure-JAX f32 reference mirroring nn.LSTM + fc1/relu/fc2 (eval mode)."""
    h = [jnp.zeros((B, H_RNN), jnp.float32) for _ in range(H_RNN_LAYERS)]
    c = [jnp.zeros((B, H_RNN), jnp.float32) for _ in range(H_RNN_LAYERS)]
    for t in range(T):
        inp = x_btd[:, t, :]
        for l in range(H_RNN_LAYERS):
            h[l], c[l] = _ref_cell(inp, h[l], c[l],
                                   params[f"wih{l}"], params[f"whh{l}"],
                                   params[f"b{l}"])
            inp = h[l]
    z = jnp.maximum(h[-1] @ params["fc1w"] + params["fc1b"], 0.0)
    return z @ params["fc2w"] + params["fc2b"]


if __name__ == "__main__":
    key = jax.random.PRNGKey(0)
    kx, kp = jax.random.split(key)
    x = jax.random.normal(kx, (B, T, CNN_EMBED_DIM), jnp.float32)
    params = init_params(kp)

    out = decoder_rnn_forward(x, params)
    out = jax.block_until_ready(out)

    ref = reference_forward(x, params)
    assert out.shape == (B, NUM_CLASSES)
    # bf16 matmul operands + approx-reciprocal sigmoid: tolerance relaxed vs f32 ref.
    assert jnp.allclose(out, ref, atol=2e-2, rtol=2e-2), "Pallas output mismatch vs reference"

    print("KERNEL_OK")
</pallas_src>

<mosaic_0001>
module attributes {stable_mosaic.version = 11 : i64} {
  func.func @decoder_rnn_kernel(%arg0: memref<64x32xbf16, #tpu.memory_space<vmem>>, %arg1: memref<352x128xbf16, #tpu.memory_space<vmem>>, %arg2: memref<8x128xf32, #tpu.memory_space<vmem>>, %arg3: memref<8x128xf32, #tpu.memory_space<vmem>>) attributes {dimension_semantics = [], scalar_prefetch = 0 : i64, scratch_operands = 0 : i64, tpu.core_type = #tpu.core_type<tc>} {
    %c32 = arith.constant 32 : index
    %c0 = arith.constant 0 : index
    %0 = vector.load %arg1[%c32, %c0] : memref<352x128xbf16, #tpu.memory_space<vmem>>, vector<32x128xbf16>
    %c64 = arith.constant 64 : index
    %c0_0 = arith.constant 0 : index
    %1 = vector.load %arg1[%c64, %c0_0] : memref<352x128xbf16, #tpu.memory_space<vmem>>, vector<32x128xbf16>
    %c96 = arith.constant 96 : index
    %c0_1 = arith.constant 0 : index
    %2 = vector.load %arg1[%c96, %c0_1] : memref<352x128xbf16, #tpu.memory_space<vmem>>, vector<32x128xbf16>
    %c128 = arith.constant 128 : index
    %c0_2 = arith.constant 0 : index
    %3 = vector.load %arg1[%c128, %c0_2] : memref<352x128xbf16, #tpu.memory_space<vmem>>, vector<32x128xbf16>
    %c160 = arith.constant 160 : index
    %c0_3 = arith.constant 0 : index
    %4 = vector.load %arg1[%c160, %c0_3] : memref<352x128xbf16, #tpu.memory_space<vmem>>, vector<32x128xbf16>
    %c1 = arith.constant 1 : index
    %c0_4 = arith.constant 0 : index
    %5 = vector.load %arg2[%c1, %c0_4] : memref<8x128xf32, #tpu.memory_space<vmem>>, vector<1x128xf32>
    %6 = vector.shape_cast %5 : vector<1x128xf32> to vector<1x128xf32>
    %7 = vector.broadcast %6 : vector<1x128xf32> to vector<8x128xf32>
    %c2 = arith.constant 2 : index
    %c0_5 = arith.constant 0 : index
    %8 = vector.load %arg2[%c2, %c0_5] : memref<8x128xf32, #tpu.memory_space<vmem>>, vector<1x128xf32>
    %9 = vector.shape_cast %8 : vector<1x128xf32> to vector<1x128xf32>
    %10 = vector.broadcast %9 : vector<1x128xf32> to vector<8x128xf32>
    %c0_6 = arith.constant 0 : index
    %c0_7 = arith.constant 0 : index
    %11 = vector.load %arg0[%c0_6, %c0_7] : memref<64x32xbf16, #tpu.memory_space<vmem>>, vector<64x32xbf16>
    %c0_8 = arith.constant 0 : index
    %c0_9 = arith.constant 0 : index
    %12 = vector.load %arg1[%c0_8, %c0_9] : memref<352x128xbf16, #tpu.memory_space<vmem>>, vector<32x128xbf16>
    %cst = arith.constant dense<0.000000e+00> : vector<64x128xf32>
    %13 = tpu.matmul %11, %12, %cst {dimension_numbers = #tpu.dot_dimension_numbers<[1], [0], [0], [1], [0, 0, 1, 1], [], []>} : vector<64x32xbf16>, vector<32x128xbf16>, vector<64x128xf32> -> vector<64x128xf32>
    %c0_10 = arith.constant 0 : index
    %c0_11 = arith.constant 0 : index
    %14 = vector.load %arg2[%c0_10, %c0_11] : memref<8x128xf32, #tpu.memory_space<vmem>>, vector<1x128xf32>
    %15 = vector.shape_cast %14 : vector<1x128xf32> to vector<1x128xf32>
    %16 = vector.broadcast %15 : vector<1x128xf32> to vector<64x128xf32>
    %17 = arith.addf %13, %16 : vector<64x128xf32>
    %cst_12 = arith.constant 0.000000e+00 : f32
    %18 = vector.broadcast %cst_12 : f32 to vector<8x32xf32>
    %19 = vector.extract_strided_slice %17 {offsets = [0, 0], sizes = [8, 128], strides = [1, 1]} : vector<64x128xf32> to vector<8x128xf32>
    %20 = arith.truncf %18 : vector<8x32xf32> to vector<8x32xbf16>
    %cst_13 = arith.constant dense<0.000000e+00> : vector<8x128xf32>
    %21 = tpu.matmul %20, %0, %cst_13 {dimension_numbers = #tpu.dot_dimension_numbers<[1], [0], [0], [1], [0, 0, 1, 1], [], []>} : vector<8x32xbf16>, vector<32x128xbf16>, vector<8x128xf32> -> vector<8x128xf32>
    %22 = arith.addf %19, %21 : vector<8x128xf32>
    %cst_14 = arith.constant 0.000000e+00 : f32
    %23 = vector.broadcast %cst_14 : f32 to vector<8x128xf32>
    %24 = arith.subf %23, %22 : vector<8x128xf32>
    %25 = math.exp %24 : vector<8x128xf32>
    %cst_15 = arith.constant 1.000000e+00 : f32
    %26 = vector.broadcast %cst_15 : f32 to vector<8x128xf32>
    %27 = arith.addf %26, %25 : vector<8x128xf32>
    %28 = tpu.reciprocal %27 {approx = true} : vector<8x128xf32> -> vector<8x128xf32>
    %29 = math.tanh %22 : vector<8x128xf32>
    %30 = vector.extract_strided_slice %28 {offsets = [0, 0], sizes = [8, 32], strides = [1, 1]} : vector<8x128xf32> to vector<8x32xf32>
    %31 = vector.extract_strided_slice %28 {offsets = [0, 32], sizes = [8, 32], strides = [1, 1]} : vector<8x128xf32> to vector<8x32xf32>
    %32 = vector.extract_strided_slice %29 {offsets = [0, 64], sizes = [8, 32], strides = [1, 1]} : vector<8x128xf32> to vector<8x32xf32>
    %33 = vector.extract_strided_slice %28 {offsets = [0, 96], sizes = [8, 32], strides = [1, 1]} : vector<8x128xf32> to vector<8x32xf32>
    %34 = arith.mulf %31, %18 : vector<8x32xf32>
    %35 = arith.mulf %30, %32 : vector<8x32xf32>
    %36 = arith.addf %34, %35 : vector<8x32xf32>
    %37 = math.tanh %36 : vector<8x32xf32>
    %38 = arith.mulf %33, %37 : vector<8x32xf32>
    %39 = vector.extract_strided_slice %17 {offsets = [8, 0], sizes = [8, 128], strides = [1, 1]} : vector<64x128xf32> to vector<8x128xf32>
    %40 = arith.truncf %38 : vector<8x32xf32> to vector<8x32xbf16>
    %cst_16 = arith.constant dense<0.000000e+00> : vector<8x128xf32>
    %41 = tpu.matmul %40, %0, %cst_16 {dimension_numbers = #tpu.dot_dimension_numbers<[1], [0], [0], [1], [0, 0, 1, 1], [], []>} : vector<8x32xbf16>, vector<32x128xbf16>, vector<8x128xf32> -> vector<8x128xf32>
    %42 = arith.addf %39, %41 : vector<8x128xf32>
    %cst_17 = arith.constant 0.000000e+00 : f32
    %43 = vector.broadcast %cst_17 : f32 to vector<8x128xf32>
    %44 = arith.subf %43, %42 : vector<8x128xf32>
    %45 = math.exp %44 : vector<8x128xf32>
    %cst_18 = arith.constant 1.000000e+00 : f32
    %46 = vector.broadcast %cst_18 : f32 to vector<8x128xf32>
    %47 = arith.addf %46, %45 : vector<8x128xf32>
    %48 = tpu.reciprocal %47 {approx = true} : vector<8x128xf32> -> vector<8x128xf32>
    %49 = math.tanh %42 : vector<8x128xf32>
    %50 = vector.extract_strided_slice %48 {offsets = [0, 0], sizes = [8, 32], strides = [1, 1]} : vector<8x128xf32> to vector<8x32xf32>
    %51 = vector.extract_strided_slice %48 {offsets = [0, 32], sizes = [8, 32], strides = [1, 1]} : vector<8x128xf32> to vector<8x32xf32>
    %52 = vector.extract_strided_slice %49 {offsets = [0, 64], sizes = [8, 32], strides = [1, 1]} : vector<8x128xf32> to vector<8x32xf32>
    %53 = vector.extract_strided_slice %48 {offsets = [0, 96], sizes = [8, 32], strides = [1, 1]} : vector<8x128xf32> to vector<8x32xf32>
    %54 = arith.mulf %51, %36 : vector<8x32xf32>
    %55 = arith.mulf %50, %52 : vector<8x32xf32>
    %56 = arith.addf %54, %55 : vector<8x32xf32>
    %57 = math.tanh %56 : vector<8x32xf32>
    %58 = arith.mulf %53, %57 : vector<8x32xf32>
    %59 = arith.truncf %38 : vector<8x32xf32> to vector<8x32xbf16>
    %cst_19 = arith.constant dense<0.000000e+00> : vector<8x128xf32>
    %60 = tpu.matmul %59, %1, %cst_19 {dimension_numbers = #tpu.dot_dimension_numbers<[1], [0], [0], [1], [0, 0, 1, 1], [], []>} : vector<8x32xbf16>, vector<32x128xbf16>, vector<8x128xf32> -> vector<8x128xf32>
    %61 = arith.truncf %18 : vector<8x32xf32> to vector<8x32xbf16>
    %cst_20 = arith.constant dense<0.000000e+00> : vector<8x128xf32>
    %62 = tpu.matmul %61, %2, %cst_20 {dimension_numbers = #tpu.dot_dimension_numbers<[1], [0], [0], [1], [0, 0, 1, 1], [], []>} : vector<8x32xbf16>, vector<32x128xbf16>, vector<8x128xf32> -> vector<8x128xf32>
    %63 = arith.addf %60, %62 : vector<8x128xf32>
    %64 = arith.addf %63, %7 : vector<8x128xf32>
    %cst_21 = arith.constant 0.000000e+00 : f32
    %65 = vector.broadcast %cst_21 : f32 to vector<8x128xf32>
    %66 = arith.subf %65, %64 : vector<8x128xf32>
    %67 = math.exp %66 : vector<8x128xf32>
    %cst_22 = arith.constant 1.000000e+00 : f32
    %68 = vector.broadcast %cst_22 : f32 to vector<8x128xf32>
    %69 = arith.addf %68, %67 : vector<8x128xf32>
    %70 = tpu.reciprocal %69 {approx = true} : vector<8x128xf32> -> vector<8x128xf32>
    %71 = math.tanh %64 : vector<8x128xf32>
    %72 = vector.extract_strided_slice %70 {offsets = [0, 0], sizes = [8, 32], strides = [1, 1]} : vector<8x128xf32> to vector<8x32xf32>
    %73 = vector.extract_strided_slice %70 {offsets = [0, 32], sizes = [8, 32], strides = [1, 1]} : vector<8x128xf32> to vector<8x32xf32>
    %74 = vector.extract_strided_slice %71 {offsets = [0, 64], sizes = [8, 32], strides = [1, 1]} : vector<8x128xf32> to vector<8x32xf32>
    %75 = vector.extract_strided_slice %70 {offsets = [0, 96], sizes = [8, 32], strides = [1, 1]} : vector<8x128xf32> to vector<8x32xf32>
    %76 = arith.mulf %73, %18 : vector<8x32xf32>
    %77 = arith.mulf %72, %74 : vector<8x32xf32>
    %78 = arith.addf %76, %77 : vector<8x32xf32>
    %79 = math.tanh %78 : vector<8x32xf32>
    %80 = arith.mulf %75, %79 : vector<8x32xf32>
    %81 = vector.extract_strided_slice %17 {offsets = [16, 0], sizes = [8, 128], strides = [1, 1]} : vector<64x128xf32> to vector<8x128xf32>
    %82 = arith.truncf %58 : vector<8x32xf32> to vector<8x32xbf16>
    %cst_23 = arith.constant dense<0.000000e+00> : vector<8x128xf32>
    %83 = tpu.matmul %82, %0, %cst_23 {dimension_numbers = #tpu.dot_dimension_numbers<[1], [0], [0], [1], [0, 0, 1, 1], [], []>} : vector<8x32xbf16>, vector<32x128xbf16>, vector<8x128xf32> -> vector<8x128xf32>
    %84 = arith.addf %81, %83 : vector<8x128xf32>
    %cst_24 = arith.constant 0.000000e+00 : f32
    %85 = vector.broadcast %cst_24 : f32 to vector<8x128xf32>
    %86 = arith.subf %85, %84 : vector<8x128xf32>
    %87 = math.exp %86 : vector<8x128xf32>
    %cst_25 = arith.constant 1.000000e+00 : f32
    %88 = vector.broadcast %cst_25 : f32 to vector<8x128xf32>
    %89 = arith.addf %88, %87 : vector<8x128xf32>
    %90 = tpu.reciprocal %89 {approx = true} : vector<8x128xf32> -> vector<8x128xf32>
    %91 = math.tanh %84 : vector<8x128xf32>
    %92 = vector.extract_strided_slice %90 {offsets = [0, 0], sizes = [8, 32], strides = [1, 1]} : vector<8x128xf32> to vector<8x32xf32>
    %93 = vector.extract_strided_slice %90 {offsets = [0, 32], sizes = [8, 32], strides = [1, 1]} : vector<8x128xf32> to vector<8x32xf32>
    %94 = vector.extract_strided_slice %91 {offsets = [0, 64], sizes = [8, 32], strides = [1, 1]} : vector<8x128xf32> to vector<8x32xf32>
    %95 = vector.extract_strided_slice %90 {offsets = [0, 96], sizes = [8, 32], strides = [1, 1]} : vector<8x128xf32> to vector<8x32xf32>
    %96 = arith.mulf %93, %56 : vector<8x32xf32>
    %97 = arith.mulf %92, %94 : vector<8x32xf32>
    %98 = arith.addf %96, %97 : vector<8x32xf32>
    %99 = math.tanh %98 : vector<8x32xf32>
    %100 = arith.mulf %95, %99 : vector<8x32xf32>
    %101 = arith.truncf %58 : vector<8x32xf32> to vector<8x32xbf16>
    %cst_26 = arith.constant dense<0.000000e+00> : vector<8x128xf32>
    %102 = tpu.matmul %101, %1, %cst_26 {dimension_numbers = #tpu.dot_dimension_numbers<[1], [0], [0], [1], [0, 0, 1, 1], [], []>} : vector<8x32xbf16>, vector<32x128xbf16>, vector<8x128xf32> -> vector<8x128xf32>
    %103 = arith.truncf %80 : vector<8x32xf32> to vector<8x32xbf16>
    %cst_27 = arith.constant dense<0.000000e+00> : vector<8x128xf32>
    %104 = tpu.matmul %103, %2, %cst_27 {dimension_numbers = #tpu.dot_dimension_numbers<[1], [0], [0], [1], [0, 0, 1, 1], [], []>} : vector<8x32xbf16>, vector<32x128xbf16>, vector<8x128xf32> -> vector<8x128xf32>
    %105 = arith.addf %102, %104 : vector<8x128xf32>
    %106 = arith.addf %105, %7 : vector<8x128xf32>
    %cst_28 = arith.constant 0.000000e+00 : f32
    %107 = vector.broadcast %cst_28 : f32 to vector<8x128xf32>
    %108 = arith.subf %107, %106 : vector<8x128xf32>
    %109 = math.exp %108 : vector<8x128xf32>
    %cst_29 = arith.constant 1.000000e+00 : f32
    %110 = vector.broadcast %cst_29 : f32 to vector<8x128xf32>
    %111 = arith.addf %110, %109 : vector<8x128xf32>
    %112 = tpu.reciprocal %111 {approx = true} : vector<8x128xf32> -> vector<8x128xf32>
    %113 = math.tanh %106 : vector<8x128xf32>
    %114 = vector.extract_strided_slice %112 {offsets = [0, 0], sizes = [8, 32], strides = [1, 1]} : vector<8x128xf32> to vector<8x32xf32>
    %115 = vector.extract_strided_slice %112 {offsets = [0, 32], sizes = [8, 32], strides = [1, 1]} : vector<8x128xf32> to vector<8x32xf32>
    %116 = vector.extract_strided_slice %113 {offsets = [0, 64], sizes = [8, 32], strides = [1, 1]} : vector<8x128xf32> to vector<8x32xf32>
    %117 = vector.extract_strided_slice %112 {offsets = [0, 96], sizes = [8, 32], strides = [1, 1]} : vector<8x128xf32> to vector<8x32xf32>
    %118 = arith.mulf %115, %78 : vector<8x32xf32>
    %119 = arith.mulf %114, %116 : vector<8x32xf32>
    %120 = arith.addf %118, %119 : vector<8x32xf32>
    %121 = math.tanh %120 : vector<8x32xf32>
    %122 = arith.mulf %117, %121 : vector<8x32xf32>
    %123 = arith.truncf %80 : vector<8x32xf32> to vector<8x32xbf16>
    %cst_30 = arith.constant dense<0.000000e+00> : vector<8x128xf32>
    %124 = tpu.matmul %123, %3, %cst_30 {dimension_numbers = #tpu.dot_dimension_numbers<[1], [0], [0], [1], [0, 0, 1, 1], [], []>} : vector<8x32xbf16>, vector<32x128xbf16>, vector<8x128xf32> -> vector<8x128xf32>
    %125 = arith.truncf %18 : vector<8x32xf32> to vector<8x32xbf16>
    %cst_31 = arith.constant dense<0.000000e+00> : vector<8x128xf32>
    %126 = tpu.matmul %125, %4, %cst_31 {dimension_numbers = #tpu.dot_dimension_numbers<[1], [0], [0], [1], [0, 0, 1, 1], [], []>} : vector<8x32xbf16>, vector<32x128xbf16>, vector<8x128xf32> -> vector<8x128xf32>
    %127 = arith.addf %124, %126 : vector<8x128xf32>
    %128 = arith.addf %127, %10 : vector<8x128xf32>
    %cst_32 = arith.constant 0.000000e+00 : f32
    %129 = vector.broadcast %cst_32 : f32 to vector<8x128xf32>
    %130 = arith.subf %129, %128 : vector<8x128xf32>
    %131 = math.exp %130 : vector<8x128xf32>
    %cst_33 = arith.constant 1.000000e+00 : f32
    %132 = vector.broadcast %cst_33 : f32 to vector<8x128xf32>
    %133 = arith.addf %132, %131 : vector<8x128xf32>
    %134 = tpu.reciprocal %133 {approx = true} : vector<8x128xf32> -> vector<8x128xf32>
    %135 = math.tanh %128 : vector<8x128xf32>
    %136 = vector.extract_strided_slice %134 {offsets = [0, 0], sizes = [8, 32], strides = [1, 1]} : vector<8x128xf32> to vector<8x32xf32>
    %137 = vector.extract_strided_slice %134 {offsets = [0, 32], sizes = [8, 32], strides = [1, 1]} : vector<8x128xf32> to vector<8x32xf32>
    %138 = vector.extract_strided_slice %135 {offsets = [0, 64], sizes = [8, 32], strides = [1, 1]} : vector<8x128xf32> to vector<8x32xf32>
    %139 = vector.extract_strided_slice %134 {offsets = [0, 96], sizes = [8, 32], strides = [1, 1]} : vector<8x128xf32> to vector<8x32xf32>
    %140 = arith.mulf %137, %18 : vector<8x32xf32>
    %141 = arith.mulf %136, %138 : vector<8x32xf32>
    %142 = arith.addf %140, %141 : vector<8x32xf32>
    %143 = math.tanh %142 : vector<8x32xf32>
    %144 = arith.mulf %139, %143 : vector<8x32xf32>
    %145 = vector.extract_strided_slice %17 {offsets = [24, 0], sizes = [8, 128], strides = [1, 1]} : vector<64x128xf32> to vector<8x128xf32>
    %146 = arith.truncf %100 : vector<8x32xf32> to vector<8x32xbf16>
    %cst_34 = arith.constant dense<0.000000e+00> : vector<8x128xf32>
    %147 = tpu.matmul %146, %0, %cst_34 {dimension_numbers = #tpu.dot_dimension_numbers<[1], [0], [0], [1], [0, 0, 1, 1], [], []>} : vector<8x32xbf16>, vector<32x128xbf16>, vector<8x128xf32> -> vector<8x128xf32>
    %148 = arith.addf %145, %147 : vector<8x128xf32>
    %cst_35 = arith.constant 0.000000e+00 : f32
    %149 = vector.broadcast %cst_35 : f32 to vector<8x128xf32>
    %150 = arith.subf %149, %148 : vector<8x128xf32>
    %151 = math.exp %150 : vector<8x128xf32>
    %cst_36 = arith.constant 1.000000e+00 : f32
    %152 = vector.broadcast %cst_36 : f32 to vector<8x128xf32>
    %153 = arith.addf %152, %151 : vector<8x128xf32>
    %154 = tpu.reciprocal %153 {approx = true} : vector<8x128xf32> -> vector<8x128xf32>
    %155 = math.tanh %148 : vector<8x128xf32>
    %156 = vector.extract_strided_slice %154 {offsets = [0, 0], sizes = [8, 32], strides = [1, 1]} : vector<8x128xf32> to vector<8x32xf32>
    %157 = vector.extract_strided_slice %154 {offsets = [0, 32], sizes = [8, 32], strides = [1, 1]} : vector<8x128xf32> to vector<8x32xf32>
    %158 = vector.extract_strided_slice %155 {offsets = [0, 64], sizes = [8, 32], strides = [1, 1]} : vector<8x128xf32> to vector<8x32xf32>
    %159 = vector.extract_strided_slice %154 {offsets = [0, 96], sizes = [8, 32], strides = [1, 1]} : vector<8x128xf32> to vector<8x32xf32>
    %160 = arith.mulf %157, %98 : vector<8x32xf32>
    %161 = arith.mulf %156, %158 : vector<8x32xf32>
    %162 = arith.addf %160, %161 : vector<8x32xf32>
    %163 = math.tanh %162 : vector<8x32xf32>
    %164 = arith.mulf %159, %163 : vector<8x32xf32>
    %165 = arith.truncf %100 : vector<8x32xf32> to vector<8x32xbf16>
    %cst_37 = arith.constant dense<0.000000e+00> : vector<8x128xf32>
    %166 = tpu.matmul %165, %1, %cst_37 {dimension_numbers = #tpu.dot_dimension_numbers<[1], [0], [0], [1], [0, 0, 1, 1], [], []>} : vector<8x32xbf16>, vector<32x128xbf16>, vector<8x128xf32> -> vector<8x128xf32>
    %167 = arith.truncf %122 : vector<8x32xf32> to vector<8x32xbf16>
    %cst_38 = arith.constant dense<0.000000e+00> : vector<8x128xf32>
    %168 = tpu.matmul %167, %2, %cst_38 {dimension_numbers = #tpu.dot_dimension_numbers<[1], [0], [0], [1], [0, 0, 1, 1], [], []>} : vector<8x32xbf16>, vector<32x128xbf16>, vector<8x128xf32> -> vector<8x128xf32>
    %169 = arith.addf %166, %168 : vector<8x128xf32>
    %170 = arith.addf %169, %7 : vector<8x128xf32>
    %cst_39 = arith.constant 0.000000e+00 : f32
    %171 = vector.broadcast %cst_39 : f32 to vector<8x128xf32>
    %172 = arith.subf %171, %170 : vector<8x128xf32>
    %173 = math.exp %172 : vector<8x128xf32>
    %cst_40 = arith.constant 1.000000e+00 : f32
    %174 = vector.broadcast %cst_40 : f32 to vector<8x128xf32>
    %175 = arith.addf %174, %173 : vector<8x128xf32>
    %176 = tpu.reciprocal %175 {approx = true} : vector<8x128xf32> -> vector<8x128xf32>
    %177 = math.tanh %170 : vector<8x128xf32>
    %178 = vector.extract_strided_slice %176 {offsets = [0, 0], sizes = [8, 32], strides = [1, 1]} : vector<8x128xf32> to vector<8x32xf32>
    %179 = vector.extract_strided_slice %176 {offsets = [0, 32], sizes = [8, 32], strides = [1, 1]} : vector<8x128xf32> to vector<8x32xf32>
    %180 = vector.extract_strided_slice %177 {offsets = [0, 64], sizes = [8, 32], strides = [1, 1]} : vector<8x128xf32> to vector<8x32xf32>
    %181 = vector.extract_strided_slice %176 {offsets = [0, 96], sizes = [8, 32], strides = [1, 1]} : vector<8x128xf32> to vector<8x32xf32>
    %182 = arith.mulf %179, %120 : vector<8x32xf32>
    %183 = arith.mulf %178, %180 : vector<8x32xf32>
    %184 = arith.addf %182, %183 : vector<8x32xf32>
    %185 = math.tanh %184 : vector<8x32xf32>
    %186 = arith.mulf %181, %185 : vector<8x32xf32>
    %187 = arith.truncf %122 : vector<8x32xf32> to vector<8x32xbf16>
    %cst_41 = arith.constant dense<0.000000e+00> : vector<8x128xf32>
    %188 = tpu.matmul %187, %3, %cst_41 {dimension_numbers = #tpu.dot_dimension_numbers<[1], [0], [0], [1], [0, 0, 1, 1], [], []>} : vector<8x32xbf16>, vector<32x128xbf16>, vector<8x128xf32> -> vector<8x128xf32>
    %189 = arith.truncf %144 : vector<8x32xf32> to vector<8x32xbf16>
    %cst_42 = arith.constant dense<0.000000e+00> : vector<8x128xf32>
    %190 = tpu.matmul %189, %4, %cst_42 {dimension_numbers = #tpu.dot_dimension_numbers<[1], [0], [0], [1], [0, 0, 1, 1], [], []>} : vector<8x32xbf16>, vector<32x128xbf16>, vector<8x128xf32> -> vector<8x128xf32>
    %191 = arith.addf %188, %190 : vector<8x128xf32>
    %192 = arith.addf %191, %10 : vector<8x128xf32>
    %cst_43 = arith.constant 0.000000e+00 : f32
    %193 = vector.broadcast %cst_43 : f32 to vector<8x128xf32>
    %194 = arith.subf %193, %192 : vector<8x128xf32>
    %195 = math.exp %194 : vector<8x128xf32>
    %cst_44 = arith.constant 1.000000e+00 : f32
    %196 = vector.broadcast %cst_44 : f32 to vector<8x128xf32>
    %197 = arith.addf %196, %195 : vector<8x128xf32>
    %198 = tpu.reciprocal %197 {approx = true} : vector<8x128xf32> -> vector<8x128xf32>
    %199 = math.tanh %192 : vector<8x128xf32>
    %200 = vector.extract_strided_slice %198 {offsets = [0, 0], sizes = [8, 32], strides = [1, 1]} : vector<8x128xf32> to vector<8x32xf32>
    %201 = vector.extract_strided_slice %198 {offsets = [0, 32], sizes = [8, 32], strides = [1, 1]} : vector<8x128xf32> to vector<8x32xf32>
    %202 = vector.extract_strided_slice %199 {offsets = [0, 64], sizes = [8, 32], strides = [1, 1]} : vector<8x128xf32> to vector<8x32xf32>
    %203 = vector.extract_strided_slice %198 {offsets = [0, 96], sizes = [8, 32], strides = [1, 1]} : vector<8x128xf32> to vector<8x32xf32>
    %204 = arith.mulf %201, %142 : vector<8x32xf32>
    %205 = arith.mulf %200, %202 : vector<8x32xf32>
    %206 = arith.addf %204, %205 : vector<8x32xf32>
    %207 = math.tanh %206 : vector<8x32xf32>
    %208 = arith.mulf %203, %207 : vector<8x32xf32>
    %209 = vector.extract_strided_slice %17 {offsets = [32, 0], sizes = [8, 128], strides = [1, 1]} : vector<64x128xf32> to vector<8x128xf32>
    %210 = arith.truncf %164 : vector<8x32xf32> to vector<8x32xbf16>
    %cst_45 = arith.constant dense<0.000000e+00> : vector<8x128xf32>
    %211 = tpu.matmul %210, %0, %cst_45 {dimension_numbers = #tpu.dot_dimension_numbers<[1], [0], [0], [1], [0, 0, 1, 1], [], []>} : vector<8x32xbf16>, vector<32x128xbf16>, vector<8x128xf32> -> vector<8x128xf32>
    %212 = arith.addf %209, %211 : vector<8x128xf32>
    %cst_46 = arith.constant 0.000000e+00 : f32
    %213 = vector.broadcast %cst_46 : f32 to vector<8x128xf32>
    %214 = arith.subf %213, %212 : vector<8x128xf32>
    %215 = math.exp %214 : vector<8x128xf32>
    %cst_47 = arith.constant 1.000000e+00 : f32
    %216 = vector.broadcast %cst_47 : f32 to vector<8x128xf32>
    %217 = arith.addf %216, %215 : vector<8x128xf32>
    %218 = tpu.reciprocal %217 {approx = true} : vector<8x128xf32> -> vector<8x128xf32>
    %219 = math.tanh %212 : vector<8x128xf32>
    %220 = vector.extract_strided_slice %218 {offsets = [0, 0], sizes = [8, 32], strides = [1, 1]} : vector<8x128xf32> to vector<8x32xf32>
    %221 = vector.extract_strided_slice %218 {offsets = [0, 32], sizes = [8, 32], strides = [1, 1]} : vector<8x128xf32> to vector<8x32xf32>
    %222 = vector.extract_strided_slice %219 {offsets = [0, 64], sizes = [8, 32], strides = [1, 1]} : vector<8x128xf32> to vector<8x32xf32>
    %223 = vector.extract_strided_slice %218 {offsets = [0, 96], sizes = [8, 32], strides = [1, 1]} : vector<8x128xf32> to vector<8x32xf32>
    %224 = arith.mulf %221, %162 : vector<8x32xf32>
    %225 = arith.mulf %220, %222 : vector<8x32xf32>
    %226 = arith.addf %224, %225 : vector<8x32xf32>
    %227 = math.tanh %226 : vector<8x32xf32>
    %228 = arith.mulf %223, %227 : vector<8x32xf32>
    %229 = arith.truncf %164 : vector<8x32xf32> to vector<8x32xbf16>
    %cst_48 = arith.constant dense<0.000000e+00> : vector<8x128xf32>
    %230 = tpu.matmul %229, %1, %cst_48 {dimension_numbers = #tpu.dot_dimension_numbers<[1], [0], [0], [1], [0, 0, 1, 1], [], []>} : vector<8x32xbf16>, vector<32x128xbf16>, vector<8x128xf32> -> vector<8x128xf32>
    %231 = arith.truncf %186 : vector<8x32xf32> to vector<8x32xbf16>
    %cst_49 = arith.constant dense<0.000000e+00> : vector<8x128xf32>
    %232 = tpu.matmul %231, %2, %cst_49 {dimension_numbers = #tpu.dot_dimension_numbers<[1], [0], [0], [1], [0, 0, 1, 1], [], []>} : vector<8x32xbf16>, vector<32x128xbf16>, vector<8x128xf32> -> vector<8x128xf32>
    %233 = arith.addf %230, %232 : vector<8x128xf32>
    %234 = arith.addf %233, %7 : vector<8x128xf32>
    %cst_50 = arith.constant 0.000000e+00 : f32
    %235 = vector.broadcast %cst_50 : f32 to vector<8x128xf32>
    %236 = arith.subf %235, %234 : vector<8x128xf32>
    %237 = math.exp %236 : vector<8x128xf32>
    %cst_51 = arith.constant 1.000000e+00 : f32
    %238 = vector.broadcast %cst_51 : f32 to vector<8x128xf32>
    %239 = arith.addf %238, %237 : vector<8x128xf32>
    %240 = tpu.reciprocal %239 {approx = true} : vector<8x128xf32> -> vector<8x128xf32>
    %241 = math.tanh %234 : vector<8x128xf32>
    %242 = vector.extract_strided_slice %240 {offsets = [0, 0], sizes = [8, 32], strides = [1, 1]} : vector<8x128xf32> to vector<8x32xf32>
    %243 = vector.extract_strided_slice %240 {offsets = [0, 32], sizes = [8, 32], strides = [1, 1]} : vector<8x128xf32> to vector<8x32xf32>
    %244 = vector.extract_strided_slice %241 {offsets = [0, 64], sizes = [8, 32], strides = [1, 1]} : vector<8x128xf32> to vector<8x32xf32>
    %245 = vector.extract_strided_slice %240 {offsets = [0, 96], sizes = [8, 32], strides = [1, 1]} : vector<8x128xf32> to vector<8x32xf32>
    %246 = arith.mulf %243, %184 : vector<8x32xf32>
    %247 = arith.mulf %242, %244 : vector<8x32xf32>
    %248 = arith.addf %246, %247 : vector<8x32xf32>
    %249 = math.tanh %248 : vector<8x32xf32>
    %250 = arith.mulf %245, %249 : vector<8x32xf32>
    %251 = arith.truncf %186 : vector<8x32xf32> to vector<8x32xbf16>
    %cst_52 = arith.constant dense<0.000000e+00> : vector<8x128xf32>
    %252 = tpu.matmul %251, %3, %cst_52 {dimension_numbers = #tpu.dot_dimension_numbers<[1], [0], [0], [1], [0, 0, 1, 1], [], []>} : vector<8x32xbf16>, vector<32x128xbf16>, vector<8x128xf32> -> vector<8x128xf32>
    %253 = arith.truncf %208 : vector<8x32xf32> to vector<8x32xbf16>
    %cst_53 = arith.constant dense<0.000000e+00> : vector<8x128xf32>
    %254 = tpu.matmul %253, %4, %cst_53 {dimension_numbers = #tpu.dot_dimension_numbers<[1], [0], [0], [1], [0, 0, 1, 1], [], []>} : vector<8x32xbf16>, vector<32x128xbf16>, vector<8x128xf32> -> vector<8x128xf32>
    %255 = arith.addf %252, %254 : vector<8x128xf32>
    %256 = arith.addf %255, %10 : vector<8x128xf32>
    %cst_54 = arith.constant 0.000000e+00 : f32
    %257 = vector.broadcast %cst_54 : f32 to vector<8x128xf32>
    %258 = arith.subf %257, %256 : vector<8x128xf32>
    %259 = math.exp %258 : vector<8x128xf32>
    %cst_55 = arith.constant 1.000000e+00 : f32
    %260 = vector.broadcast %cst_55 : f32 to vector<8x128xf32>
    %261 = arith.addf %260, %259 : vector<8x128xf32>
    %262 = tpu.reciprocal %261 {approx = true} : vector<8x128xf32> -> vector<8x128xf32>
    %263 = math.tanh %256 : vector<8x128xf32>
    %264 = vector.extract_strided_slice %262 {offsets = [0, 0], sizes = [8, 32], strides = [1, 1]} : vector<8x128xf32> to vector<8x32xf32>
    %265 = vector.extract_strided_slice %262 {offsets = [0, 32], sizes = [8, 32], strides = [1, 1]} : vector<8x128xf32> to vector<8x32xf32>
    %266 = vector.extract_strided_slice %263 {offsets = [0, 64], sizes = [8, 32], strides = [1, 1]} : vector<8x128xf32> to vector<8x32xf32>
    %267 = vector.extract_strided_slice %262 {offsets = [0, 96], sizes = [8, 32], strides = [1, 1]} : vector<8x128xf32> to vector<8x32xf32>
    %268 = arith.mulf %265, %206 : vector<8x32xf32>
    %269 = arith.mulf %264, %266 : vector<8x32xf32>
    %270 = arith.addf %268, %269 : vector<8x32xf32>
    %271 = math.tanh %270 : vector<8x32xf32>
    %272 = arith.mulf %267, %271 : vector<8x32xf32>
    %273 = vector.extract_strided_slice %17 {offsets = [40, 0], sizes = [8, 128], strides = [1, 1]} : vector<64x128xf32> to vector<8x128xf32>
    %274 = arith.truncf %228 : vector<8x32xf32> to vector<8x32xbf16>
    %cst_56 = arith.constant dense<0.000000e+00> : vector<8x128xf32>
    %275 = tpu.matmul %274, %0, %cst_56 {dimension_numbers = #tpu.dot_dimension_numbers<[1], [0], [0], [1], [0, 0, 1, 1], [], []>} : vector<8x32xbf16>, vector<32x128xbf16>, vector<8x128xf32> -> vector<8x128xf32>
    %276 = arith.addf %273, %275 : vector<8x128xf32>
    %cst_57 = arith.constant 0.000000e+00 : f32
    %277 = vector.broadcast %cst_57 : f32 to vector<8x128xf32>
    %278 = arith.subf %277, %276 : vector<8x128xf32>
    %279 = math.exp %278 : vector<8x128xf32>
    %cst_58 = arith.constant 1.000000e+00 : f32
    %280 = vector.broadcast %cst_58 : f32 to vector<8x128xf32>
    %281 = arith.addf %280, %279 : vector<8x128xf32>
    %282 = tpu.reciprocal %281 {approx = true} : vector<8x128xf32> -> vector<8x128xf32>
    %283 = math.tanh %276 : vector<8x128xf32>
    %284 = vector.extract_strided_slice %282 {offsets = [0, 0], sizes = [8, 32], strides = [1, 1]} : vector<8x128xf32> to vector<8x32xf32>
    %285 = vector.extract_strided_slice %282 {offsets = [0, 32], sizes = [8, 32], strides = [1, 1]} : vector<8x128xf32> to vector<8x32xf32>
    %286 = vector.extract_strided_slice %283 {offsets = [0, 64], sizes = [8, 32], strides = [1, 1]} : vector<8x128xf32> to vector<8x32xf32>
    %287 = vector.extract_strided_slice %282 {offsets = [0, 96], sizes = [8, 32], strides = [1, 1]} : vector<8x128xf32> to vector<8x32xf32>
    %288 = arith.mulf %285, %226 : vector<8x32xf32>
    %289 = arith.mulf %284, %286 : vector<8x32xf32>
    %290 = arith.addf %288, %289 : vector<8x32xf32>
    %291 = math.tanh %290 : vector<8x32xf32>
    %292 = arith.mulf %287, %291 : vector<8x32xf32>
    %293 = arith.truncf %228 : vector<8x32xf32> to vector<8x32xbf16>
    %cst_59 = arith.constant dense<0.000000e+00> : vector<8x128xf32>
    %294 = tpu.matmul %293, %1, %cst_59 {dimension_numbers = #tpu.dot_dimension_numbers<[1], [0], [0], [1], [0, 0, 1, 1], [], []>} : vector<8x32xbf16>, vector<32x128xbf16>, vector<8x128xf32> -> vector<8x128xf32>
    %295 = arith.truncf %250 : vector<8x32xf32> to vector<8x32xbf16>
    %cst_60 = arith.constant dense<0.000000e+00> : vector<8x128xf32>
    %296 = tpu.matmul %295, %2, %cst_60 {dimension_numbers = #tpu.dot_dimension_numbers<[1], [0], [0], [1], [0, 0, 1, 1], [], []>} : vector<8x32xbf16>, vector<32x128xbf16>, vector<8x128xf32> -> vector<8x128xf32>
    %297 = arith.addf %294, %296 : vector<8x128xf32>
    %298 = arith.addf %297, %7 : vector<8x128xf32>
    %cst_61 = arith.constant 0.000000e+00 : f32
    %299 = vector.broadcast %cst_61 : f32 to vector<8x128xf32>
    %300 = arith.subf %299, %298 : vector<8x128xf32>
    %301 = math.exp %300 : vector<8x128xf32>
    %cst_62 = arith.constant 1.000000e+00 : f32
    %302 = vector.broadcast %cst_62 : f32 to vector<8x128xf32>
    %303 = arith.addf %302, %301 : vector<8x128xf32>
    %304 = tpu.reciprocal %303 {approx = true} : vector<8x128xf32> -> vector<8x128xf32>
    %305 = math.tanh %298 : vector<8x128xf32>
    %306 = vector.extract_strided_slice %304 {offsets = [0, 0], sizes = [8, 32], strides = [1, 1]} : vector<8x128xf32> to vector<8x32xf32>
    %307 = vector.extract_strided_slice %304 {offsets = [0, 32], sizes = [8, 32], strides = [1, 1]} : vector<8x128xf32> to vector<8x32xf32>
    %308 = vector.extract_strided_slice %305 {offsets = [0, 64], sizes = [8, 32], strides = [1, 1]} : vector<8x128xf32> to vector<8x32xf32>
    %309 = vector.extract_strided_slice %304 {offsets = [0, 96], sizes = [8, 32], strides = [1, 1]} : vector<8x128xf32> to vector<8x32xf32>
    %310 = arith.mulf %307, %248 : vector<8x32xf32>
    %311 = arith.mulf %306, %308 : vector<8x32xf32>
    %312 = arith.addf %310, %311 : vector<8x32xf32>
    %313 = math.tanh %312 : vector<8x32xf32>
    %314 = arith.mulf %309, %313 : vector<8x32xf32>
    %315 = arith.truncf %250 : vector<8x32xf32> to vector<8x32xbf16>
    %cst_63 = arith.constant dense<0.000000e+00> : vector<8x128xf32>
    %316 = tpu.matmul %315, %3, %cst_63 {dimension_numbers = #tpu.dot_dimension_numbers<[1], [0], [0], [1], [0, 0, 1, 1], [], []>} : vector<8x32xbf16>, vector<32x128xbf16>, vector<8x128xf32> -> vector<8x128xf32>
    %317 = arith.truncf %272 : vector<8x32xf32> to vector<8x32xbf16>
    %cst_64 = arith.constant dense<0.000000e+00> : vector<8x128xf32>
    %318 = tpu.matmul %317, %4, %cst_64 {dimension_numbers = #tpu.dot_dimension_numbers<[1], [0], [0], [1], [0, 0, 1, 1], [], []>} : vector<8x32xbf16>, vector<32x128xbf16>, vector<8x128xf32> -> vector<8x128xf32>
    %319 = arith.addf %316, %318 : vector<8x128xf32>
    %320 = arith.addf %319, %10 : vector<8x128xf32>
    %cst_65 = arith.constant 0.000000e+00 : f32
    %321 = vector.broadcast %cst_65 : f32 to vector<8x128xf32>
    %322 = arith.subf %321, %320 : vector<8x128xf32>
    %323 = math.exp %322 : vector<8x128xf32>
    %cst_66 = arith.constant 1.000000e+00 : f32
    %324 = vector.broadcast %cst_66 : f32 to vector<8x128xf32>
    %325 = arith.addf %324, %323 : vector<8x128xf32>
    %326 = tpu.reciprocal %325 {approx = true} : vector<8x128xf32> -> vector<8x128xf32>
    %327 = math.tanh %320 : vector<8x128xf32>
    %328 = vector.extract_strided_slice %326 {offsets = [0, 0], sizes = [8, 32], strides = [1, 1]} : vector<8x128xf32> to vector<8x32xf32>
    %329 = vector.extract_strided_slice %326 {offsets = [0, 32], sizes = [8, 32], strides = [1, 1]} : vector<8x128xf32> to vector<8x32xf32>
    %330 = vector.extract_strided_slice %327 {offsets = [0, 64], sizes = [8, 32], strides = [1, 1]} : vector<8x128xf32> to vector<8x32xf32>
    %331 = vector.extract_strided_slice %326 {offsets = [0, 96], sizes = [8, 32], strides = [1, 1]} : vector<8x128xf32> to vector<8x32xf32>
    %332 = arith.mulf %329, %270 : vector<8x32xf32>
    %333 = arith.mulf %328, %330 : vector<8x32xf32>
    %334 = arith.addf %332, %333 : vector<8x32xf32>
    %335 = math.tanh %334 : vector<8x32xf32>
    %336 = arith.mulf %331, %335 : vector<8x32xf32>
    %337 = vector.extract_strided_slice %17 {offsets = [48, 0], sizes = [8, 128], strides = [1, 1]} : vector<64x128xf32> to vector<8x128xf32>
    %338 = arith.truncf %292 : vector<8x32xf32> to vector<8x32xbf16>
    %cst_67 = arith.constant dense<0.000000e+00> : vector<8x128xf32>
    %339 = tpu.matmul %338, %0, %cst_67 {dimension_numbers = #tpu.dot_dimension_numbers<[1], [0], [0], [1], [0, 0, 1, 1], [], []>} : vector<8x32xbf16>, vector<32x128xbf16>, vector<8x128xf32> -> vector<8x128xf32>
    %340 = arith.addf %337, %339 : vector<8x128xf32>
    %cst_68 = arith.constant 0.000000e+00 : f32
    %341 = vector.broadcast %cst_68 : f32 to vector<8x128xf32>
    %342 = arith.subf %341, %340 : vector<8x128xf32>
    %343 = math.exp %342 : vector<8x128xf32>
    %cst_69 = arith.constant 1.000000e+00 : f32
    %344 = vector.broadcast %cst_69 : f32 to vector<8x128xf32>
    %345 = arith.addf %344, %343 : vector<8x128xf32>
    %346 = tpu.reciprocal %345 {approx = true} : vector<8x128xf32> -> vector<8x128xf32>
    %347 = math.tanh %340 : vector<8x128xf32>
    %348 = vector.extract_strided_slice %346 {offsets = [0, 0], sizes = [8, 32], strides = [1, 1]} : vector<8x128xf32> to vector<8x32xf32>
    %349 = vector.extract_strided_slice %346 {offsets = [0, 32], sizes = [8, 32], strides = [1, 1]} : vector<8x128xf32> to vector<8x32xf32>
    %350 = vector.extract_strided_slice %347 {offsets = [0, 64], sizes = [8, 32], strides = [1, 1]} : vector<8x128xf32> to vector<8x32xf32>
    %351 = vector.extract_strided_slice %346 {offsets = [0, 96], sizes = [8, 32], strides = [1, 1]} : vector<8x128xf32> to vector<8x32xf32>
    %352 = arith.mulf %349, %290 : vector<8x32xf32>
    %353 = arith.mulf %348, %350 : vector<8x32xf32>
    %354 = arith.addf %352, %353 : vector<8x32xf32>
    %355 = math.tanh %354 : vector<8x32xf32>
    %356 = arith.mulf %351, %355 : vector<8x32xf32>
    %357 = arith.truncf %292 : vector<8x32xf32> to vector<8x32xbf16>
    %cst_70 = arith.constant dense<0.000000e+00> : vector<8x128xf32>
    %358 = tpu.matmul %357, %1, %cst_70 {dimension_numbers = #tpu.dot_dimension_numbers<[1], [0], [0], [1], [0, 0, 1, 1], [], []>} : vector<8x32xbf16>, vector<32x128xbf16>, vector<8x128xf32> -> vector<8x128xf32>
    %359 = arith.truncf %314 : vector<8x32xf32> to vector<8x32xbf16>
    %cst_71 = arith.constant dense<0.000000e+00> : vector<8x128xf32>
    %360 = tpu.matmul %359, %2, %cst_71 {dimension_numbers = #tpu.dot_dimension_numbers<[1], [0], [0], [1], [0, 0, 1, 1], [], []>} : vector<8x32xbf16>, vector<32x128xbf16>, vector<8x128xf32> -> vector<8x128xf32>
    %361 = arith.addf %358, %360 : vector<8x128xf32>
    %362 = arith.addf %361, %7 : vector<8x128xf32>
    %cst_72 = arith.constant 0.000000e+00 : f32
    %363 = vector.broadcast %cst_72 : f32 to vector<8x128xf32>
    %364 = arith.subf %363, %362 : vector<8x128xf32>
    %365 = math.exp %364 : vector<8x128xf32>
    %cst_73 = arith.constant 1.000000e+00 : f32
    %366 = vector.broadcast %cst_73 : f32 to vector<8x128xf32>
    %367 = arith.addf %366, %365 : vector<8x128xf32>
    %368 = tpu.reciprocal %367 {approx = true} : vector<8x128xf32> -> vector<8x128xf32>
    %369 = math.tanh %362 : vector<8x128xf32>
    %370 = vector.extract_strided_slice %368 {offsets = [0, 0], sizes = [8, 32], strides = [1, 1]} : vector<8x128xf32> to vector<8x32xf32>
    %371 = vector.extract_strided_slice %368 {offsets = [0, 32], sizes = [8, 32], strides = [1, 1]} : vector<8x128xf32> to vector<8x32xf32>
    %372 = vector.extract_strided_slice %369 {offsets = [0, 64], sizes = [8, 32], strides = [1, 1]} : vector<8x128xf32> to vector<8x32xf32>
    %373 = vector.extract_strided_slice %368 {offsets = [0, 96], sizes = [8, 32], strides = [1, 1]} : vector<8x128xf32> to vector<8x32xf32>
    %374 = arith.mulf %371, %312 : vector<8x32xf32>
    %375 = arith.mulf %370, %372 : vector<8x32xf32>
    %376 = arith.addf %374, %375 : vector<8x32xf32>
    %377 = math.tanh %376 : vector<8x32xf32>
    %378 = arith.mulf %373, %377 : vector<8x32xf32>
    %379 = arith.truncf %314 : vector<8x32xf32> to vector<8x32xbf16>
    %cst_74 = arith.constant dense<0.000000e+00> : vector<8x128xf32>
    %380 = tpu.matmul %379, %3, %cst_74 {dimension_numbers = #tpu.dot_dimension_numbers<[1], [0], [0], [1], [0, 0, 1, 1], [], []>} : vector<8x32xbf16>, vector<32x128xbf16>, vector<8x128xf32> -> vector<8x128xf32>
    %381 = arith.truncf %336 : vector<8x32xf32> to vector<8x32xbf16>
    %cst_75 = arith.constant dense<0.000000e+00> : vector<8x128xf32>
    %382 = tpu.matmul %381, %4, %cst_75 {dimension_numbers = #tpu.dot_dimension_numbers<[1], [0], [0], [1], [0, 0, 1, 1], [], []>} : vector<8x32xbf16>, vector<32x128xbf16>, vector<8x128xf32> -> vector<8x128xf32>
    %383 = arith.addf %380, %382 : vector<8x128xf32>
    %384 = arith.addf %383, %10 : vector<8x128xf32>
    %cst_76 = arith.constant 0.000000e+00 : f32
    %385 = vector.broadcast %cst_76 : f32 to vector<8x128xf32>
    %386 = arith.subf %385, %384 : vector<8x128xf32>
    %387 = math.exp %386 : vector<8x128xf32>
    %cst_77 = arith.constant 1.000000e+00 : f32
    %388 = vector.broadcast %cst_77 : f32 to vector<8x128xf32>
    %389 = arith.addf %388, %387 : vector<8x128xf32>
    %390 = tpu.reciprocal %389 {approx = true} : vector<8x128xf32> -> vector<8x128xf32>
    %391 = math.tanh %384 : vector<8x128xf32>
    %392 = vector.extract_strided_slice %390 {offsets = [0, 0], sizes = [8, 32], strides = [1, 1]} : vector<8x128xf32> to vector<8x32xf32>
    %393 = vector.extract_strided_slice %390 {offsets = [0, 32], sizes = [8, 32], strides = [1, 1]} : vector<8x128xf32> to vector<8x32xf32>
    %394 = vector.extract_strided_slice %391 {offsets = [0, 64], sizes = [8, 32], strides = [1, 1]} : vector<8x128xf32> to vector<8x32xf32>
    %395 = vector.extract_strided_slice %390 {offsets = [0, 96], sizes = [8, 32], strides = [1, 1]} : vector<8x128xf32> to vector<8x32xf32>
    %396 = arith.mulf %393, %334 : vector<8x32xf32>
    %397 = arith.mulf %392, %394 : vector<8x32xf32>
    %398 = arith.addf %396, %397 : vector<8x32xf32>
    %399 = math.tanh %398 : vector<8x32xf32>
    %400 = arith.mulf %395, %399 : vector<8x32xf32>
    %401 = vector.extract_strided_slice %17 {offsets = [56, 0], sizes = [8, 128], strides = [1, 1]} : vector<64x128xf32> to vector<8x128xf32>
    %402 = arith.truncf %356 : vector<8x32xf32> to vector<8x32xbf16>
    %cst_78 = arith.constant dense<0.000000e+00> : vector<8x128xf32>
    %403 = tpu.matmul %402, %0, %cst_78 {dimension_numbers = #tpu.dot_dimension_numbers<[1], [0], [0], [1], [0, 0, 1, 1], [], []>} : vector<8x32xbf16>, vector<32x128xbf16>, vector<8x128xf32> -> vector<8x128xf32>
    %404 = arith.addf %401, %403 : vector<8x128xf32>
    %cst_79 = arith.constant 0.000000e+00 : f32
    %405 = vector.broadcast %cst_79 : f32 to vector<8x128xf32>
    %406 = arith.subf %405, %404 : vector<8x128xf32>
    %407 = math.exp %406 : vector<8x128xf32>
    %cst_80 = arith.constant 1.000000e+00 : f32
    %408 = vector.broadcast %cst_80 : f32 to vector<8x128xf32>
    %409 = arith.addf %408, %407 : vector<8x128xf32>
    %410 = tpu.reciprocal %409 {approx = true} : vector<8x128xf32> -> vector<8x128xf32>
    %411 = math.tanh %404 : vector<8x128xf32>
    %412 = vector.extract_strided_slice %410 {offsets = [0, 0], sizes = [8, 32], strides = [1, 1]} : vector<8x128xf32> to vector<8x32xf32>
    %413 = vector.extract_strided_slice %410 {offsets = [0, 32], sizes = [8, 32], strides = [1, 1]} : vector<8x128xf32> to vector<8x32xf32>
    %414 = vector.extract_strided_slice %411 {offsets = [0, 64], sizes = [8, 32], strides = [1, 1]} : vector<8x128xf32> to vector<8x32xf32>
    %415 = vector.extract_strided_slice %410 {offsets = [0, 96], sizes = [8, 32], strides = [1, 1]} : vector<8x128xf32> to vector<8x32xf32>
    %416 = arith.mulf %413, %354 : vector<8x32xf32>
    %417 = arith.mulf %412, %414 : vector<8x32xf32>
    %418 = arith.addf %416, %417 : vector<8x32xf32>
    %419 = math.tanh %418 : vector<8x32xf32>
    %420 = arith.mulf %415, %419 : vector<8x32xf32>
    %421 = arith.truncf %356 : vector<8x32xf32> to vector<8x32xbf16>
    %cst_81 = arith.constant dense<0.000000e+00> : vector<8x128xf32>
    %422 = tpu.matmul %421, %1, %cst_81 {dimension_numbers = #tpu.dot_dimension_numbers<[1], [0], [0], [1], [0, 0, 1, 1], [], []>} : vector<8x32xbf16>, vector<32x128xbf16>, vector<8x128xf32> -> vector<8x128xf32>
    %423 = arith.truncf %378 : vector<8x32xf32> to vector<8x32xbf16>
    %cst_82 = arith.constant dense<0.000000e+00> : vector<8x128xf32>
    %424 = tpu.matmul %423, %2, %cst_82 {dimension_numbers = #tpu.dot_dimension_numbers<[1], [0], [0], [1], [0, 0, 1, 1], [], []>} : vector<8x32xbf16>, vector<32x128xbf16>, vector<8x128xf32> -> vector<8x128xf32>
    %425 = arith.addf %422, %424 : vector<8x128xf32>
    %426 = arith.addf %425, %7 : vector<8x128xf32>
    %cst_83 = arith.constant 0.000000e+00 : f32
    %427 = vector.broadcast %cst_83 : f32 to vector<8x128xf32>
    %428 = arith.subf %427, %426 : vector<8x128xf32>
    %429 = math.exp %428 : vector<8x128xf32>
    %cst_84 = arith.constant 1.000000e+00 : f32
    %430 = vector.broadcast %cst_84 : f32 to vector<8x128xf32>
    %431 = arith.addf %430, %429 : vector<8x128xf32>
    %432 = tpu.reciprocal %431 {approx = true} : vector<8x128xf32> -> vector<8x128xf32>
    %433 = math.tanh %426 : vector<8x128xf32>
    %434 = vector.extract_strided_slice %432 {offsets = [0, 0], sizes = [8, 32], strides = [1, 1]} : vector<8x128xf32> to vector<8x32xf32>
    %435 = vector.extract_strided_slice %432 {offsets = [0, 32], sizes = [8, 32], strides = [1, 1]} : vector<8x128xf32> to vector<8x32xf32>
    %436 = vector.extract_strided_slice %433 {offsets = [0, 64], sizes = [8, 32], strides = [1, 1]} : vector<8x128xf32> to vector<8x32xf32>
    %437 = vector.extract_strided_slice %432 {offsets = [0, 96], sizes = [8, 32], strides = [1, 1]} : vector<8x128xf32> to vector<8x32xf32>
    %438 = arith.mulf %435, %376 : vector<8x32xf32>
    %439 = arith.mulf %434, %436 : vector<8x32xf32>
    %440 = arith.addf %438, %439 : vector<8x32xf32>
    %441 = math.tanh %440 : vector<8x32xf32>
    %442 = arith.mulf %437, %441 : vector<8x32xf32>
    %443 = arith.truncf %378 : vector<8x32xf32> to vector<8x32xbf16>
    %cst_85 = arith.constant dense<0.000000e+00> : vector<8x128xf32>
    %444 = tpu.matmul %443, %3, %cst_85 {dimension_numbers = #tpu.dot_dimension_numbers<[1], [0], [0], [1], [0, 0, 1, 1], [], []>} : vector<8x32xbf16>, vector<32x128xbf16>, vector<8x128xf32> -> vector<8x128xf32>
    %445 = arith.truncf %400 : vector<8x32xf32> to vector<8x32xbf16>
    %cst_86 = arith.constant dense<0.000000e+00> : vector<8x128xf32>
    %446 = tpu.matmul %445, %4, %cst_86 {dimension_numbers = #tpu.dot_dimension_numbers<[1], [0], [0], [1], [0, 0, 1, 1], [], []>} : vector<8x32xbf16>, vector<32x128xbf16>, vector<8x128xf32> -> vector<8x128xf32>
    %447 = arith.addf %444, %446 : vector<8x128xf32>
    %448 = arith.addf %447, %10 : vector<8x128xf32>
    %cst_87 = arith.constant 0.000000e+00 : f32
    %449 = vector.broadcast %cst_87 : f32 to vector<8x128xf32>
    %450 = arith.subf %449, %448 : vector<8x128xf32>
    %451 = math.exp %450 : vector<8x128xf32>
    %cst_88 = arith.constant 1.000000e+00 : f32
    %452 = vector.broadcast %cst_88 : f32 to vector<8x128xf32>
    %453 = arith.addf %452, %451 : vector<8x128xf32>
    %454 = tpu.reciprocal %453 {approx = true} : vector<8x128xf32> -> vector<8x128xf32>
    %455 = math.tanh %448 : vector<8x128xf32>
    %456 = vector.extract_strided_slice %454 {offsets = [0, 0], sizes = [8, 32], strides = [1, 1]} : vector<8x128xf32> to vector<8x32xf32>
    %457 = vector.extract_strided_slice %454 {offsets = [0, 32], sizes = [8, 32], strides = [1, 1]} : vector<8x128xf32> to vector<8x32xf32>
    %458 = vector.extract_strided_slice %455 {offsets = [0, 64], sizes = [8, 32], strides = [1, 1]} : vector<8x128xf32> to vector<8x32xf32>
    %459 = vector.extract_strided_slice %454 {offsets = [0, 96], sizes = [8, 32], strides = [1, 1]} : vector<8x128xf32> to vector<8x32xf32>
    %460 = arith.mulf %457, %398 : vector<8x32xf32>
    %461 = arith.mulf %456, %458 : vector<8x32xf32>
    %462 = arith.addf %460, %461 : vector<8x32xf32>
    %463 = math.tanh %462 : vector<8x32xf32>
    %464 = arith.mulf %459, %463 : vector<8x32xf32>
    %465 = arith.truncf %420 : vector<8x32xf32> to vector<8x32xbf16>
    %cst_89 = arith.constant dense<0.000000e+00> : vector<8x128xf32>
    %466 = tpu.matmul %465, %1, %cst_89 {dimension_numbers = #tpu.dot_dimension_numbers<[1], [0], [0], [1], [0, 0, 1, 1], [], []>} : vector<8x32xbf16>, vector<32x128xbf16>, vector<8x128xf32> -> vector<8x128xf32>
    %467 = arith.truncf %442 : vector<8x32xf32> to vector<8x32xbf16>
    %cst_90 = arith.constant dense<0.000000e+00> : vector<8x128xf32>
    %468 = tpu.matmul %467, %2, %cst_90 {dimension_numbers = #tpu.dot_dimension_numbers<[1], [0], [0], [1], [0, 0, 1, 1], [], []>} : vector<8x32xbf16>, vector<32x128xbf16>, vector<8x128xf32> -> vector<8x128xf32>
    %469 = arith.addf %466, %468 : vector<8x128xf32>
    %470 = arith.addf %469, %7 : vector<8x128xf32>
    %cst_91 = arith.constant 0.000000e+00 : f32
    %471 = vector.broadcast %cst_91 : f32 to vector<8x128xf32>
    %472 = arith.subf %471, %470 : vector<8x128xf32>
    %473 = math.exp %472 : vector<8x128xf32>
    %cst_92 = arith.constant 1.000000e+00 : f32
    %474 = vector.broadcast %cst_92 : f32 to vector<8x128xf32>
    %475 = arith.addf %474, %473 : vector<8x128xf32>
    %476 = tpu.reciprocal %475 {approx = true} : vector<8x128xf32> -> vector<8x128xf32>
    %477 = math.tanh %470 : vector<8x128xf32>
    %478 = vector.extract_strided_slice %476 {offsets = [0, 0], sizes = [8, 32], strides = [1, 1]} : vector<8x128xf32> to vector<8x32xf32>
    %479 = vector.extract_strided_slice %476 {offsets = [0, 32], sizes = [8, 32], strides = [1, 1]} : vector<8x128xf32> to vector<8x32xf32>
    %480 = vector.extract_strided_slice %477 {offsets = [0, 64], sizes = [8, 32], strides = [1, 1]} : vector<8x128xf32> to vector<8x32xf32>
    %481 = vector.extract_strided_slice %476 {offsets = [0, 96], sizes = [8, 32], strides = [1, 1]} : vector<8x128xf32> to vector<8x32xf32>
    %482 = arith.mulf %479, %440 : vector<8x32xf32>
    %483 = arith.mulf %478, %480 : vector<8x32xf32>
    %484 = arith.addf %482, %483 : vector<8x32xf32>
    %485 = math.tanh %484 : vector<8x32xf32>
    %486 = arith.mulf %481, %485 : vector<8x32xf32>
    %487 = arith.truncf %442 : vector<8x32xf32> to vector<8x32xbf16>
    %cst_93 = arith.constant dense<0.000000e+00> : vector<8x128xf32>
    %488 = tpu.matmul %487, %3, %cst_93 {dimension_numbers = #tpu.dot_dimension_numbers<[1], [0], [0], [1], [0, 0, 1, 1], [], []>} : vector<8x32xbf16>, vector<32x128xbf16>, vector<8x128xf32> -> vector<8x128xf32>
    %489 = arith.truncf %464 : vector<8x32xf32> to vector<8x32xbf16>
    %cst_94 = arith.constant dense<0.000000e+00> : vector<8x128xf32>
    %490 = tpu.matmul %489, %4, %cst_94 {dimension_numbers = #tpu.dot_dimension_numbers<[1], [0], [0], [1], [0, 0, 1, 1], [], []>} : vector<8x32xbf16>, vector<32x128xbf16>, vector<8x128xf32> -> vector<8x128xf32>
    %491 = arith.addf %488, %490 : vector<8x128xf32>
    %492 = arith.addf %491, %10 : vector<8x128xf32>
    %cst_95 = arith.constant 0.000000e+00 : f32
    %493 = vector.broadcast %cst_95 : f32 to vector<8x128xf32>
    %494 = arith.subf %493, %492 : vector<8x128xf32>
    %495 = math.exp %494 : vector<8x128xf32>
    %cst_96 = arith.constant 1.000000e+00 : f32
    %496 = vector.broadcast %cst_96 : f32 to vector<8x128xf32>
    %497 = arith.addf %496, %495 : vector<8x128xf32>
    %498 = tpu.reciprocal %497 {approx = true} : vector<8x128xf32> -> vector<8x128xf32>
    %499 = math.tanh %492 : vector<8x128xf32>
    %500 = vector.extract_strided_slice %498 {offsets = [0, 0], sizes = [8, 32], strides = [1, 1]} : vector<8x128xf32> to vector<8x32xf32>
    %501 = vector.extract_strided_slice %498 {offsets = [0, 32], sizes = [8, 32], strides = [1, 1]} : vector<8x128xf32> to vector<8x32xf32>
    %502 = vector.extract_strided_slice %499 {offsets = [0, 64], sizes = [8, 32], strides = [1, 1]} : vector<8x128xf32> to vector<8x32xf32>
    %503 = vector.extract_strided_slice %498 {offsets = [0, 96], sizes = [8, 32], strides = [1, 1]} : vector<8x128xf32> to vector<8x32xf32>
    %504 = arith.mulf %501, %462 : vector<8x32xf32>
    %505 = arith.mulf %500, %502 : vector<8x32xf32>
    %506 = arith.addf %504, %505 : vector<8x32xf32>
    %507 = math.tanh %506 : vector<8x32xf32>
    %508 = arith.mulf %503, %507 : vector<8x32xf32>
    %509 = arith.truncf %486 : vector<8x32xf32> to vector<8x32xbf16>
    %cst_97 = arith.constant dense<0.000000e+00> : vector<8x128xf32>
    %510 = tpu.matmul %509, %3, %cst_97 {dimension_numbers = #tpu.dot_dimension_numbers<[1], [0], [0], [1], [0, 0, 1, 1], [], []>} : vector<8x32xbf16>, vector<32x128xbf16>, vector<8x128xf32> -> vector<8x128xf32>
    %511 = arith.truncf %508 : vector<8x32xf32> to vector<8x32xbf16>
    %cst_98 = arith.constant dense<0.000000e+00> : vector<8x128xf32>
    %512 = tpu.matmul %511, %4, %cst_98 {dimension_numbers = #tpu.dot_dimension_numbers<[1], [0], [0], [1], [0, 0, 1, 1], [], []>} : vector<8x32xbf16>, vector<32x128xbf16>, vector<8x128xf32> -> vector<8x128xf32>
    %513 = arith.addf %510, %512 : vector<8x128xf32>
    %514 = arith.addf %513, %10 : vector<8x128xf32>
    %cst_99 = arith.constant 0.000000e+00 : f32
    %515 = vector.broadcast %cst_99 : f32 to vector<8x128xf32>
    %516 = arith.subf %515, %514 : vector<8x128xf32>
    %517 = math.exp %516 : vector<8x128xf32>
    %cst_100 = arith.constant 1.000000e+00 : f32
    %518 = vector.broadcast %cst_100 : f32 to vector<8x128xf32>
    %519 = arith.addf %518, %517 : vector<8x128xf32>
    %520 = tpu.reciprocal %519 {approx = true} : vector<8x128xf32> -> vector<8x128xf32>
    %521 = math.tanh %514 : vector<8x128xf32>
    %522 = vector.extract_strided_slice %520 {offsets = [0, 0], sizes = [8, 32], strides = [1, 1]} : vector<8x128xf32> to vector<8x32xf32>
    %523 = vector.extract_strided_slice %520 {offsets = [0, 32], sizes = [8, 32], strides = [1, 1]} : vector<8x128xf32> to vector<8x32xf32>
    %524 = vector.extract_strided_slice %521 {offsets = [0, 64], sizes = [8, 32], strides = [1, 1]} : vector<8x128xf32> to vector<8x32xf32>
    %525 = vector.extract_strided_slice %520 {offsets = [0, 96], sizes = [8, 32], strides = [1, 1]} : vector<8x128xf32> to vector<8x32xf32>
    %526 = arith.mulf %523, %506 : vector<8x32xf32>
    %527 = arith.mulf %522, %524 : vector<8x32xf32>
    %528 = arith.addf %526, %527 : vector<8x32xf32>
    %529 = math.tanh %528 : vector<8x32xf32>
    %530 = arith.mulf %525, %529 : vector<8x32xf32>
    %c192 = arith.constant 192 : index
    %c0_101 = arith.constant 0 : index
    %531 = vector.load %arg1[%c192, %c0_101] : memref<352x128xbf16, #tpu.memory_space<vmem>>, vector<32x128xbf16>
    %532 = arith.truncf %530 : vector<8x32xf32> to vector<8x32xbf16>
    %cst_102 = arith.constant dense<0.000000e+00> : vector<8x128xf32>
    %533 = tpu.matmul %532, %531, %cst_102 {dimension_numbers = #tpu.dot_dimension_numbers<[1], [0], [0], [1], [0, 0, 1, 1], [], []>} : vector<8x32xbf16>, vector<32x128xbf16>, vector<8x128xf32> -> vector<8x128xf32>
    %c3 = arith.constant 3 : index
    %c0_103 = arith.constant 0 : index
    %534 = vector.load %arg2[%c3, %c0_103] : memref<8x128xf32, #tpu.memory_space<vmem>>, vector<1x128xf32>
    %535 = vector.broadcast %534 : vector<1x128xf32> to vector<8x128xf32>
    %536 = arith.addf %533, %535 : vector<8x128xf32>
    %cst_104 = arith.constant 0.000000e+00 : f32
    %537 = vector.broadcast %cst_104 : f32 to vector<8x128xf32>
    %538 = arith.maximumf %536, %537 : vector<8x128xf32>
    %c224 = arith.constant 224 : index
    %c0_105 = arith.constant 0 : index
    %539 = vector.load %arg1[%c224, %c0_105] : memref<352x128xbf16, #tpu.memory_space<vmem>>, vector<128x128xbf16>
    %540 = arith.truncf %538 : vector<8x128xf32> to vector<8x128xbf16>
    %cst_106 = arith.constant dense<0.000000e+00> : vector<8x128xf32>
    %541 = tpu.matmul %540, %539, %cst_106 {dimension_numbers = #tpu.dot_dimension_numbers<[1], [0], [0], [1], [0, 0, 1, 1], [], []>} : vector<8x128xbf16>, vector<128x128xbf16>, vector<8x128xf32> -> vector<8x128xf32>
    %c4 = arith.constant 4 : index
    %c0_107 = arith.constant 0 : index
    %542 = vector.load %arg2[%c4, %c0_107] : memref<8x128xf32, #tpu.memory_space<vmem>>, vector<1x128xf32>
    %543 = vector.broadcast %542 : vector<1x128xf32> to vector<8x128xf32>
    %544 = arith.addf %541, %543 : vector<8x128xf32>
    %c0_108 = arith.constant 0 : index
    %c0_109 = arith.constant 0 : index
    %545 = vector.load %arg3[%c0_108, %c0_109] : memref<8x128xf32, #tpu.memory_space<vmem>>, vector<8x128xf32>
    tpu.vector_store %arg3[%c0_108, %c0_109], %544 {strides = array<i32>} : memref<8x128xf32, #tpu.memory_space<vmem>>, vector<8x128xf32>,
    return
  }
}

</mosaic_0001>

<llo_original>
// kernel: tpu_custom_call.1
$region0: #{tpu_custom_call.1}
  #allocation0 [shape = 'u32[]', space=smem, size = 0x4, offset = 0x4, fixed_abs, tag = 'smem constant byte address 0x4 - core index']
  #allocation1 [shape = 'u32[144,128]{1,0:T(1,128)}', space=vmem, size = 0x12000, scoped, tag = 'internal scratch']
  %s0 = inlined_call_operand.vmem [shape: bf16[64,32], index: 0, kind: input, shape index: {}]
  %s1 = inlined_call_operand.hbm [shape: bf16[352,128], index: 1, kind: input, shape index: {}]
  %s2 = inlined_call_operand.vmem [shape: f32[8,128], index: 2, kind: input, shape index: {}]
  %s3 = inlined_call_operand.hbm [shape: f32[8,128], index: 3, kind: output, shape index: {}]
  %s4 = sld [smem:[#allocation0]]
  $region26: #{tpu_custom_call.1} parent=0
    _
  %s6 = ssub.s32 1, %s4
  %s7 = scalar_select 0, %s6, %s4
  $region1: #{tpu_custom_call.1} parent=0
    #allocation2 [shape = 'u8[90112]{0}', space=vmem, size = 0x16000, scoped, tag = 'input window, operand 1, single buffered']
    #allocation3 [shape = 's32[1]{0}', space=sflag, size = 0x4, scoped, tag = 'scoped memory for tpu_custom_call.1']
    #allocation4 [shape = 's32[1]{0}', space=sflag, size = 0x4, scoped, tag = 'scoped memory for tpu_custom_call.1']
    #allocation5 [shape = 'u8[4096]{0}', space=vmem, size = 0x1000, scoped, tag = 'output window, operand 0, single buffered']
    %8 = vsyncpa [#allocation3], 0
    %9 = vsyncpa [#allocation4], 0
    // Predicated region
    $region2: #{tpu_custom_call.1} parent=1 // pred_check
      _
    $region3: #{tpu_custom_call.1} parent=1 // pred_check_branch
      %11 = sbr.rel (0) target = $region5
    $region4: #{tpu_custom_call.1} parent=1 // pred_region
      _
    $region5: #{tpu_custom_call.1} parent=1 // pred_fallthru
      _
    // Predicated region
    $region6: #{tpu_custom_call.1} parent=1 // pred_check
      _
    $region7: #{tpu_custom_call.1} parent=1 // pred_check_branch
      %13 = sbr.rel (0) target = $region9
    $region8: #{tpu_custom_call.1} parent=1 // pred_region
      %s15 = ssub.s32 2816, 2816
      %16 = vsyncadd [#allocation3], %s15
      %s17 = sshll.u32 [#allocation2], 4
      %s18 = int_to_ptr.vmem [resolvable:$true] %s17
      %23 = dma.hbm_to_vmem [thread:$0]  %s1, 2816, %s18, [#allocation3], 64, 64, 4
    $region9: #{tpu_custom_call.1} parent=1 // pred_fallthru
      _
    // Predicated region
    $region10: #{tpu_custom_call.1} parent=1 // pred_check
      _
    $region11: #{tpu_custom_call.1} parent=1 // pred_check_branch
      %25 = sbr.rel (0) target = $region13
    $region12: #{tpu_custom_call.1} parent=1 // pred_region
      _
    $region13: #{tpu_custom_call.1} parent=1 // pred_fallthru
      _
    // Predicated region
    $region14: #{tpu_custom_call.1} parent=1 // pred_check
      _
    $region15: #{tpu_custom_call.1} parent=1 // pred_check_branch
      %27 = sbr.rel (0) target = $region17
    $region16: #{tpu_custom_call.1} parent=1 // pred_region
      %28 = dma.done [#allocation3], 2816
    $region17: #{tpu_custom_call.1} parent=1 // pred_fallthru
      _
    %v30 = vld [vmem:[#allocation2 + $0x10] sm:$0xf]
    %v31 = vld [vmem:[#allocation2 + $0x14] sm:$0xf]
    %v32 = vld [vmem:[#allocation2 + $0x18] sm:$0xf]
    %v33 = vld [vmem:[#allocation2 + $0x1c] sm:$0xf]
    %v34 = vld [vmem:[#allocation2 + $0x20] sm:$0xf]
    %v35 = vld [vmem:[#allocation2 + $0x24] sm:$0xf]
    %v36 = vld [vmem:[#allocation2 + $0x28] sm:$0xf]
    %v37 = vld [vmem:[#allocation2 + $0x2c] sm:$0xf]
    %v38 = vld [vmem:[#allocation2 + $0x30] sm:$0xf]
    %v39 = vld [vmem:[#allocation2 + $0x34] sm:$0xf]
    %v40 = vld [vmem:[#allocation2 + $0x38] sm:$0xf]
    %v41 = vld [vmem:[#allocation2 + $0x3c] sm:$0xf]
    %v42 = vld [vmem:[#allocation2 + $0x40] sm:$0xf]
    %v43 = vld [vmem:[#allocation2 + $0x44] sm:$0xf]
    %v44 = vld [vmem:[#allocation2 + $0x48] sm:$0xf]
    %v45 = vld [vmem:[#allocation2 + $0x4c] sm:$0xf]
    %v46 = vld [vmem:[#allocation2 + $0x50] sm:$0xf]
    %v47 = vld [vmem:[#allocation2 + $0x54] sm:$0xf]
    %v48 = vld [vmem:[#allocation2 + $0x58] sm:$0xf]
    %v49 = vld [vmem:[#allocation2 + $0x5c] sm:$0xf]
    %v50 = vld [vmem:[%s2 + $0x1] sm:$0x1]
    %v51 = vlaneseq
    %v52 = vshrl.u32 %v51, 7
    %v53 = vsub.s32 0, %v52
    %v54 = vrot.slane %v50, %v53
    %v55 = vld [vmem:[%s2 + $0x2] sm:$0x1]
    %v56 = vlaneseq
    %v57 = vshrl.u32 %v56, 7
    %v58 = vsub.s32 0, %v57
    %v59 = vrot.slane %v55, %v58
    %v60 = vld [vmem:[%s0] sm:$0xf]
    %v61 = vld [vmem:[%s0 + $0x4] sm:$0xf]
    %v62 = vld [vmem:[%s0 + $0x8] sm:$0xf]
    %v63 = vld [vmem:[%s0 + $0xc] sm:$0xf]
    %v64 = vld [vmem:[%s0 + $0x10] sm:$0xf]
    %v65 = vld [vmem:[%s0 + $0x14] sm:$0xf]
    %v66 = vld [vmem:[%s0 + $0x18] sm:$0xf]
    %v67 = vld [vmem:[%s0 + $0x1c] sm:$0xf]
    %v68 = vld [vmem:[#allocation2] sm:$0xf]
    %v69 = vld [vmem:[#allocation2 + $0x4] sm:$0xf]
    %v70 = vld [vmem:[#allocation2 + $0x8] sm:$0xf]
    %v71 = vld [vmem:[#allocation2 + $0xc] sm:$0xf]
    %v72 = vld [vmem:[%s2] sm:$0x1]
    %v73 = vlaneseq
    %v74 = vshrl.u32 %v73, 7
    %v75 = vsub.s32 0, %v74
    %v76 = vrot.slane %v72, %v75
    %v85 = vunpack.c.l.b16 %v60
    %v86 = vunpack.c.l.b16 %v61
    %v87 = vunpack.c.l.b16 %v62
    %v88 = vunpack.c.l.b16 %v63
    %v89 = vunpack.c.l.b16 %v64
    %v90 = vunpack.c.l.b16 %v65
    %v91 = vunpack.c.l.b16 %v66
    %v92 = vunpack.c.l.b16 %v67
    %v93 = vpack.c.b16 %v86, %v85
    %v94 = vpack.c.b16 %v88, %v87
    %v95 = vpack.c.b16 %v90, %v89
    %v96 = vpack.c.b16 %v92, %v91
    %v101 = vunpack.c.l.b16 %v68
    %v102 = vunpack.c.l.b16 %v69
    %v103 = vunpack.c.l.b16 %v70
    %v104 = vunpack.c.l.b16 %v71
    %v105 = vpack.c.b16 %v102, %v101
    %v106 = vpack.c.b16 %v104, %v103
    %vm109 = vcmask 261120
    %v111 = vsel %vm109, %v93, 0
    %v114 = vsel %vm109, %v94, 0
    %v117 = vsel %vm109, %v95, 0
    %v120 = vsel %vm109, %v96, 0
    %122 = vmatprep.subr.bf16.mxu0 0
    %123 = vmatpush1.bf16.msra.mxu0 %v105
    %124 = vmatprep.subr.bf16.mxu0 0
    %125 = vmatpush1.bf16.msra.mxu0 %v106
    %126 = vmatprep.subr.bf16.mxu0 0
    %127 = vmatpush1.bf16.msra.mxu0 0
    %128 = vmatprep.subr.bf16.mxu0 0
    %129 = vmatpush1.bf16.msra.mxu0 0
    %130 = vmatprep.subr.bf16.mxu0 0
    %131 = vmatpush1.bf16.msra.mxu0 0
    %132 = vmatprep.subr.bf16.mxu0 0
    %133 = vmatpush1.bf16.msra.mxu0 0
    %134 = vmatprep.subr.bf16.mxu0 0
    %135 = vmatpush1.bf16.msra.mxu0 0
    %136 = vmatprep.subr.bf16.mxu0 0
    %137 = vmatpush1.bf16.msra.mxu0 0
    %138 = vmatprep.subr.bf16.mxu0 0
    %139 = vmatpush1.bf16.msra.mxu0 0
    %140 = vmatprep.subr.bf16.mxu0 0
    %141 = vmatpush1.bf16.msra.mxu0 0
    %142 = vmatprep.subr.bf16.mxu0 0
    %143 = vmatpush1.bf16.msra.mxu0 0
    %144 = vmatprep.subr.bf16.mxu0 0
    %145 = vmatpush1.bf16.msra.mxu0 0
    %146 = vmatprep.subr.bf16.mxu0 0
    %147 = vmatpush1.bf16.msra.mxu0 0
    %148 = vmatprep.subr.bf16.mxu0 0
    %149 = vmatpush1.bf16.msra.mxu0 0
    %150 = vmatprep.subr.bf16.mxu0 0
    %151 = vmatpush1.bf16.msra.mxu0 0
    %152 = vmatprep.subr.bf16.mxu0 0
    %153 = vmatpush1.bf16.msra.mxu0 0
    %154 = vmatprep.mubr.bf16.mxu0 0
    %155 = vmatmul.mubr.bf16.gmra.mrb[0].mxu0 %v111
    %v156 = vpop.f32.mrb[0].mxu0
    %v157 = vadd.f32 %v76, %v156
    %v158 = vpop.f32.mrb[0].mxu0
    %v159 = vpop.f32.mrb[0].mxu0
    %v160 = vadd.f32 %v76, %v159
    %v161 = vpop.f32.mrb[0].mxu0
    %162 = vmatprep.mubr.bf16.mxu0 0
    %163 = vmatmul.mubr.bf16.gmra.mrb[0].mxu0 %v114
    %v164 = vpop.f32.mrb[0].mxu0
    %v165 = vadd.f32 %v76, %v164
    %v166 = vpop.f32.mrb[0].mxu0
    %v167 = vpop.f32.mrb[0].mxu0
    %v168 = vadd.f32 %v76, %v167
    %v169 = vpop.f32.mrb[0].mxu0
    %170 = vmatprep.mubr.bf16.mxu0 0
    %171 = vmatmul.mubr.bf16.gmra.mrb[0].mxu0 %v117
    %v172 = vpop.f32.mrb[0].mxu0
    %v173 = vadd.f32 %v76, %v172
    %v174 = vpop.f32.mrb[0].mxu0
    %v175 = vpop.f32.mrb[0].mxu0
    %v176 = vadd.f32 %v76, %v175
    %v177 = vpop.f32.mrb[0].mxu0
    %178 = vmatprep.mubr.bf16.mxu0 0
    %179 = vmatmul.mubr.bf16.gmra.mrb[0].mxu0 %v120
    %v180 = vpop.f32.mrb[0].mxu0
    %v181 = vadd.f32 %v76, %v180
    %v182 = vpop.f32.mrb[0].mxu0
    %v183 = vpop.f32.mrb[0].mxu0
    %v184 = vadd.f32 %v76, %v183
    %v185 = vpop.f32.mrb[0].mxu0
    %186 = vdwg.mxu0
    %v191 = vunpack.c.l.b16 %v30
    %v192 = vunpack.c.l.b16 %v31
    %v193 = vunpack.c.l.b16 %v32
    %v194 = vunpack.c.l.b16 %v33
    %v195 = vpack.c.b16 %v192, %v191
    %v196 = vpack.c.b16 %v194, %v193
    %v200 = vsel %vm109, 0, 0
    %202 = vmatprep.subr.bf16.mxu0 0
    %203 = vmatpush1.bf16.msra.mxu0 %v195
    %204 = vmatprep.subr.bf16.mxu0 0
    %205 = vmatpush1.bf16.msra.mxu0 %v196
    %206 = vmatprep.subr.bf16.mxu0 0
    %207 = vmatpush1.bf16.msra.mxu0 0
    %208 = vmatprep.subr.bf16.mxu0 0
    %209 = vmatpush1.bf16.msra.mxu0 0
    %210 = vmatprep.subr.bf16.mxu0 0
    %211 = vmatpush1.bf16.msra.mxu0 0
    %212 = vmatprep.subr.bf16.mxu0 0
    %213 = vmatpush1.bf16.msra.mxu0 0
    %214 = vmatprep.subr.bf16.mxu0 0
    %215 = vmatpush1.bf16.msra.mxu0 0
    %216 = vmatprep.subr.bf16.mxu0 0
    %217 = vmatpush1.bf16.msra.mxu0 0
    %218 = vmatprep.subr.bf16.mxu0 0
    %219 = vmatpush1.bf16.msra.mxu0 0
    %220 = vmatprep.subr.bf16.mxu0 0
    %221 = vmatpush1.bf16.msra.mxu0 0
    %222 = vmatprep.subr.bf16.mxu0 0
    %223 = vmatpush1.bf16.msra.mxu0 0
    %224 = vmatprep.subr.bf16.mxu0 0
    %225 = vmatpush1.bf16.msra.mxu0 0
    %226 = vmatprep.subr.bf16.mxu0 0
    %227 = vmatpush1.bf16.msra.mxu0 0
    %228 = vmatprep.subr.bf16.mxu0 0
    %229 = vmatpush1.bf16.msra.mxu0 0
    %230 = vmatprep.subr.bf16.mxu0 0
    %231 = vmatpush1.bf16.msra.mxu0 0
    %232 = vmatprep.subr.bf16.mxu0 0
    %233 = vmatpush1.bf16.msra.mxu0 0
    %234 = vmatprep.mubr.bf16.mxu0 0
    %235 = vmatmul.mubr.bf16.gmra.mrb[0].mxu0 %v200
    %v236 = vpop.f32.mrb[0].mxu0
    %v237 = vadd.f32 0.0, %v236
    %v238 = vpop.f32.mrb[0].mxu0
    %v239 = vpop.f32.mrb[0].mxu0
    %v240 = vpop.f32.mrb[0].mxu0
    %241 = vdwg.mxu0
    %v242 = vadd.f32 %v157, %v237
    %v243 = vsub.f32 0.0, %v242
    %v244 = vmul.f32 %v243, 1.442695
    %v245 = vpow.pop %v244
    %v246 = vadd.f32 %v245, 1.0
    %v247 = vrcp.pop %v246
    %v248 = vtanh.pop %v242
    %v249 = vmul.f32 %v247, 0.0
    %251 = vrot.lane.b32.xlu0 %v248, 64
    %v252 = vpop.permute.xlu0 %251
    %v254 = vmul.f32 %v247, %v252
    %256 = vrot.lane.b32.xlu0 %v254, 32
    %v257 = vpop.permute.xlu0 %256
    %v259 = vadd.f32 %v249, %v257
    %v260 = vtanh.pop %v259
    %262 = vrot.lane.b32.xlu0 %v260, 64
    %v263 = vpop.permute.xlu0 %262
    %v265 = vmul.f32 %v247, %v263
    %v266 = vpack.c.bf16 %v265, %v265
    %268 = vrot.lane.b32.xlu0 %v266, 32
    %v269 = vpop.permute.xlu0 %268
    %v271 = vsel %vm109, %v269, 0
    %273 = vmatprep.subr.bf16.mxu0 0
    %274 = vmatpush1.bf16.msra.mxu0 %v195
    %275 = vmatprep.subr.bf16.mxu0 0
    %276 = vmatpush1.bf16.msra.mxu0 %v196
    %277 = vmatprep.subr.bf16.mxu0 0
    %278 = vmatpush1.bf16.msra.mxu0 0
    %279 = vmatprep.subr.bf16.mxu0 0
    %280 = vmatpush1.bf16.msra.mxu0 0
    %281 = vmatprep.subr.bf16.mxu0 0
    %282 = vmatpush1.bf16.msra.mxu0 0
    %283 = vmatprep.subr.bf16.mxu0 0
    %284 = vmatpush1.bf16.msra.mxu0 0
    %285 = vmatprep.subr.bf16.mxu0 0
    %286 = vmatpush1.bf16.msra.mxu0 0
    %287 = vmatprep.subr.bf16.mxu0 0
    %288 = vmatpush1.bf16.msra.mxu0 0
    %289 = vmatprep.subr.bf16.mxu0 0
    %290 = vmatpush1.bf16.msra.mxu0 0
    %291 = vmatprep.subr.bf16.mxu0 0
    %292 = vmatpush1.bf16.msra.mxu0 0
    %293 = vmatprep.subr.bf16.mxu0 0
    %294 = vmatpush1.bf16.msra.mxu0 0
    %295 = vmatprep.subr.bf16.mxu0 0
    %296 = vmatpush1.bf16.msra.mxu0 0
    %297 = vmatprep.subr.bf16.mxu0 0
    %298 = vmatpush1.bf16.msra.mxu0 0
    %299 = vmatprep.subr.bf16.mxu0 0
    %300 = vmatpush1.bf16.msra.mxu0 0
    %301 = vmatprep.subr.bf16.mxu0 0
    %302 = vmatpush1.bf16.msra.mxu0 0
    %303 = vmatprep.subr.bf16.mxu0 0
    %304 = vmatpush1.bf16.msra.mxu0 0
    %305 = vmatprep.mubr.bf16.mxu0 0
    %306 = vmatmul.mubr.bf16.gmra.mrb[0].mxu0 %v271
    %v307 = vpop.f32.mrb[0].mxu0
    %v308 = vadd.f32 0.0, %v307
    %v309 = vpop.f32.mrb[0].mxu0
    %v310 = vpop.f32.mrb[0].mxu0
    %v311 = vpop.f32.mrb[0].mxu0
    %312 = vdwg.mxu0
    %v313 = vadd.f32 %v160, %v308
    %v314 = vsub.f32 0.0, %v313
    %v315 = vmul.f32 %v314, 1.442695
    %v316 = vpow.pop %v315
    %v317 = vadd.f32 %v316, 1.0
    %v318 = vrcp.pop %v317
    %v319 = vtanh.pop %v313
    %v320 = vmul.f32 %v318, %v259
    %322 = vrot.lane.b32.xlu0 %v319, 64
    %v323 = vpop.permute.xlu0 %322
    %v325 = vmul.f32 %v318, %v323
    %327 = vrot.lane.b32.xlu0 %v325, 32
    %v328 = vpop.permute.xlu0 %327
    %v330 = vadd.f32 %v320, %v328
    %v331 = vtanh.pop %v330
    %333 = vrot.lane.b32.xlu0 %v331, 64
    %v334 = vpop.permute.xlu0 %333
    %v336 = vmul.f32 %v318, %v334
    %v341 = vunpack.c.l.b16 %v38
    %v342 = vunpack.c.l.b16 %v39
    %v343 = vunpack.c.l.b16 %v40
    %v344 = vunpack.c.l.b16 %v41
    %v345 = vpack.c.b16 %v342, %v341
    %v346 = vpack.c.b16 %v344, %v343
    %349 = vmatprep.subr.bf16.mxu0 0
    %350 = vmatpush1.bf16.msra.mxu0 %v345
    %351 = vmatprep.subr.bf16.mxu0 0
    %352 = vmatpush1.bf16.msra.mxu0 %v346
    %353 = vmatprep.subr.bf16.mxu0 0
    %354 = vmatpush1.bf16.msra.mxu0 0
    %355 = vmatprep.subr.bf16.mxu0 0
    %356 = vmatpush1.bf16.msra.mxu0 0
    %357 = vmatprep.subr.bf16.mxu0 0
    %358 = vmatpush1.bf16.msra.mxu0 0
    %359 = vmatprep.subr.bf16.mxu0 0
    %360 = vmatpush1.bf16.msra.mxu0 0
    %361 = vmatprep.subr.bf16.mxu0 0
    %362 = vmatpush1.bf16.msra.mxu0 0
    %363 = vmatprep.subr.bf16.mxu0 0
    %364 = vmatpush1.bf16.msra.mxu0 0
    %365 = vmatprep.subr.bf16.mxu0 0
    %366 = vmatpush1.bf16.msra.mxu0 0
    %367 = vmatprep.subr.bf16.mxu0 0
    %368 = vmatpush1.bf16.msra.mxu0 0
    %369 = vmatprep.subr.bf16.mxu0 0
    %370 = vmatpush1.bf16.msra.mxu0 0
    %371 = vmatprep.subr.bf16.mxu0 0
    %372 = vmatpush1.bf16.msra.mxu0 0
    %373 = vmatprep.subr.bf16.mxu0 0
    %374 = vmatpush1.bf16.msra.mxu0 0
    %375 = vmatprep.subr.bf16.mxu0 0
    %376 = vmatpush1.bf16.msra.mxu0 0
    %377 = vmatprep.subr.bf16.mxu0 0
    %378 = vmatpush1.bf16.msra.mxu0 0
    %379 = vmatprep.subr.bf16.mxu0 0
    %380 = vmatpush1.bf16.msra.mxu0 0
    %381 = vmatprep.mubr.bf16.mxu0 0
    %382 = vmatmul.mubr.bf16.gmra.mrb[0].mxu0 %v200
    %v383 = vpop.f32.mrb[0].mxu0
    %v384 = vadd.f32 0.0, %v383
    %v385 = vpop.f32.mrb[0].mxu0
    %v386 = vpop.f32.mrb[0].mxu0
    %v387 = vpop.f32.mrb[0].mxu0
    %388 = vdwg.mxu0
    %v393 = vunpack.c.l.b16 %v34
    %v394 = vunpack.c.l.b16 %v35
    %v395 = vunpack.c.l.b16 %v36
    %v396 = vunpack.c.l.b16 %v37
    %v397 = vpack.c.b16 %v394, %v393
    %v398 = vpack.c.b16 %v396, %v395
    %401 = vmatprep.subr.bf16.mxu0 0
    %402 = vmatpush1.bf16.msra.mxu0 %v397
    %403 = vmatprep.subr.bf16.mxu0 0
    %404 = vmatpush1.bf16.msra.mxu0 %v398
    %405 = vmatprep.subr.bf16.mxu0 0
    %406 = vmatpush1.bf16.msra.mxu0 0
    %407 = vmatprep.subr.bf16.mxu0 0
    %408 = vmatpush1.bf16.msra.mxu0 0
    %409 = vmatprep.subr.bf16.mxu0 0
    %410 = vmatpush1.bf16.msra.mxu0 0
    %411 = vmatprep.subr.bf16.mxu0 0
    %412 = vmatpush1.bf16.msra.mxu0 0
    %413 = vmatprep.subr.bf16.mxu0 0
    %414 = vmatpush1.bf16.msra.mxu0 0
    %415 = vmatprep.subr.bf16.mxu0 0
    %416 = vmatpush1.bf16.msra.mxu0 0
    %417 = vmatprep.subr.bf16.mxu0 0
    %418 = vmatpush1.bf16.msra.mxu0 0
    %419 = vmatprep.subr.bf16.mxu0 0
    %420 = vmatpush1.bf16.msra.mxu0 0
    %421 = vmatprep.subr.bf16.mxu0 0
    %422 = vmatpush1.bf16.msra.mxu0 0
    %423 = vmatprep.subr.bf16.mxu0 0
    %424 = vmatpush1.bf16.msra.mxu0 0
    %425 = vmatprep.subr.bf16.mxu0 0
    %426 = vmatpush1.bf16.msra.mxu0 0
    %427 = vmatprep.subr.bf16.mxu0 0
    %428 = vmatpush1.bf16.msra.mxu0 0
    %429 = vmatprep.subr.bf16.mxu0 0
    %430 = vmatpush1.bf16.msra.mxu0 0
    %431 = vmatprep.subr.bf16.mxu0 0
    %432 = vmatpush1.bf16.msra.mxu0 0
    %433 = vmatprep.mubr.bf16.mxu0 0
    %434 = vmatmul.mubr.bf16.gmra.mrb[0].mxu0 %v271
    %v435 = vpop.f32.mrb[0].mxu0
    %v436 = vadd.f32 %v384, %v435
    %v437 = vpop.f32.mrb[0].mxu0
    %v438 = vpop.f32.mrb[0].mxu0
    %v439 = vpop.f32.mrb[0].mxu0
    %440 = vdwg.mxu0
    %v441 = vadd.f32 %v436, %v54
    %v442 = vsub.f32 0.0, %v441
    %v443 = vmul.f32 %v442, 1.442695
    %v444 = vpow.pop %v443
    %v445 = vadd.f32 %v444, 1.0
    %v446 = vrcp.pop %v445
    %v447 = vtanh.pop %v441
    %v448 = vmul.f32 %v446, 0.0
    %450 = vrot.lane.b32.xlu0 %v447, 64
    %v451 = vpop.permute.xlu0 %450
    %v453 = vmul.f32 %v446, %v451
    %455 = vrot.lane.b32.xlu0 %v453, 32
    %v456 = vpop.permute.xlu0 %455
    %v458 = vadd.f32 %v448, %v456
    %v459 = vtanh.pop %v458
    %461 = vrot.lane.b32.xlu0 %v459, 64
    %v462 = vpop.permute.xlu0 %461
    %v464 = vmul.f32 %v446, %v462
    %v465 = vpack.c.bf16 %v336, %v336
    %467 = vrot.lane.b32.xlu0 %v465, 32
    %v468 = vpop.permute.xlu0 %467
    %v470 = vsel %vm109, %v468, 0
    %472 = vmatprep.subr.bf16.mxu0 0
    %473 = vmatpush1.bf16.msra.mxu0 %v195
    %474 = vmatprep.subr.bf16.mxu0 0
    %475 = vmatpush1.bf16.msra.mxu0 %v196
    %476 = vmatprep.subr.bf16.mxu0 0
    %477 = vmatpush1.bf16.msra.mxu0 0
    %478 = vmatprep.subr.bf16.mxu0 0
    %479 = vmatpush1.bf16.msra.mxu0 0
    %480 = vmatprep.subr.bf16.mxu0 0
    %481 = vmatpush1.bf16.msra.mxu0 0
    %482 = vmatprep.subr.bf16.mxu0 0
    %483 = vmatpush1.bf16.msra.mxu0 0
    %484 = vmatprep.subr.bf16.mxu0 0
    %485 = vmatpush1.bf16.msra.mxu0 0
    %486 = vmatprep.subr.bf16.mxu0 0
    %487 = vmatpush1.bf16.msra.mxu0 0
    %488 = vmatprep.subr.bf16.mxu0 0
    %489 = vmatpush1.bf16.msra.mxu0 0
    %490 = vmatprep.subr.bf16.mxu0 0
    %491 = vmatpush1.bf16.msra.mxu0 0
    %492 = vmatprep.subr.bf16.mxu0 0
    %493 = vmatpush1.bf16.msra.mxu0 0
    %494 = vmatprep.subr.bf16.mxu0 0
    %495 = vmatpush1.bf16.msra.mxu0 0
    %496 = vmatprep.subr.bf16.mxu0 0
    %497 = vmatpush1.bf16.msra.mxu0 0
    %498 = vmatprep.subr.bf16.mxu0 0
    %499 = vmatpush1.bf16.msra.mxu0 0
    %500 = vmatprep.subr.bf16.mxu0 0
    %501 = vmatpush1.bf16.msra.mxu0 0
    %502 = vmatprep.subr.bf16.mxu0 0
    %503 = vmatpush1.bf16.msra.mxu0 0
    %504 = vmatprep.mubr.bf16.mxu0 0
    %505 = vmatmul.mubr.bf16.gmra.mrb[0].mxu0 %v470
    %v506 = vpop.f32.mrb[0].mxu0
    %v507 = vadd.f32 0.0, %v506
    %v508 = vpop.f32.mrb[0].mxu0
    %v509 = vpop.f32.mrb[0].mxu0
    %v510 = vpop.f32.mrb[0].mxu0
    %511 = vdwg.mxu0
    %v512 = vadd.f32 %v165, %v507
    %v513 = vsub.f32 0.0, %v512
    %v514 = vmul.f32 %v513, 1.442695
    %v515 = vpow.pop %v514
    %v516 = vadd.f32 %v515, 1.0
    %v517 = vrcp.pop %v516
    %v518 = vtanh.pop %v512
    %v519 = vmul.f32 %v517, %v330
    %521 = vrot.lane.b32.xlu0 %v518, 64
    %v522 = vpop.permute.xlu0 %521
    %v524 = vmul.f32 %v517, %v522
    %526 = vrot.lane.b32.xlu0 %v524, 32
    %v527 = vpop.permute.xlu0 %526
    %v529 = vadd.f32 %v519, %v527
    %v530 = vtanh.pop %v529
    %532 = vrot.lane.b32.xlu0 %v530, 64
    %v533 = vpop.permute.xlu0 %532
    %v535 = vmul.f32 %v517, %v533
    %v536 = vpack.c.bf16 %v464, %v464
    %538 = vrot.lane.b32.xlu0 %v536, 32
    %v539 = vpop.permute.xlu0 %538
    %v541 = vsel %vm109, %v539, 0
    %543 = vmatprep.subr.bf16.mxu0 0
    %544 = vmatpush1.bf16.msra.mxu0 %v345
    %545 = vmatprep.subr.bf16.mxu0 0
    %546 = vmatpush1.bf16.msra.mxu0 %v346
    %547 = vmatprep.subr.bf16.mxu0 0
    %548 = vmatpush1.bf16.msra.mxu0 0
    %549 = vmatprep.subr.bf16.mxu0 0
    %550 = vmatpush1.bf16.msra.mxu0 0
    %551 = vmatprep.subr.bf16.mxu0 0
    %552 = vmatpush1.bf16.msra.mxu0 0
    %553 = vmatprep.subr.bf16.mxu0 0
    %554 = vmatpush1.bf16.msra.mxu0 0
    %555 = vmatprep.subr.bf16.mxu0 0
    %556 = vmatpush1.bf16.msra.mxu0 0
    %557 = vmatprep.subr.bf16.mxu0 0
    %558 = vmatpush1.bf16.msra.mxu0 0
    %559 = vmatprep.subr.bf16.mxu0 0
    %560 = vmatpush1.bf16.msra.mxu0 0
    %561 = vmatprep.subr.bf16.mxu0 0
    %562 = vmatpush1.bf16.msra.mxu0 0
    %563 = vmatprep.subr.bf16.mxu0 0
    %564 = vmatpush1.bf16.msra.mxu0 0
    %565 = vmatprep.subr.bf16.mxu0 0
    %566 = vmatpush1.bf16.msra.mxu0 0
    %567 = vmatprep.subr.bf16.mxu0 0
    %568 = vmatpush1.bf16.msra.mxu0 0
    %569 = vmatprep.subr.bf16.mxu0 0
    %570 = vmatpush1.bf16.msra.mxu0 0
    %571 = vmatprep.subr.bf16.mxu0 0
    %572 = vmatpush1.bf16.msra.mxu0 0
    %573 = vmatprep.subr.bf16.mxu0 0
    %574 = vmatpush1.bf16.msra.mxu0 0
    %575 = vmatprep.mubr.bf16.mxu0 0
    %576 = vmatmul.mubr.bf16.gmra.mrb[0].mxu0 %v541
    %v577 = vpop.f32.mrb[0].mxu0
    %v578 = vadd.f32 0.0, %v577
    %v579 = vpop.f32.mrb[0].mxu0
    %v580 = vpop.f32.mrb[0].mxu0
    %v581 = vpop.f32.mrb[0].mxu0
    %582 = vdwg.mxu0
    %583 = vmatprep.subr.bf16.mxu0 0
    %584 = vmatpush1.bf16.msra.mxu0 %v397
    %585 = vmatprep.subr.bf16.mxu0 0
    %586 = vmatpush1.bf16.msra.mxu0 %v398
    %587 = vmatprep.subr.bf16.mxu0 0
    %588 = vmatpush1.bf16.msra.mxu0 0
    %589 = vmatprep.subr.bf16.mxu0 0
    %590 = vmatpush1.bf16.msra.mxu0 0
    %591 = vmatprep.subr.bf16.mxu0 0
    %592 = vmatpush1.bf16.msra.mxu0 0
    %593 = vmatprep.subr.bf16.mxu0 0
    %594 = vmatpush1.bf16.msra.mxu0 0
    %595 = vmatprep.subr.bf16.mxu0 0
    %596 = vmatpush1.bf16.msra.mxu0 0
    %597 = vmatprep.subr.bf16.mxu0 0
    %598 = vmatpush1.bf16.msra.mxu0 0
    %599 = vmatprep.subr.bf16.mxu0 0
    %600 = vmatpush1.bf16.msra.mxu0 0
    %601 = vmatprep.subr.bf16.mxu0 0
    %602 = vmatpush1.bf16.msra.mxu0 0
    %603 = vmatprep.subr.bf16.mxu0 0
    %604 = vmatpush1.bf16.msra.mxu0 0
    %605 = vmatprep.subr.bf16.mxu0 0
    %606 = vmatpush1.bf16.msra.mxu0 0
    %607 = vmatprep.subr.bf16.mxu0 0
    %608 = vmatpush1.bf16.msra.mxu0 0
    %609 = vmatprep.subr.bf16.mxu0 0
    %610 = vmatpush1.bf16.msra.mxu0 0
    %611 = vmatprep.subr.bf16.mxu0 0
    %612 = vmatpush1.bf16.msra.mxu0 0
    %613 = vmatprep.subr.bf16.mxu0 0
    %614 = vmatpush1.bf16.msra.mxu0 0
    %615 = vmatprep.mubr.bf16.mxu0 0
    %616 = vmatmul.mubr.bf16.gmra.mrb[0].mxu0 %v470
    %v617 = vpop.f32.mrb[0].mxu0
    %v618 = vadd.f32 %v578, %v617
    %v619 = vpop.f32.mrb[0].mxu0
    %v620 = vpop.f32.mrb[0].mxu0
    %v621 = vpop.f32.mrb[0].mxu0
    %622 = vdwg.mxu0
    %v623 = vadd.f32 %v618, %v54
    %v624 = vsub.f32 0.0, %v623
    %v625 = vmul.f32 %v624, 1.442695
    %v626 = vpow.pop %v625
    %v627 = vadd.f32 %v626, 1.0
    %v628 = vrcp.pop %v627
    %v629 = vtanh.pop %v623
    %v630 = vmul.f32 %v628, %v458
    %632 = vrot.lane.b32.xlu0 %v629, 64
    %v633 = vpop.permute.xlu0 %632
    %v635 = vmul.f32 %v628, %v633
    %637 = vrot.lane.b32.xlu0 %v635, 32
    %v638 = vpop.permute.xlu0 %637
    %v640 = vadd.f32 %v630, %v638
    %v641 = vtanh.pop %v640
    %643 = vrot.lane.b32.xlu0 %v641, 64
    %v644 = vpop.permute.xlu0 %643
    %v646 = vmul.f32 %v628, %v644
    %v651 = vunpack.c.l.b16 %v46
    %v652 = vunpack.c.l.b16 %v47
    %v653 = vunpack.c.l.b16 %v48
    %v654 = vunpack.c.l.b16 %v49
    %v655 = vpack.c.b16 %v652, %v651
    %v656 = vpack.c.b16 %v654, %v653
    %659 = vmatprep.subr.bf16.mxu0 0
    %660 = vmatpush1.bf16.msra.mxu0 %v655
    %661 = vmatprep.subr.bf16.mxu0 0
    %662 = vmatpush1.bf16.msra.mxu0 %v656
    %663 = vmatprep.subr.bf16.mxu0 0
    %664 = vmatpush1.bf16.msra.mxu0 0
    %665 = vmatprep.subr.bf16.mxu0 0
    %666 = vmatpush1.bf16.msra.mxu0 0
    %667 = vmatprep.subr.bf16.mxu0 0
    %668 = vmatpush1.bf16.msra.mxu0 0
    %669 = vmatprep.subr.bf16.mxu0 0
    %670 = vmatpush1.bf16.msra.mxu0 0
    %671 = vmatprep.subr.bf16.mxu0 0
    %672 = vmatpush1.bf16.msra.mxu0 0
    %673 = vmatprep.subr.bf16.mxu0 0
    %674 = vmatpush1.bf16.msra.mxu0 0
    %675 = vmatprep.subr.bf16.mxu0 0
    %676 = vmatpush1.bf16.msra.mxu0 0
    %677 = vmatprep.subr.bf16.mxu0 0
    %678 = vmatpush1.bf16.msra.mxu0 0
    %679 = vmatprep.subr.bf16.mxu0 0
    %680 = vmatpush1.bf16.msra.mxu0 0
    %681 = vmatprep.subr.bf16.mxu0 0
    %682 = vmatpush1.bf16.msra.mxu0 0
    %683 = vmatprep.subr.bf16.mxu0 0
    %684 = vmatpush1.bf16.msra.mxu0 0
    %685 = vmatprep.subr.bf16.mxu0 0
    %686 = vmatpush1.bf16.msra.mxu0 0
    %687 = vmatprep.subr.bf16.mxu0 0
    %688 = vmatpush1.bf16.msra.mxu0 0
    %689 = vmatprep.subr.bf16.mxu0 0
    %690 = vmatpush1.bf16.msra.mxu0 0
    %691 = vmatprep.mubr.bf16.mxu0 0
    %692 = vmatmul.mubr.bf16.gmra.mrb[0].mxu0 %v200
    %v693 = vpop.f32.mrb[0].mxu0
    %v694 = vadd.f32 0.0, %v693
    %v695 = vpop.f32.mrb[0].mxu0
    %v696 = vpop.f32.mrb[0].mxu0
    %v697 = vpop.f32.mrb[0].mxu0
    %698 = vdwg.mxu0
    %v703 = vunpack.c.l.b16 %v42
    %v704 = vunpack.c.l.b16 %v43
    %v705 = vunpack.c.l.b16 %v44
    %v706 = vunpack.c.l.b16 %v45
    %v707 = vpack.c.b16 %v704, %v703
    %v708 = vpack.c.b16 %v706, %v705
    %711 = vmatprep.subr.bf16.mxu0 0
    %712 = vmatpush1.bf16.msra.mxu0 %v707
    %713 = vmatprep.subr.bf16.mxu0 0
    %714 = vmatpush1.bf16.msra.mxu0 %v708
    %715 = vmatprep.subr.bf16.mxu0 0
    %716 = vmatpush1.bf16.msra.mxu0 0
    %717 = vmatprep.subr.bf16.mxu0 0
    %718 = vmatpush1.bf16.msra.mxu0 0
    %719 = vmatprep.subr.bf16.mxu0 0
    %720 = vmatpush1.bf16.msra.mxu0 0
    %721 = vmatprep.subr.bf16.mxu0 0
    %722 = vmatpush1.bf16.msra.mxu0 0
    %723 = vmatprep.subr.bf16.mxu0 0
    %724 = vmatpush1.bf16.msra.mxu0 0
    %725 = vmatprep.subr.bf16.mxu0 0
    %726 = vmatpush1.bf16.msra.mxu0 0
    %727 = vmatprep.subr.bf16.mxu0 0
    %728 = vmatpush1.bf16.msra.mxu0 0
    %729 = vmatprep.subr.bf16.mxu0 0
    %730 = vmatpush1.bf16.msra.mxu0 0
    %731 = vmatprep.subr.bf16.mxu0 0
    %732 = vmatpush1.bf16.msra.mxu0 0
    %733 = vmatprep.subr.bf16.mxu0 0
    %734 = vmatpush1.bf16.msra.mxu0 0
    %735 = vmatprep.subr.bf16.mxu0 0
    %736 = vmatpush1.bf16.msra.mxu0 0
    %737 = vmatprep.subr.bf16.mxu0 0
    %738 = vmatpush1.bf16.msra.mxu0 0
    %739 = vmatprep.subr.bf16.mxu0 0
    %740 = vmatpush1.bf16.msra.mxu0 0
    %741 = vmatprep.subr.bf16.mxu0 0
    %742 = vmatpush1.bf16.msra.mxu0 0
    %743 = vmatprep.mubr.bf16.mxu0 0
    %744 = vmatmul.mubr.bf16.gmra.mrb[0].mxu0 %v541
    %v745 = vpop.f32.mrb[0].mxu0
    %v746 = vadd.f32 %v694, %v745
    %v747 = vpop.f32.mrb[0].mxu0
    %v748 = vpop.f32.mrb[0].mxu0
    %v749 = vpop.f32.mrb[0].mxu0
    %750 = vdwg.mxu0
    %v751 = vadd.f32 %v746, %v59
    %v752 = vsub.f32 0.0, %v751
    %v753 = vmul.f32 %v752, 1.442695
    %v754 = vpow.pop %v753
    %v755 = vadd.f32 %v754, 1.0
    %v756 = vrcp.pop %v755
    %v757 = vtanh.pop %v751
    %v758 = vmul.f32 %v756, 0.0
    %760 = vrot.lane.b32.xlu0 %v757, 64
    %v761 = vpop.permute.xlu0 %760
    %v763 = vmul.f32 %v756, %v761
    %765 = vrot.lane.b32.xlu0 %v763, 32
    %v766 = vpop.permute.xlu0 %765
    %v768 = vadd.f32 %v758, %v766
    %v769 = vtanh.pop %v768
    %771 = vrot.lane.b32.xlu0 %v769, 64
    %v772 = vpop.permute.xlu0 %771
    %v774 = vmul.f32 %v756, %v772
    %v775 = vpack.c.bf16 %v535, %v535
    %777 = vrot.lane.b32.xlu0 %v775, 32
    %v778 = vpop.permute.xlu0 %777
    %v780 = vsel %vm109, %v778, 0
    %782 = vmatprep.subr.bf16.mxu0 0
    %783 = vmatpush1.bf16.msra.mxu0 %v195
    %784 = vmatprep.subr.bf16.mxu0 0
    %785 = vmatpush1.bf16.msra.mxu0 %v196
    %786 = vmatprep.subr.bf16.mxu0 0
    %787 = vmatpush1.bf16.msra.mxu0 0
    %788 = vmatprep.subr.bf16.mxu0 0
    %789 = vmatpush1.bf16.msra.mxu0 0
    %790 = vmatprep.subr.bf16.mxu0 0
    %791 = vmatpush1.bf16.msra.mxu0 0
    %792 = vmatprep.subr.bf16.mxu0 0
    %793 = vmatpush1.bf16.msra.mxu0 0
    %794 = vmatprep.subr.bf16.mxu0 0
    %795 = vmatpush1.bf16.msra.mxu0 0
    %796 = vmatprep.subr.bf16.mxu0 0
    %797 = vmatpush1.bf16.msra.mxu0 0
    %798 = vmatprep.subr.bf16.mxu0 0
    %799 = vmatpush1.bf16.msra.mxu0 0
    %800 = vmatprep.subr.bf16.mxu0 0
    %801 = vmatpush1.bf16.msra.mxu0 0
    %802 = vmatprep.subr.bf16.mxu0 0
    %803 = vmatpush1.bf16.msra.mxu0 0
    %804 = vmatprep.subr.bf16.mxu0 0
    %805 = vmatpush1.bf16.msra.mxu0 0
    %806 = vmatprep.subr.bf16.mxu0 0
    %807 = vmatpush1.bf16.msra.mxu0 0
    %808 = vmatprep.subr.bf16.mxu0 0
    %809 = vmatpush1.bf16.msra.mxu0 0
    %810 = vmatprep.subr.bf16.mxu0 0
    %811 = vmatpush1.bf16.msra.mxu0 0
    %812 = vmatprep.subr.bf16.mxu0 0
    %813 = vmatpush1.bf16.msra.mxu0 0
    %814 = vmatprep.mubr.bf16.mxu0 0
    %815 = vmatmul.mubr.bf16.gmra.mrb[0].mxu0 %v780
    %v816 = vpop.f32.mrb[0].mxu0
    %v817 = vadd.f32 0.0, %v816
    %v818 = vpop.f32.mrb[0].mxu0
    %v819 = vpop.f32.mrb[0].mxu0
    %v820 = vpop.f32.mrb[0].mxu0
    %821 = vdwg.mxu0
    %v822 = vadd.f32 %v168, %v817
    %v823 = vsub.f32 0.0, %v822
    %v824 = vmul.f32 %v823, 1.442695
    %v825 = vpow.pop %v824
    %v826 = vadd.f32 %v825, 1.0
    %v827 = vrcp.pop %v826
    %v828 = vtanh.pop %v822
    %v829 = vmul.f32 %v827, %v529
    %831 = vrot.lane.b32.xlu0 %v828, 64
    %v832 = vpop.permute.xlu0 %831
    %v834 = vmul.f32 %v827, %v832
    %836 = vrot.lane.b32.xlu0 %v834, 32
    %v837 = vpop.permute.xlu0 %836
    %v839 = vadd.f32 %v829, %v837
    %v840 = vtanh.pop %v839
    %842 = vrot.lane.b32.xlu0 %v840, 64
    %v843 = vpop.permute.xlu0 %842
    %v845 = vmul.f32 %v827, %v843
    %v846 = vpack.c.bf16 %v646, %v646
    %848 = vrot.lane.b32.xlu0 %v846, 32
    %v849 = vpop.permute.xlu0 %848
    %v851 = vsel %vm109, %v849, 0
    %853 = vmatprep.subr.bf16.mxu0 0
    %854 = vmatpush1.bf16.msra.mxu0 %v345
    %855 = vmatprep.subr.bf16.mxu0 0
    %856 = vmatpush1.bf16.msra.mxu0 %v346
    %857 = vmatprep.subr.bf16.mxu0 0
    %858 = vmatpush1.bf16.msra.mxu0 0
    %859 = vmatprep.subr.bf16.mxu0 0
    %860 = vmatpush1.bf16.msra.mxu0 0
    %861 = vmatprep.subr.bf16.mxu0 0
    %862 = vmatpush1.bf16.msra.mxu0 0
    %863 = vmatprep.subr.bf16.mxu0 0
    %864 = vmatpush1.bf16.msra.mxu0 0
    %865 = vmatprep.subr.bf16.mxu0 0
    %866 = vmatpush1.bf16.msra.mxu0 0
    %867 = vmatprep.subr.bf16.mxu0 0
    %868 = vmatpush1.bf16.msra.mxu0 0
    %869 = vmatprep.subr.bf16.mxu0 0
    %870 = vmatpush1.bf16.msra.mxu0 0
    %871 = vmatprep.subr.bf16.mxu0 0
    %872 = vmatpush1.bf16.msra.mxu0 0
    %873 = vmatprep.subr.bf16.mxu0 0
    %874 = vmatpush1.bf16.msra.mxu0 0
    %875 = vmatprep.subr.bf16.mxu0 0
    %876 = vmatpush1.bf16.msra.mxu0 0
    %877 = vmatprep.subr.bf16.mxu0 0
    %878 = vmatpush1.bf16.msra.mxu0 0
    %879 = vmatprep.subr.bf16.mxu0 0
    %880 = vmatpush1.bf16.msra.mxu0 0
    %881 = vmatprep.subr.bf16.mxu0 0
    %882 = vmatpush1.bf16.msra.mxu0 0
    %883 = vmatprep.subr.bf16.mxu0 0
    %884 = vmatpush1.bf16.msra.mxu0 0
    %885 = vmatprep.mubr.bf16.mxu0 0
    %886 = vmatmul.mubr.bf16.gmra.mrb[0].mxu0 %v851
    %v887 = vpop.f32.mrb[0].mxu0
    %v888 = vadd.f32 0.0, %v887
    %v889 = vpop.f32.mrb[0].mxu0
    %v890 = vpop.f32.mrb[0].mxu0
    %v891 = vpop.f32.mrb[0].mxu0
    %892 = vdwg.mxu0
    %893 = vmatprep.subr.bf16.mxu0 0
    %894 = vmatpush1.bf16.msra.mxu0 %v397
    %895 = vmatprep.subr.bf16.mxu0 0
    %896 = vmatpush1.bf16.msra.mxu0 %v398
    %897 = vmatprep.subr.bf16.mxu0 0
    %898 = vmatpush1.bf16.msra.mxu0 0
    %899 = vmatprep.subr.bf16.mxu0 0
    %900 = vmatpush1.bf16.msra.mxu0 0
    %901 = vmatprep.subr.bf16.mxu0 0
    %902 = vmatpush1.bf16.msra.mxu0 0
    %903 = vmatprep.subr.bf16.mxu0 0
    %904 = vmatpush1.bf16.msra.mxu0 0
    %905 = vmatprep.subr.bf16.mxu0 0
    %906 = vmatpush1.bf16.msra.mxu0 0
    %907 = vmatprep.subr.bf16.mxu0 0
    %908 = vmatpush1.bf16.msra.mxu0 0
    %909 = vmatprep.subr.bf16.mxu0 0
    %910 = vmatpush1.bf16.msra.mxu0 0
    %911 = vmatprep.subr.bf16.mxu0 0
    %912 = vmatpush1.bf16.msra.mxu0 0
    %913 = vmatprep.subr.bf16.mxu0 0
    %914 = vmatpush1.bf16.msra.mxu0 0
    %915 = vmatprep.subr.bf16.mxu0 0
    %916 = vmatpush1.bf16.msra.mxu0 0
    %917 = vmatprep.subr.bf16.mxu0 0
    %918 = vmatpush1.bf16.msra.mxu0 0
    %919 = vmatprep.subr.bf16.mxu0 0
    %920 = vmatpush1.bf16.msra.mxu0 0
    %921 = vmatprep.subr.bf16.mxu0 0
    %922 = vmatpush1.bf16.msra.mxu0 0
    %923 = vmatprep.subr.bf16.mxu0 0
    %924 = vmatpush1.bf16.msra.mxu0 0
    %925 = vmatprep.mubr.bf16.mxu0 0
    %926 = vmatmul.mubr.bf16.gmra.mrb[0].mxu0 %v780
    %v927 = vpop.f32.mrb[0].mxu0
    %v928 = vadd.f32 %v888, %v927
    %v929 = vpop.f32.mrb[0].mxu0
    %v930 = vpop.f32.mrb[0].mxu0
    %v931 = vpop.f32.mrb[0].mxu0
    %932 = vdwg.mxu0
    %v933 = vadd.f32 %v928, %v54
    %v934 = vsub.f32 0.0, %v933
    %v935 = vmul.f32 %v934, 1.442695
    %v936 = vpow.pop %v935
    %v937 = vadd.f32 %v936, 1.0
    %v938 = vrcp.pop %v937
    %v939 = vtanh.pop %v933
    %v940 = vmul.f32 %v938, %v640
    %942 = vrot.lane.b32.xlu0 %v939, 64
    %v943 = vpop.permute.xlu0 %942
    %v945 = vmul.f32 %v938, %v943
    %947 = vrot.lane.b32.xlu0 %v945, 32
    %v948 = vpop.permute.xlu0 %947
    %v950 = vadd.f32 %v940, %v948
    %v951 = vtanh.pop %v950
    %953 = vrot.lane.b32.xlu0 %v951, 64
    %v954 = vpop.permute.xlu0 %953
    %v956 = vmul.f32 %v938, %v954
    %v957 = vpack.c.bf16 %v774, %v774
    %959 = vrot.lane.b32.xlu0 %v957, 32
    %v960 = vpop.permute.xlu0 %959
    %v962 = vsel %vm109, %v960, 0
    %964 = vmatprep.subr.bf16.mxu0 0
    %965 = vmatpush1.bf16.msra.mxu0 %v655
    %966 = vmatprep.subr.bf16.mxu0 0
    %967 = vmatpush1.bf16.msra.mxu0 %v656
    %968 = vmatprep.subr.bf16.mxu0 0
    %969 = vmatpush1.bf16.msra.mxu0 0
    %970 = vmatprep.subr.bf16.mxu0 0
    %971 = vmatpush1.bf16.msra.mxu0 0
    %972 = vmatprep.subr.bf16.mxu0 0
    %973 = vmatpush1.bf16.msra.mxu0 0
    %974 = vmatprep.subr.bf16.mxu0 0
    %975 = vmatpush1.bf16.msra.mxu0 0
    %976 = vmatprep.subr.bf16.mxu0 0
    %977 = vmatpush1.bf16.msra.mxu0 0
    %978 = vmatprep.subr.bf16.mxu0 0
    %979 = vmatpush1.bf16.msra.mxu0 0
    %980 = vmatprep.subr.bf16.mxu0 0
    %981 = vmatpush1.bf16.msra.mxu0 0
    %982 = vmatprep.subr.bf16.mxu0 0
    %983 = vmatpush1.bf16.msra.mxu0 0
    %984 = vmatprep.subr.bf16.mxu0 0
    %985 = vmatpush1.bf16.msra.mxu0 0
    %986 = vmatprep.subr.bf16.mxu0 0
    %987 = vmatpush1.bf16.msra.mxu0 0
    %988 = vmatprep.subr.bf16.mxu0 0
    %989 = vmatpush1.bf16.msra.mxu0 0
    %990 = vmatprep.subr.bf16.mxu0 0
    %991 = vmatpush1.bf16.msra.mxu0 0
    %992 = vmatprep.subr.bf16.mxu0 0
    %993 = vmatpush1.bf16.msra.mxu0 0
    %994 = vmatprep.subr.bf16.mxu0 0
    %995 = vmatpush1.bf16.msra.mxu0 0
    %996 = vmatprep.mubr.bf16.mxu0 0
    %997 = vmatmul.mubr.bf16.gmra.mrb[0].mxu0 %v962
    %v998 = vpop.f32.mrb[0].mxu0
    %v999 = vadd.f32 0.0, %v998
    %v1000 = vpop.f32.mrb[0].mxu0
    %v1001 = vpop.f32.mrb[0].mxu0
    %v1002 = vpop.f32.mrb[0].mxu0
    %1003 = vdwg.mxu0
    %1004 = vmatprep.subr.bf16.mxu0 0
    %1005 = vmatpush1.bf16.msra.mxu0 %v707
    %1006 = vmatprep.subr.bf16.mxu0 0
    %1007 = vmatpush1.bf16.msra.mxu0 %v708
    %1008 = vmatprep.subr.bf16.mxu0 0
    %1009 = vmatpush1.bf16.msra.mxu0 0
    %1010 = vmatprep.subr.bf16.mxu0 0
    %1011 = vmatpush1.bf16.msra.mxu0 0
    %1012 = vmatprep.subr.bf16.mxu0 0
    %1013 = vmatpush1.bf16.msra.mxu0 0
    %1014 = vmatprep.subr.bf16.mxu0 0
    %1015 = vmatpush1.bf16.msra.mxu0 0
    %1016 = vmatprep.subr.bf16.mxu0 0
    %1017 = vmatpush1.bf16.msra.mxu0 0
    %1018 = vmatprep.subr.bf16.mxu0 0
    %1019 = vmatpush1.bf16.msra.mxu0 0
    %1020 = vmatprep.subr.bf16.mxu0 0
    %1021 = vmatpush1.bf16.msra.mxu0 0
    %1022 = vmatprep.subr.bf16.mxu0 0
    %1023 = vmatpush1.bf16.msra.mxu0 0
    %1024 = vmatprep.subr.bf16.mxu0 0
    %1025 = vmatpush1.bf16.msra.mxu0 0
    %1026 = vmatprep.subr.bf16.mxu0 0
    %1027 = vmatpush1.bf16.msra.mxu0 0
    %1028 = vmatprep.subr.bf16.mxu0 0
    %1029 = vmatpush1.bf16.msra.mxu0 0
    %1030 = vmatprep.subr.bf16.mxu0 0
    %1031 = vmatpush1.bf16.msra.mxu0 0
    %1032 = vmatprep.subr.bf16.mxu0 0
    %1033 = vmatpush1.bf16.msra.mxu0 0
    %1034 = vmatprep.subr.bf16.mxu0 0
    %1035 = vmatpush1.bf16.msra.mxu0 0
    %1036 = vmatprep.mubr.bf16.mxu0 0
    %1037 = vmatmul.mubr.bf16.gmra.mrb[0].mxu0 %v851
    %v1038 = vpop.f32.mrb[0].mxu0
    %v1039 = vadd.f32 %v999, %v1038
    %v1040 = vpop.f32.mrb[0].mxu0
    %v1041 = vpop.f32.mrb[0].mxu0
    %v1042 = vpop.f32.mrb[0].mxu0
    %1043 = vdwg.mxu0
    %v1044 = vadd.f32 %v1039, %v59
    %v1045 = vsub.f32 0.0, %v1044
    %v1046 = vmul.f32 %v1045, 1.442695
    %v1047 = vpow.pop %v1046
    %v1048 = vadd.f32 %v1047, 1.0
    %v1049 = vrcp.pop %v1048
    %v1050 = vtanh.pop %v1044
    %v1051 = vmul.f32 %v1049, %v768
    %1053 = vrot.lane.b32.xlu0 %v1050, 64
    %v1054 = vpop.permute.xlu0 %1053
    %v1056 = vmul.f32 %v1049, %v1054
    %1058 = vrot.lane.b32.xlu0 %v1056, 32
    %v1059 = vpop.permute.xlu0 %1058
    %v1061 = vadd.f32 %v1051, %v1059
    %v1062 = vtanh.pop %v1061
    %1064 = vrot.lane.b32.xlu0 %v1062, 64
    %v1065 = vpop.permute.xlu0 %1064
    %v1067 = vmul.f32 %v1049, %v1065
    %v1068 = vpack.c.bf16 %v845, %v845
    %1070 = vrot.lane.b32.xlu0 %v1068, 32
    %v1071 = vpop.permute.xlu0 %1070
    %v1073 = vsel %vm109, %v1071, 0
    %1075 = vmatprep.subr.bf16.mxu0 0
    %1076 = vmatpush1.bf16.msra.mxu0 %v195
    %1077 = vmatprep.subr.bf16.mxu0 0
    %1078 = vmatpush1.bf16.msra.mxu0 %v196
    %1079 = vmatprep.subr.bf16.mxu0 0
    %1080 = vmatpush1.bf16.msra.mxu0 0
    %1081 = vmatprep.subr.bf16.mxu0 0
    %1082 = vmatpush1.bf16.msra.mxu0 0
    %1083 = vmatprep.subr.bf16.mxu0 0
    %1084 = vmatpush1.bf16.msra.mxu0 0
    %1085 = vmatprep.subr.bf16.mxu0 0
    %1086 = vmatpush1.bf16.msra.mxu0 0
    %1087 = vmatprep.subr.bf16.mxu0 0
    %1088 = vmatpush1.bf16.msra.mxu0 0
    %1089 = vmatprep.subr.bf16.mxu0 0
    %1090 = vmatpush1.bf16.msra.mxu0 0
    %1091 = vmatprep.subr.bf16.mxu0 0
    %1092 = vmatpush1.bf16.msra.mxu0 0
    %1093 = vmatprep.subr.bf16.mxu0 0
    %1094 = vmatpush1.bf16.msra.mxu0 0
    %1095 = vmatprep.subr.bf16.mxu0 0
    %1096 = vmatpush1.bf16.msra.mxu0 0
    %1097 = vmatprep.subr.bf16.mxu0 0
    %1098 = vmatpush1.bf16.msra.mxu0 0
    %1099 = vmatprep.subr.bf16.mxu0 0
    %1100 = vmatpush1.bf16.msra.mxu0 0
    %1101 = vmatprep.subr.bf16.mxu0 0
    %1102 = vmatpush1.bf16.msra.mxu0 0
    %1103 = vmatprep.subr.bf16.mxu0 0
    %1104 = vmatpush1.bf16.msra.mxu0 0
    %1105 = vmatprep.subr.bf16.mxu0 0
    %1106 = vmatpush1.bf16.msra.mxu0 0
    %1107 = vmatprep.mubr.bf16.mxu0 0
    %1108 = vmatmul.mubr.bf16.gmra.mrb[0].mxu0 %v1073
    %v1109 = vpop.f32.mrb[0].mxu0
    %v1110 = vadd.f32 0.0, %v1109
    %v1111 = vpop.f32.mrb[0].mxu0
    %v1112 = vpop.f32.mrb[0].mxu0
    %v1113 = vpop.f32.mrb[0].mxu0
    %1114 = vdwg.mxu0
    %v1115 = vadd.f32 %v173, %v1110
    %v1116 = vsub.f32 0.0, %v1115
    %v1117 = vmul.f32 %v1116, 1.442695
    %v1118 = vpow.pop %v1117
    %v1119 = vadd.f32 %v1118, 1.0
    %v1120 = vrcp.pop %v1119
    %v1121 = vtanh.pop %v1115
    %v1122 = vmul.f32 %v1120, %v839
    %1124 = vrot.lane.b32.xlu0 %v1121, 64
    %v1125 = vpop.permute.xlu0 %1124
    %v1127 = vmul.f32 %v1120, %v1125
    %1129 = vrot.lane.b32.xlu0 %v1127, 32
    %v1130 = vpop.permute.xlu0 %1129
    %v1132 = vadd.f32 %v1122, %v1130
    %v1133 = vtanh.pop %v1132
    %1135 = vrot.lane.b32.xlu0 %v1133, 64
    %v1136 = vpop.permute.xlu0 %1135
    %v1138 = vmul.f32 %v1120, %v1136
    %v1139 = vpack.c.bf16 %v956, %v956
    %1141 = vrot.lane.b32.xlu0 %v1139, 32
    %v1142 = vpop.permute.xlu0 %1141
    %v1144 = vsel %vm109, %v1142, 0
    %1146 = vmatprep.subr.bf16.mxu0 0
    %1147 = vmatpush1.bf16.msra.mxu0 %v345
    %1148 = vmatprep.subr.bf16.mxu0 0
    %1149 = vmatpush1.bf16.msra.mxu0 %v346
    %1150 = vmatprep.subr.bf16.mxu0 0
    %1151 = vmatpush1.bf16.msra.mxu0 0
    %1152 = vmatprep.subr.bf16.mxu0 0
    %1153 = vmatpush1.bf16.msra.mxu0 0
    %1154 = vmatprep.subr.bf16.mxu0 0
    %1155 = vmatpush1.bf16.msra.mxu0 0
    %1156 = vmatprep.subr.bf16.mxu0 0
    %1157 = vmatpush1.bf16.msra.mxu0 0
    %1158 = vmatprep.subr.bf16.mxu0 0
    %1159 = vmatpush1.bf16.msra.mxu0 0
    %1160 = vmatprep.subr.bf16.mxu0 0
    %1161 = vmatpush1.bf16.msra.mxu0 0
    %1162 = vmatprep.subr.bf16.mxu0 0
    %1163 = vmatpush1.bf16.msra.mxu0 0
    %1164 = vmatprep.subr.bf16.mxu0 0
    %1165 = vmatpush1.bf16.msra.mxu0 0
    %1166 = vmatprep.subr.bf16.mxu0 0
    %1167 = vmatpush1.bf16.msra.mxu0 0
    %1168 = vmatprep.subr.bf16.mxu0 0
    %1169 = vmatpush1.bf16.msra.mxu0 0
    %1170 = vmatprep.subr.bf16.mxu0 0
    %1171 = vmatpush1.bf16.msra.mxu0 0
    %1172 = vmatprep.subr.bf16.mxu0 0
    %1173 = vmatpush1.bf16.msra.mxu0 0
    %1174 = vmatprep.subr.bf16.mxu0 0
    %1175 = vmatpush1.bf16.msra.mxu0 0
    %1176 = vmatprep.subr.bf16.mxu0 0
    %1177 = vmatpush1.bf16.msra.mxu0 0
    %1178 = vmatprep.mubr.bf16.mxu0 0
    %1179 = vmatmul.mubr.bf16.gmra.mrb[0].mxu0 %v1144
    %v1180 = vpop.f32.mrb[0].mxu0
    %v1181 = vadd.f32 0.0, %v1180
    %v1182 = vpop.f32.mrb[0].mxu0
    %v1183 = vpop.f32.mrb[0].mxu0
    %v1184 = vpop.f32.mrb[0].mxu0
    %1185 = vdwg.mxu0
    %1186 = vmatprep.subr.bf16.mxu0 0
    %1187 = vmatpush1.bf16.msra.mxu0 %v397
    %1188 = vmatprep.subr.bf16.mxu0 0
    %1189 = vmatpush1.bf16.msra.mxu0 %v398
    %1190 = vmatprep.subr.bf16.mxu0 0
    %1191 = vmatpush1.bf16.msra.mxu0 0
    %1192 = vmatprep.subr.bf16.mxu0 0
    %1193 = vmatpush1.bf16.msra.mxu0 0
    %1194 = vmatprep.subr.bf16.mxu0 0
    %1195 = vmatpush1.bf16.msra.mxu0 0
    %1196 = vmatprep.subr.bf16.mxu0 0
    %1197 = vmatpush1.bf16.msra.mxu0 0
    %1198 = vmatprep.subr.bf16.mxu0 0
    %1199 = vmatpush1.bf16.msra.mxu0 0
    %1200 = vmatprep.subr.bf16.mxu0 0
    %1201 = vmatpush1.bf16.msra.mxu0 0
    %1202 = vmatprep.subr.bf16.mxu0 0
    %1203 = vmatpush1.bf16.msra.mxu0 0
    %1204 = vmatprep.subr.bf16.mxu0 0
    %1205 = vmatpush1.bf16.msra.mxu0 0
    %1206 = vmatprep.subr.bf16.mxu0 0
    %1207 = vmatpush1.bf16.msra.mxu0 0
    %1208 = vmatprep.subr.bf16.mxu0 0
    %1209 = vmatpush1.bf16.msra.mxu0 0
    %1210 = vmatprep.subr.bf16.mxu0 0
    %1211 = vmatpush1.bf16.msra.mxu0 0
    %1212 = vmatprep.subr.bf16.mxu0 0
    %1213 = vmatpush1.bf16.msra.mxu0 0
    %1214 = vmatprep.subr.bf16.mxu0 0
    %1215 = vmatpush1.bf16.msra.mxu0 0
    %1216 = vmatprep.subr.bf16.mxu0 0
    %1217 = vmatpush1.bf16.msra.mxu0 0
    %1218 = vmatprep.mubr.bf16.mxu0 0
    %1219 = vmatmul.mubr.bf16.gmra.mrb[0].mxu0 %v1073
    %v1220 = vpop.f32.mrb[0].mxu0
    %v1221 = vadd.f32 %v1181, %v1220
    %v1222 = vpop.f32.mrb[0].mxu0
    %v1223 = vpop.f32.mrb[0].mxu0
    %v1224 = vpop.f32.mrb[0].mxu0
    %1225 = vdwg.mxu0
    %v1226 = vadd.f32 %v1221, %v54
    %v1227 = vsub.f32 0.0, %v1226
    %v1228 = vmul.f32 %v1227, 1.442695
    %v1229 = vpow.pop %v1228
    %v1230 = vadd.f32 %v1229, 1.0
    %v1231 = vrcp.pop %v1230
    %v1232 = vtanh.pop %v1226
    %v1233 = vmul.f32 %v1231, %v950
    %1235 = vrot.lane.b32.xlu0 %v1232, 64
    %v1236 = vpop.permute.xlu0 %1235
    %v1238 = vmul.f32 %v1231, %v1236
    %1240 = vrot.lane.b32.xlu0 %v1238, 32
    %v1241 = vpop.permute.xlu0 %1240
    %v1243 = vadd.f32 %v1233, %v1241
    %v1244 = vtanh.pop %v1243
    %1246 = vrot.lane.b32.xlu0 %v1244, 64
    %v1247 = vpop.permute.xlu0 %1246
    %v1249 = vmul.f32 %v1231, %v1247
    %v1250 = vpack.c.bf16 %v1067, %v1067
    %1252 = vrot.lane.b32.xlu0 %v1250, 32
    %v1253 = vpop.permute.xlu0 %1252
    %v1255 = vsel %vm109, %v1253, 0
    %1257 = vmatprep.subr.bf16.mxu0 0
    %1258 = vmatpush1.bf16.msra.mxu0 %v655
    %1259 = vmatprep.subr.bf16.mxu0 0
    %1260 = vmatpush1.bf16.msra.mxu0 %v656
    %1261 = vmatprep.subr.bf16.mxu0 0
    %1262 = vmatpush1.bf16.msra.mxu0 0
    %1263 = vmatprep.subr.bf16.mxu0 0
    %1264 = vmatpush1.bf16.msra.mxu0 0
    %1265 = vmatprep.subr.bf16.mxu0 0
    %1266 = vmatpush1.bf16.msra.mxu0 0
    %1267 = vmatprep.subr.bf16.mxu0 0
    %1268 = vmatpush1.bf16.msra.mxu0 0
    %1269 = vmatprep.subr.bf16.mxu0 0
    %1270 = vmatpush1.bf16.msra.mxu0 0
    %1271 = vmatprep.subr.bf16.mxu0 0
    %1272 = vmatpush1.bf16.msra.mxu0 0
    %1273 = vmatprep.subr.bf16.mxu0 0
    %1274 = vmatpush1.bf16.msra.mxu0 0
    %1275 = vmatprep.subr.bf16.mxu0 0
    %1276 = vmatpush1.bf16.msra.mxu0 0
    %1277 = vmatprep.subr.bf16.mxu0 0
    %1278 = vmatpush1.bf16.msra.mxu0 0
    %1279 = vmatprep.subr.bf16.mxu0 0
    %1280 = vmatpush1.bf16.msra.mxu0 0
    %1281 = vmatprep.subr.bf16.mxu0 0
    %1282 = vmatpush1.bf16.msra.mxu0 0
    %1283 = vmatprep.subr.bf16.mxu0 0
    %1284 = vmatpush1.bf16.msra.mxu0 0
    %1285 = vmatprep.subr.bf16.mxu0 0
    %1286 = vmatpush1.bf16.msra.mxu0 0
    %1287 = vmatprep.subr.bf16.mxu0 0
    %1288 = vmatpush1.bf16.msra.mxu0 0
    %1289 = vmatprep.mubr.bf16.mxu0 0
    %1290 = vmatmul.mubr.bf16.gmra.mrb[0].mxu0 %v1255
    %v1291 = vpop.f32.mrb[0].mxu0
    %v1292 = vadd.f32 0.0, %v1291
    %v1293 = vpop.f32.mrb[0].mxu0
    %v1294 = vpop.f32.mrb[0].mxu0
    %v1295 = vpop.f32.mrb[0].mxu0
    %1296 = vdwg.mxu0
    %1297 = vmatprep.subr.bf16.mxu0 0
    %1298 = vmatpush1.bf16.msra.mxu0 %v707
    %1299 = vmatprep.subr.bf16.mxu0 0
    %1300 = vmatpush1.bf16.msra.mxu0 %v708
    %1301 = vmatprep.subr.bf16.mxu0 0
    %1302 = vmatpush1.bf16.msra.mxu0 0
    %1303 = vmatprep.subr.bf16.mxu0 0
    %1304 = vmatpush1.bf16.msra.mxu0 0
    %1305 = vmatprep.subr.bf16.mxu0 0
    %1306 = vmatpush1.bf16.msra.mxu0 0
    %1307 = vmatprep.subr.bf16.mxu0 0
    %1308 = vmatpush1.bf16.msra.mxu0 0
    %1309 = vmatprep.subr.bf16.mxu0 0
    %1310 = vmatpush1.bf16.msra.mxu0 0
    %1311 = vmatprep.subr.bf16.mxu0 0
    %1312 = vmatpush1.bf16.msra.mxu0 0
    %1313 = vmatprep.subr.bf16.mxu0 0
    %1314 = vmatpush1.bf16.msra.mxu0 0
    %1315 = vmatprep.subr.bf16.mxu0 0
    %1316 = vmatpush1.bf16.msra.mxu0 0
    %1317 = vmatprep.subr.bf16.mxu0 0
    %1318 = vmatpush1.bf16.msra.mxu0 0
    %1319 = vmatprep.subr.bf16.mxu0 0
    %1320 = vmatpush1.bf16.msra.mxu0 0
    %1321 = vmatprep.subr.bf16.mxu0 0
    %1322 = vmatpush1.bf16.msra.mxu0 0
    %1323 = vmatprep.subr.bf16.mxu0 0
    %1324 = vmatpush1.bf16.msra.mxu0 0
    %1325 = vmatprep.subr.bf16.mxu0 0
    %1326 = vmatpush1.bf16.msra.mxu0 0
    %1327 = vmatprep.subr.bf16.mxu0 0
    %1328 = vmatpush1.bf16.msra.mxu0 0
    %1329 = vmatprep.mubr.bf16.mxu0 0
    %1330 = vmatmul.mubr.bf16.gmra.mrb[0].mxu0 %v1144
    %v1331 = vpop.f32.mrb[0].mxu0
    %v1332 = vadd.f32 %v1292, %v1331
    %v1333 = vpop.f32.mrb[0].mxu0
    %v1334 = vpop.f32.mrb[0].mxu0
    %v1335 = vpop.f32.mrb[0].mxu0
    %1336 = vdwg.mxu0
    %v1337 = vadd.f32 %v1332, %v59
    %v1338 = vsub.f32 0.0, %v1337
    %v1339 = vmul.f32 %v1338, 1.442695
    %v1340 = vpow.pop %v1339
    %v1341 = vadd.f32 %v1340, 1.0
    %v1342 = vrcp.pop %v1341
    %v1343 = vtanh.pop %v1337
    %v1344 = vmul.f32 %v1342, %v1061
    %1346 = vrot.lane.b32.xlu0 %v1343, 64
    %v1347 = vpop.permute.xlu0 %1346
    %v1349 = vmul.f32 %v1342, %v1347
    %1351 = vrot.lane.b32.xlu0 %v1349, 32
    %v1352 = vpop.permute.xlu0 %1351
    %v1354 = vadd.f32 %v1344, %v1352
    %v1355 = vtanh.pop %v1354
    %1357 = vrot.lane.b32.xlu0 %v1355, 64
    %v1358 = vpop.permute.xlu0 %1357
    %v1360 = vmul.f32 %v1342, %v1358
    %v1361 = vpack.c.bf16 %v1138, %v1138
    %1363 = vrot.lane.b32.xlu0 %v1361, 32
    %v1364 = vpop.permute.xlu0 %1363
    %v1366 = vsel %vm109, %v1364, 0
    %1368 = vmatprep.subr.bf16.mxu0 0
    %1369 = vmatpush1.bf16.msra.mxu0 %v195
    %1370 = vmatprep.subr.bf16.mxu0 0
    %1371 = vmatpush1.bf16.msra.mxu0 %v196
    %1372 = vmatprep.subr.bf16.mxu0 0
    %1373 = vmatpush1.bf16.msra.mxu0 0
    %1374 = vmatprep.subr.bf16.mxu0 0
    %1375 = vmatpush1.bf16.msra.mxu0 0
    %1376 = vmatprep.subr.bf16.mxu0 0
    %1377 = vmatpush1.bf16.msra.mxu0 0
    %1378 = vmatprep.subr.bf16.mxu0 0
    %1379 = vmatpush1.bf16.msra.mxu0 0
    %1380 = vmatprep.subr.bf16.mxu0 0
    %1381 = vmatpush1.bf16.msra.mxu0 0
    %1382 = vmatprep.subr.bf16.mxu0 0
    %1383 = vmatpush1.bf16.msra.mxu0 0
    %1384 = vmatprep.subr.bf16.mxu0 0
    %1385 = vmatpush1.bf16.msra.mxu0 0
    %1386 = vmatprep.subr.bf16.mxu0 0
    %1387 = vmatpush1.bf16.msra.mxu0 0
    %1388 = vmatprep.subr.bf16.mxu0 0
    %1389 = vmatpush1.bf16.msra.mxu0 0
    %1390 = vmatprep.subr.bf16.mxu0 0
    %1391 = vmatpush1.bf16.msra.mxu0 0
    %1392 = vmatprep.subr.bf16.mxu0 0
    %1393 = vmatpush1.bf16.msra.mxu0 0
    %1394 = vmatprep.subr.bf16.mxu0 0
    %1395 = vmatpush1.bf16.msra.mxu0 0
    %1396 = vmatprep.subr.bf16.mxu0 0
    %1397 = vmatpush1.bf16.msra.mxu0 0
    %1398 = vmatprep.subr.bf16.mxu0 0
    %1399 = vmatpush1.bf16.msra.mxu0 0
    %1400 = vmatprep.mubr.bf16.mxu0 0
    %1401 = vmatmul.mubr.bf16.gmra.mrb[0].mxu0 %v1366
    %v1402 = vpop.f32.mrb[0].mxu0
    %v1403 = vadd.f32 0.0, %v1402
    %v1404 = vpop.f32.mrb[0].mxu0
    %v1405 = vpop.f32.mrb[0].mxu0
    %v1406 = vpop.f32.mrb[0].mxu0
    %1407 = vdwg.mxu0
    %v1408 = vadd.f32 %v176, %v1403
    %v1409 = vsub.f32 0.0, %v1408
    %v1410 = vmul.f32 %v1409, 1.442695
    %v1411 = vpow.pop %v1410
    %v1412 = vadd.f32 %v1411, 1.0
    %v1413 = vrcp.pop %v1412
    %v1414 = vtanh.pop %v1408
    %v1415 = vmul.f32 %v1413, %v1132
    %1417 = vrot.lane.b32.xlu0 %v1414, 64
    %v1418 = vpop.permute.xlu0 %1417
    %v1420 = vmul.f32 %v1413, %v1418
    %1422 = vrot.lane.b32.xlu0 %v1420, 32
    %v1423 = vpop.permute.xlu0 %1422
    %v1425 = vadd.f32 %v1415, %v1423
    %v1426 = vtanh.pop %v1425
    %1428 = vrot.lane.b32.xlu0 %v1426, 64
    %v1429 = vpop.permute.xlu0 %1428
    %v1431 = vmul.f32 %v1413, %v1429
    %v1432 = vpack.c.bf16 %v1249, %v1249
    %1434 = vrot.lane.b32.xlu0 %v1432, 32
    %v1435 = vpop.permute.xlu0 %1434
    %v1437 = vsel %vm109, %v1435, 0
    %1439 = vmatprep.subr.bf16.mxu0 0
    %1440 = vmatpush1.bf16.msra.mxu0 %v345
    %1441 = vmatprep.subr.bf16.mxu0 0
    %1442 = vmatpush1.bf16.msra.mxu0 %v346
    %1443 = vmatprep.subr.bf16.mxu0 0
    %1444 = vmatpush1.bf16.msra.mxu0 0
    %1445 = vmatprep.subr.bf16.mxu0 0
    %1446 = vmatpush1.bf16.msra.mxu0 0
    %1447 = vmatprep.subr.bf16.mxu0 0
    %1448 = vmatpush1.bf16.msra.mxu0 0
    %1449 = vmatprep.subr.bf16.mxu0 0
    %1450 = vmatpush1.bf16.msra.mxu0 0
    %1451 = vmatprep.subr.bf16.mxu0 0
    %1452 = vmatpush1.bf16.msra.mxu0 0
    %1453 = vmatprep.subr.bf16.mxu0 0
    %1454 = vmatpush1.bf16.msra.mxu0 0
    %1455 = vmatprep.subr.bf16.mxu0 0
    %1456 = vmatpush1.bf16.msra.mxu0 0
    %1457 = vmatprep.subr.bf16.mxu0 0
    %1458 = vmatpush1.bf16.msra.mxu0 0
    %1459 = vmatprep.subr.bf16.mxu0 0
    %1460 = vmatpush1.bf16.msra.mxu0 0
    %1461 = vmatprep.subr.bf16.mxu0 0
    %1462 = vmatpush1.bf16.msra.mxu0 0
    %1463 = vmatprep.subr.bf16.mxu0 0
    %1464 = vmatpush1.bf16.msra.mxu0 0
    %1465 = vmatprep.subr.bf16.mxu0 0
    %1466 = vmatpush1.bf16.msra.mxu0 0
    %1467 = vmatprep.subr.bf16.mxu0 0
    %1468 = vmatpush1.bf16.msra.mxu0 0
    %1469 = vmatprep.subr.bf16.mxu0 0
    %1470 = vmatpush1.bf16.msra.mxu0 0
    %1471 = vmatprep.mubr.bf16.mxu0 0
    %1472 = vmatmul.mubr.bf16.gmra.mrb[0].mxu0 %v1437
    %v1473 = vpop.f32.mrb[0].mxu0
    %v1474 = vadd.f32 0.0, %v1473
    %v1475 = vpop.f32.mrb[0].mxu0
    %v1476 = vpop.f32.mrb[0].mxu0
    %v1477 = vpop.f32.mrb[0].mxu0
    %1478 = vdwg.mxu0
    %1479 = vmatprep.subr.bf16.mxu0 0
    %1480 = vmatpush1.bf16.msra.mxu0 %v397
    %1481 = vmatprep.subr.bf16.mxu0 0
    %1482 = vmatpush1.bf16.msra.mxu0 %v398
    %1483 = vmatprep.subr.bf16.mxu0 0
    %1484 = vmatpush1.bf16.msra.mxu0 0
    %1485 = vmatprep.subr.bf16.mxu0 0
    %1486 = vmatpush1.bf16.msra.mxu0 0
    %1487 = vmatprep.subr.bf16.mxu0 0
    %1488 = vmatpush1.bf16.msra.mxu0 0
    %1489 = vmatprep.subr.bf16.mxu0 0
    %1490 = vmatpush1.bf16.msra.mxu0 0
    %1491 = vmatprep.subr.bf16.mxu0 0
    %1492 = vmatpush1.bf16.msra.mxu0 0
    %1493 = vmatprep.subr.bf16.mxu0 0
    %1494 = vmatpush1.bf16.msra.mxu0 0
    %1495 = vmatprep.subr.bf16.mxu0 0
    %1496 = vmatpush1.bf16.msra.mxu0 0
    %1497 = vmatprep.subr.bf16.mxu0 0
    %1498 = vmatpush1.bf16.msra.mxu0 0
    %1499 = vmatprep.subr.bf16.mxu0 0
    %1500 = vmatpush1.bf16.msra.mxu0 0
    %1501 = vmatprep.subr.bf16.mxu0 0
    %1502 = vmatpush1.bf16.msra.mxu0 0
    %1503 = vmatprep.subr.bf16.mxu0 0
    %1504 = vmatpush1.bf16.msra.mxu0 0
    %1505 = vmatprep.subr.bf16.mxu0 0
    %1506 = vmatpush1.bf16.msra.mxu0 0
    %1507 = vmatprep.subr.bf16.mxu0 0
    %1508 = vmatpush1.bf16.msra.mxu0 0
    %1509 = vmatprep.subr.bf16.mxu0 0
    %1510 = vmatpush1.bf16.msra.mxu0 0
    %1511 = vmatprep.mubr.bf16.mxu0 0
    %1512 = vmatmul.mubr.bf16.gmra.mrb[0].mxu0 %v1366
    %v1513 = vpop.f32.mrb[0].mxu0
    %v1514 = vadd.f32 %v1474, %v1513
    %v1515 = vpop.f32.mrb[0].mxu0
    %v1516 = vpop.f32.mrb[0].mxu0
    %v1517 = vpop.f32.mrb[0].mxu0
    %1518 = vdwg.mxu0
    %v1519 = vadd.f32 %v1514, %v54
    %v1520 = vsub.f32 0.0, %v1519
    %v1521 = vmul.f32 %v1520, 1.442695
    %v1522 = vpow.pop %v1521
    %v1523 = vadd.f32 %v1522, 1.0
    %v1524 = vrcp.pop %v1523
    %v1525 = vtanh.pop %v1519
    %v1526 = vmul.f32 %v1524, %v1243
    %1528 = vrot.lane.b32.xlu0 %v1525, 64
    %v1529 = vpop.permute.xlu0 %1528
    %v1531 = vmul.f32 %v1524, %v1529
    %1533 = vrot.lane.b32.xlu0 %v1531, 32
    %v1534 = vpop.permute.xlu0 %1533
    %v1536 = vadd.f32 %v1526, %v1534
    %v1537 = vtanh.pop %v1536
    %1539 = vrot.lane.b32.xlu0 %v1537, 64
    %v1540 = vpop.permute.xlu0 %1539
    %v1542 = vmul.f32 %v1524, %v1540
    %v1543 = vpack.c.bf16 %v1360, %v1360
    %1545 = vrot.lane.b32.xlu0 %v1543, 32
    %v1546 = vpop.permute.xlu0 %1545
    %v1548 = vsel %vm109, %v1546, 0
    %1550 = vmatprep.subr.bf16.mxu0 0
    %1551 = vmatpush1.bf16.msra.mxu0 %v655
    %1552 = vmatprep.subr.bf16.mxu0 0
    %1553 = vmatpush1.bf16.msra.mxu0 %v656
    %1554 = vmatprep.subr.bf16.mxu0 0
    %1555 = vmatpush1.bf16.msra.mxu0 0
    %1556 = vmatprep.subr.bf16.mxu0 0
    %1557 = vmatpush1.bf16.msra.mxu0 0
    %1558 = vmatprep.subr.bf16.mxu0 0
    %1559 = vmatpush1.bf16.msra.mxu0 0
    %1560 = vmatprep.subr.bf16.mxu0 0
    %1561 = vmatpush1.bf16.msra.mxu0 0
    %1562 = vmatprep.subr.bf16.mxu0 0
    %1563 = vmatpush1.bf16.msra.mxu0 0
    %1564 = vmatprep.subr.bf16.mxu0 0
    %1565 = vmatpush1.bf16.msra.mxu0 0
    %1566 = vmatprep.subr.bf16.mxu0 0
    %1567 = vmatpush1.bf16.msra.mxu0 0
    %1568 = vmatprep.subr.bf16.mxu0 0
    %1569 = vmatpush1.bf16.msra.mxu0 0
    %1570 = vmatprep.subr.bf16.mxu0 0
    %1571 = vmatpush1.bf16.msra.mxu0 0
    %1572 = vmatprep.subr.bf16.mxu0 0
    %1573 = vmatpush1.bf16.msra.mxu0 0
    %1574 = vmatprep.subr.bf16.mxu0 0
    %1575 = vmatpush1.bf16.msra.mxu0 0
    %1576 = vmatprep.subr.bf16.mxu0 0
    %1577 = vmatpush1.bf16.msra.mxu0 0
    %1578 = vmatprep.subr.bf16.mxu0 0
    %1579 = vmatpush1.bf16.msra.mxu0 0
    %1580 = vmatprep.subr.bf16.mxu0 0
    %1581 = vmatpush1.bf16.msra.mxu0 0
    %1582 = vmatprep.mubr.bf16.mxu0 0
    %1583 = vmatmul.mubr.bf16.gmra.mrb[0].mxu0 %v1548
    %v1584 = vpop.f32.mrb[0].mxu0
    %v1585 = vadd.f32 0.0, %v1584
    %v1586 = vpop.f32.mrb[0].mxu0
    %v1587 = vpop.f32.mrb[0].mxu0
    %v1588 = vpop.f32.mrb[0].mxu0
    %1589 = vdwg.mxu0
    %1590 = vmatprep.subr.bf16.mxu0 0
    %1591 = vmatpush1.bf16.msra.mxu0 %v707
    %1592 = vmatprep.subr.bf16.mxu0 0
    %1593 = vmatpush1.bf16.msra.mxu0 %v708
    %1594 = vmatprep.subr.bf16.mxu0 0
    %1595 = vmatpush1.bf16.msra.mxu0 0
    %1596 = vmatprep.subr.bf16.mxu0 0
    %1597 = vmatpush1.bf16.msra.mxu0 0
    %1598 = vmatprep.subr.bf16.mxu0 0
    %1599 = vmatpush1.bf16.msra.mxu0 0
    %1600 = vmatprep.subr.bf16.mxu0 0
    %1601 = vmatpush1.bf16.msra.mxu0 0
    %1602 = vmatprep.subr.bf16.mxu0 0
    %1603 = vmatpush1.bf16.msra.mxu0 0
    %1604 = vmatprep.subr.bf16.mxu0 0
    %1605 = vmatpush1.bf16.msra.mxu0 0
    %1606 = vmatprep.subr.bf16.mxu0 0
    %1607 = vmatpush1.bf16.msra.mxu0 0
    %1608 = vmatprep.subr.bf16.mxu0 0
    %1609 = vmatpush1.bf16.msra.mxu0 0
    %1610 = vmatprep.subr.bf16.mxu0 0
    %1611 = vmatpush1.bf16.msra.mxu0 0
    %1612 = vmatprep.subr.bf16.mxu0 0
    %1613 = vmatpush1.bf16.msra.mxu0 0
    %1614 = vmatprep.subr.bf16.mxu0 0
    %1615 = vmatpush1.bf16.msra.mxu0 0
    %1616 = vmatprep.subr.bf16.mxu0 0
    %1617 = vmatpush1.bf16.msra.mxu0 0
    %1618 = vmatprep.subr.bf16.mxu0 0
    %1619 = vmatpush1.bf16.msra.mxu0 0
    %1620 = vmatprep.subr.bf16.mxu0 0
    %1621 = vmatpush1.bf16.msra.mxu0 0
    %1622 = vmatprep.mubr.bf16.mxu0 0
    %1623 = vmatmul.mubr.bf16.gmra.mrb[0].mxu0 %v1437
    %v1624 = vpop.f32.mrb[0].mxu0
    %v1625 = vadd.f32 %v1585, %v1624
    %v1626 = vpop.f32.mrb[0].mxu0
    %v1627 = vpop.f32.mrb[0].mxu0
    %v1628 = vpop.f32.mrb[0].mxu0
    %1629 = vdwg.mxu0
    %v1630 = vadd.f32 %v1625, %v59
    %v1631 = vsub.f32 0.0, %v1630
    %v1632 = vmul.f32 %v1631, 1.442695
    %v1633 = vpow.pop %v1632
    %v1634 = vadd.f32 %v1633, 1.0
    %v1635 = vrcp.pop %v1634
    %v1636 = vtanh.pop %v1630
    %v1637 = vmul.f32 %v1635, %v1354
    %1639 = vrot.lane.b32.xlu0 %v1636, 64
    %v1640 = vpop.permute.xlu0 %1639
    %v1642 = vmul.f32 %v1635, %v1640
    %1644 = vrot.lane.b32.xlu0 %v1642, 32
    %v1645 = vpop.permute.xlu0 %1644
    %v1647 = vadd.f32 %v1637, %v1645
    %v1648 = vtanh.pop %v1647
    %1650 = vrot.lane.b32.xlu0 %v1648, 64
    %v1651 = vpop.permute.xlu0 %1650
    %v1653 = vmul.f32 %v1635, %v1651
    %v1654 = vpack.c.bf16 %v1431, %v1431
    %1656 = vrot.lane.b32.xlu0 %v1654, 32
    %v1657 = vpop.permute.xlu0 %1656
    %v1659 = vsel %vm109, %v1657, 0
    %1661 = vmatprep.subr.bf16.mxu0 0
    %1662 = vmatpush1.bf16.msra.mxu0 %v195
    %1663 = vmatprep.subr.bf16.mxu0 0
    %1664 = vmatpush1.bf16.msra.mxu0 %v196
    %1665 = vmatprep.subr.bf16.mxu0 0
    %1666 = vmatpush1.bf16.msra.mxu0 0
    %1667 = vmatprep.subr.bf16.mxu0 0
    %1668 = vmatpush1.bf16.msra.mxu0 0
    %1669 = vmatprep.subr.bf16.mxu0 0
    %1670 = vmatpush1.bf16.msra.mxu0 0
    %1671 = vmatprep.subr.bf16.mxu0 0
    %1672 = vmatpush1.bf16.msra.mxu0 0
    %1673 = vmatprep.subr.bf16.mxu0 0
    %1674 = vmatpush1.bf16.msra.mxu0 0
    %1675 = vmatprep.subr.bf16.mxu0 0
    %1676 = vmatpush1.bf16.msra.mxu0 0
    %1677 = vmatprep.subr.bf16.mxu0 0
    %1678 = vmatpush1.bf16.msra.mxu0 0
    %1679 = vmatprep.subr.bf16.mxu0 0
    %1680 = vmatpush1.bf16.msra.mxu0 0
    %1681 = vmatprep.subr.bf16.mxu0 0
    %1682 = vmatpush1.bf16.msra.mxu0 0
    %1683 = vmatprep.subr.bf16.mxu0 0
    %1684 = vmatpush1.bf16.msra.mxu0 0
    %1685 = vmatprep.subr.bf16.mxu0 0
    %1686 = vmatpush1.bf16.msra.mxu0 0
    %1687 = vmatprep.subr.bf16.mxu0 0
    %1688 = vmatpush1.bf16.msra.mxu0 0
    %1689 = vmatprep.subr.bf16.mxu0 0
    %1690 = vmatpush1.bf16.msra.mxu0 0
    %1691 = vmatprep.subr.bf16.mxu0 0
    %1692 = vmatpush1.bf16.msra.mxu0 0
    %1693 = vmatprep.mubr.bf16.mxu0 0
    %1694 = vmatmul.mubr.bf16.gmra.mrb[0].mxu0 %v1659
    %v1695 = vpop.f32.mrb[0].mxu0
    %v1696 = vadd.f32 0.0, %v1695
    %v1697 = vpop.f32.mrb[0].mxu0
    %v1698 = vpop.f32.mrb[0].mxu0
    %v1699 = vpop.f32.mrb[0].mxu0
    %1700 = vdwg.mxu0
    %v1701 = vadd.f32 %v181, %v1696
    %v1702 = vsub.f32 0.0, %v1701
    %v1703 = vmul.f32 %v1702, 1.442695
    %v1704 = vpow.pop %v1703
    %v1705 = vadd.f32 %v1704, 1.0
    %v1706 = vrcp.pop %v1705
    %v1707 = vtanh.pop %v1701
    %v1708 = vmul.f32 %v1706, %v1425
    %1710 = vrot.lane.b32.xlu0 %v1707, 64
    %v1711 = vpop.permute.xlu0 %1710
    %v1713 = vmul.f32 %v1706, %v1711
    %1715 = vrot.lane.b32.xlu0 %v1713, 32
    %v1716 = vpop.permute.xlu0 %1715
    %v1718 = vadd.f32 %v1708, %v1716
    %v1719 = vtanh.pop %v1718
    %1721 = vrot.lane.b32.xlu0 %v1719, 64
    %v1722 = vpop.permute.xlu0 %1721
    %v1724 = vmul.f32 %v1706, %v1722
    %v1725 = vpack.c.bf16 %v1542, %v1542
    %1727 = vrot.lane.b32.xlu0 %v1725, 32
    %v1728 = vpop.permute.xlu0 %1727
    %v1730 = vsel %vm109, %v1728, 0
    %1732 = vmatprep.subr.bf16.mxu0 0
    %1733 = vmatpush1.bf16.msra.mxu0 %v345
    %1734 = vmatprep.subr.bf16.mxu0 0
    %1735 = vmatpush1.bf16.msra.mxu0 %v346
    %1736 = vmatprep.subr.bf16.mxu0 0
    %1737 = vmatpush1.bf16.msra.mxu0 0
    %1738 = vmatprep.subr.bf16.mxu0 0
    %1739 = vmatpush1.bf16.msra.mxu0 0
    %1740 = vmatprep.subr.bf16.mxu0 0
    %1741 = vmatpush1.bf16.msra.mxu0 0
    %1742 = vmatprep.subr.bf16.mxu0 0
    %1743 = vmatpush1.bf16.msra.mxu0 0
    %1744 = vmatprep.subr.bf16.mxu0 0
    %1745 = vmatpush1.bf16.msra.mxu0 0
    %1746 = vmatprep.subr.bf16.mxu0 0
    %1747 = vmatpush1.bf16.msra.mxu0 0
    %1748 = vmatprep.subr.bf16.mxu0 0
    %1749 = vmatpush1.bf16.msra.mxu0 0
    %1750 = vmatprep.subr.bf16.mxu0 0
    %1751 = vmatpush1.bf16.msra.mxu0 0
    %1752 = vmatprep.subr.bf16.mxu0 0
    %1753 = vmatpush1.bf16.msra.mxu0 0
    %1754 = vmatprep.subr.bf16.mxu0 0
    %1755 = vmatpush1.bf16.msra.mxu0 0
    %1756 = vmatprep.subr.bf16.mxu0 0
    %1757 = vmatpush1.bf16.msra.mxu0 0
    %1758 = vmatprep.subr.bf16.mxu0 0
    %1759 = vmatpush1.bf16.msra.mxu0 0
    %1760 = vmatprep.subr.bf16.mxu0 0
    %1761 = vmatpush1.bf16.msra.mxu0 0
    %1762 = vmatprep.subr.bf16.mxu0 0
    %1763 = vmatpush1.bf16.msra.mxu0 0
    %1764 = vmatprep.mubr.bf16.mxu0 0
    %1765 = vmatmul.mubr.bf16.gmra.mrb[0].mxu0 %v1730
    %v1766 = vpop.f32.mrb[0].mxu0
    %v1767 = vadd.f32 0.0, %v1766
    %v1768 = vpop.f32.mrb[0].mxu0
    %v1769 = vpop.f32.mrb[0].mxu0
    %v1770 = vpop.f32.mrb[0].mxu0
    %1771 = vdwg.mxu0
    %1772 = vmatprep.subr.bf16.mxu0 0
    %1773 = vmatpush1.bf16.msra.mxu0 %v397
    %1774 = vmatprep.subr.bf16.mxu0 0
    %1775 = vmatpush1.bf16.msra.mxu0 %v398
    %1776 = vmatprep.subr.bf16.mxu0 0
    %1777 = vmatpush1.bf16.msra.mxu0 0
    %1778 = vmatprep.subr.bf16.mxu0 0
    %1779 = vmatpush1.bf16.msra.mxu0 0
    %1780 = vmatprep.subr.bf16.mxu0 0
    %1781 = vmatpush1.bf16.msra.mxu0 0
    %1782 = vmatprep.subr.bf16.mxu0 0
    %1783 = vmatpush1.bf16.msra.mxu0 0
    %1784 = vmatprep.subr.bf16.mxu0 0
    %1785 = vmatpush1.bf16.msra.mxu0 0
    %1786 = vmatprep.subr.bf16.mxu0 0
    %1787 = vmatpush1.bf16.msra.mxu0 0
    %1788 = vmatprep.subr.bf16.mxu0 0
    %1789 = vmatpush1.bf16.msra.mxu0 0
    %1790 = vmatprep.subr.bf16.mxu0 0
    %1791 = vmatpush1.bf16.msra.mxu0 0
    %1792 = vmatprep.subr.bf16.mxu0 0
    %1793 = vmatpush1.bf16.msra.mxu0 0
    %1794 = vmatprep.subr.bf16.mxu0 0
    %1795 = vmatpush1.bf16.msra.mxu0 0
    %1796 = vmatprep.subr.bf16.mxu0 0
    %1797 = vmatpush1.bf16.msra.mxu0 0
    %1798 = vmatprep.subr.bf16.mxu0 0
    %1799 = vmatpush1.bf16.msra.mxu0 0
    %1800 = vmatprep.subr.bf16.mxu0 0
    %1801 = vmatpush1.bf16.msra.mxu0 0
    %1802 = vmatprep.subr.bf16.mxu0 0
    %1803 = vmatpush1.bf16.msra.mxu0 0
    %1804 = vmatprep.mubr.bf16.mxu0 0
    %1805 = vmatmul.mubr.bf16.gmra.mrb[0].mxu0 %v1659
    %v1806 = vpop.f32.mrb[0].mxu0
    %v1807 = vadd.f32 %v1767, %v1806
    %v1808 = vpop.f32.mrb[0].mxu0
    %v1809 = vpop.f32.mrb[0].mxu0
    %v1810 = vpop.f32.mrb[0].mxu0
    %1811 = vdwg.mxu0
    %v1812 = vadd.f32 %v1807, %v54
    %v1813 = vsub.f32 0.0, %v1812
    %v1814 = vmul.f32 %v1813, 1.442695
    %v1815 = vpow.pop %v1814
    %v1816 = vadd.f32 %v1815, 1.0
    %v1817 = vrcp.pop %v1816
    %v1818 = vtanh.pop %v1812
    %v1819 = vmul.f32 %v1817, %v1536
    %1821 = vrot.lane.b32.xlu0 %v1818, 64
    %v1822 = vpop.permute.xlu0 %1821
    %v1824 = vmul.f32 %v1817, %v1822
    %1826 = vrot.lane.b32.xlu0 %v1824, 32
    %v1827 = vpop.permute.xlu0 %1826
    %v1829 = vadd.f32 %v1819, %v1827
    %v1830 = vtanh.pop %v1829
    %1832 = vrot.lane.b32.xlu0 %v1830, 64
    %v1833 = vpop.permute.xlu0 %1832
    %v1835 = vmul.f32 %v1817, %v1833
    %v1836 = vpack.c.bf16 %v1653, %v1653
    %1838 = vrot.lane.b32.xlu0 %v1836, 32
    %v1839 = vpop.permute.xlu0 %1838
    %v1841 = vsel %vm109, %v1839, 0
    %1843 = vmatprep.subr.bf16.mxu0 0
    %1844 = vmatpush1.bf16.msra.mxu0 %v655
    %1845 = vmatprep.subr.bf16.mxu0 0
    %1846 = vmatpush1.bf16.msra.mxu0 %v656
    %1847 = vmatprep.subr.bf16.mxu0 0
    %1848 = vmatpush1.bf16.msra.mxu0 0
    %1849 = vmatprep.subr.bf16.mxu0 0
    %1850 = vmatpush1.bf16.msra.mxu0 0
    %1851 = vmatprep.subr.bf16.mxu0 0
    %1852 = vmatpush1.bf16.msra.mxu0 0
    %1853 = vmatprep.subr.bf16.mxu0 0
    %1854 = vmatpush1.bf16.msra.mxu0 0
    %1855 = vmatprep.subr.bf16.mxu0 0
    %1856 = vmatpush1.bf16.msra.mxu0 0
    %1857 = vmatprep.subr.bf16.mxu0 0
    %1858 = vmatpush1.bf16.msra.mxu0 0
    %1859 = vmatprep.subr.bf16.mxu0 0
    %1860 = vmatpush1.bf16.msra.mxu0 0
    %1861 = vmatprep.subr.bf16.mxu0 0
    %1862 = vmatpush1.bf16.msra.mxu0 0
    %1863 = vmatprep.subr.bf16.mxu0 0
    %1864 = vmatpush1.bf16.msra.mxu0 0
    %1865 = vmatprep.subr.bf16.mxu0 0
    %1866 = vmatpush1.bf16.msra.mxu0 0
    %1867 = vmatprep.subr.bf16.mxu0 0
    %1868 = vmatpush1.bf16.msra.mxu0 0
    %1869 = vmatprep.subr.bf16.mxu0 0
    %1870 = vmatpush1.bf16.msra.mxu0 0
    %1871 = vmatprep.subr.bf16.mxu0 0
    %1872 = vmatpush1.bf16.msra.mxu0 0
    %1873 = vmatprep.subr.bf16.mxu0 0
    %1874 = vmatpush1.bf16.msra.mxu0 0
    %1875 = vmatprep.mubr.bf16.mxu0 0
    %1876 = vmatmul.mubr.bf16.gmra.mrb[0].mxu0 %v1841
    %v1877 = vpop.f32.mrb[0].mxu0
    %v1878 = vadd.f32 0.0, %v1877
    %v1879 = vpop.f32.mrb[0].mxu0
    %v1880 = vpop.f32.mrb[0].mxu0
    %v1881 = vpop.f32.mrb[0].mxu0
    %1882 = vdwg.mxu0
    %1883 = vmatprep.subr.bf16.mxu0 0
    %1884 = vmatpush1.bf16.msra.mxu0 %v707
    %1885 = vmatprep.subr.bf16.mxu0 0
    %1886 = vmatpush1.bf16.msra.mxu0 %v708
    %1887 = vmatprep.subr.bf16.mxu0 0
    %1888 = vmatpush1.bf16.msra.mxu0 0
    %1889 = vmatprep.subr.bf16.mxu0 0
    %1890 = vmatpush1.bf16.msra.mxu0 0
    %1891 = vmatprep.subr.bf16.mxu0 0
    %1892 = vmatpush1.bf16.msra.mxu0 0
    %1893 = vmatprep.subr.bf16.mxu0 0
    %1894 = vmatpush1.bf16.msra.mxu0 0
    %1895 = vmatprep.subr.bf16.mxu0 0
    %1896 = vmatpush1.bf16.msra.mxu0 0
    %1897 = vmatprep.subr.bf16.mxu0 0
    %1898 = vmatpush1.bf16.msra.mxu0 0
    %1899 = vmatprep.subr.bf16.mxu0 0
    %1900 = vmatpush1.bf16.msra.mxu0 0
    %1901 = vmatprep.subr.bf16.mxu0 0
    %1902 = vmatpush1.bf16.msra.mxu0 0
    %1903 = vmatprep.subr.bf16.mxu0 0
    %1904 = vmatpush1.bf16.msra.mxu0 0
    %1905 = vmatprep.subr.bf16.mxu0 0
    %1906 = vmatpush1.bf16.msra.mxu0 0
    %1907 = vmatprep.subr.bf16.mxu0 0
    %1908 = vmatpush1.bf16.msra.mxu0 0
    %1909 = vmatprep.subr.bf16.mxu0 0
    %1910 = vmatpush1.bf16.msra.mxu0 0
    %1911 = vmatprep.subr.bf16.mxu0 0
    %1912 = vmatpush1.bf16.msra.mxu0 0
    %1913 = vmatprep.subr.bf16.mxu0 0
    %1914 = vmatpush1.bf16.msra.mxu0 0
    %1915 = vmatprep.mubr.bf16.mxu0 0
    %1916 = vmatmul.mubr.bf16.gmra.mrb[0].mxu0 %v1730
    %v1917 = vpop.f32.mrb[0].mxu0
    %v1918 = vadd.f32 %v1878, %v1917
    %v1919 = vpop.f32.mrb[0].mxu0
    %v1920 = vpop.f32.mrb[0].mxu0
    %v1921 = vpop.f32.mrb[0].mxu0
    %1922 = vdwg.mxu0
    %v1923 = vadd.f32 %v1918, %v59
    %v1924 = vsub.f32 0.0, %v1923
    %v1925 = vmul.f32 %v1924, 1.442695
    %v1926 = vpow.pop %v1925
    %v1927 = vadd.f32 %v1926, 1.0
    %v1928 = vrcp.pop %v1927
    %v1929 = vtanh.pop %v1923
    %v1930 = vmul.f32 %v1928, %v1647
    %1932 = vrot.lane.b32.xlu0 %v1929, 64
    %v1933 = vpop.permute.xlu0 %1932
    %v1935 = vmul.f32 %v1928, %v1933
    %1937 = vrot.lane.b32.xlu0 %v1935, 32
    %v1938 = vpop.permute.xlu0 %1937
    %v1940 = vadd.f32 %v1930, %v1938
    %v1941 = vtanh.pop %v1940
    %1943 = vrot.lane.b32.xlu0 %v1941, 64
    %v1944 = vpop.permute.xlu0 %1943
    %v1946 = vmul.f32 %v1928, %v1944
    %v1947 = vpack.c.bf16 %v1724, %v1724
    %1949 = vrot.lane.b32.xlu0 %v1947, 32
    %v1950 = vpop.permute.xlu0 %1949
    %v1952 = vsel %vm109, %v1950, 0
    %1954 = vmatprep.subr.bf16.mxu0 0
    %1955 = vmatpush1.bf16.msra.mxu0 %v195
    %1956 = vmatprep.subr.bf16.mxu0 0
    %1957 = vmatpush1.bf16.msra.mxu0 %v196
    %1958 = vmatprep.subr.bf16.mxu0 0
    %1959 = vmatpush1.bf16.msra.mxu0 0
    %1960 = vmatprep.subr.bf16.mxu0 0
    %1961 = vmatpush1.bf16.msra.mxu0 0
    %1962 = vmatprep.subr.bf16.mxu0 0
    %1963 = vmatpush1.bf16.msra.mxu0 0
    %1964 = vmatprep.subr.bf16.mxu0 0
    %1965 = vmatpush1.bf16.msra.mxu0 0
    %1966 = vmatprep.subr.bf16.mxu0 0
    %1967 = vmatpush1.bf16.msra.mxu0 0
    %1968 = vmatprep.subr.bf16.mxu0 0
    %1969 = vmatpush1.bf16.msra.mxu0 0
    %1970 = vmatprep.subr.bf16.mxu0 0
    %1971 = vmatpush1.bf16.msra.mxu0 0
    %1972 = vmatprep.subr.bf16.mxu0 0
    %1973 = vmatpush1.bf16.msra.mxu0 0
    %1974 = vmatprep.subr.bf16.mxu0 0
    %1975 = vmatpush1.bf16.msra.mxu0 0
    %1976 = vmatprep.subr.bf16.mxu0 0
    %1977 = vmatpush1.bf16.msra.mxu0 0
    %1978 = vmatprep.subr.bf16.mxu0 0
    %1979 = vmatpush1.bf16.msra.mxu0 0
    %1980 = vmatprep.subr.bf16.mxu0 0
    %1981 = vmatpush1.bf16.msra.mxu0 0
    %1982 = vmatprep.subr.bf16.mxu0 0
    %1983 = vmatpush1.bf16.msra.mxu0 0
    %1984 = vmatprep.subr.bf16.mxu0 0
    %1985 = vmatpush1.bf16.msra.mxu0 0
    %1986 = vmatprep.mubr.bf16.mxu0 0
    %1987 = vmatmul.mubr.bf16.gmra.mrb[0].mxu0 %v1952
    %v1988 = vpop.f32.mrb[0].mxu0
    %v1989 = vadd.f32 0.0, %v1988
    %v1990 = vpop.f32.mrb[0].mxu0
    %v1991 = vpop.f32.mrb[0].mxu0
    %v1992 = vpop.f32.mrb[0].mxu0
    %1993 = vdwg.mxu0
    %v1994 = vadd.f32 %v184, %v1989
    %v1995 = vsub.f32 0.0, %v1994
    %v1996 = vmul.f32 %v1995, 1.442695
    %v1997 = vpow.pop %v1996
    %v1998 = vadd.f32 %v1997, 1.0
    %v1999 = vrcp.pop %v1998
    %v2000 = vtanh.pop %v1994
    %v2001 = vmul.f32 %v1999, %v1718
    %2003 = vrot.lane.b32.xlu0 %v2000, 64
    %v2004 = vpop.permute.xlu0 %2003
    %v2006 = vmul.f32 %v1999, %v2004
    %2008 = vrot.lane.b32.xlu0 %v2006, 32
    %v2009 = vpop.permute.xlu0 %2008
    %v2011 = vadd.f32 %v2001, %v2009
    %v2012 = vtanh.pop %v2011
    %2014 = vrot.lane.b32.xlu0 %v2012, 64
    %v2015 = vpop.permute.xlu0 %2014
    %v2017 = vmul.f32 %v1999, %v2015
    %v2018 = vpack.c.bf16 %v1835, %v1835
    %2020 = vrot.lane.b32.xlu0 %v2018, 32
    %v2021 = vpop.permute.xlu0 %2020
    %v2023 = vsel %vm109, %v2021, 0
    %2025 = vmatprep.subr.bf16.mxu0 0
    %2026 = vmatpush1.bf16.msra.mxu0 %v345
    %2027 = vmatprep.subr.bf16.mxu0 0
    %2028 = vmatpush1.bf16.msra.mxu0 %v346
    %2029 = vmatprep.subr.bf16.mxu0 0
    %2030 = vmatpush1.bf16.msra.mxu0 0
    %2031 = vmatprep.subr.bf16.mxu0 0
    %2032 = vmatpush1.bf16.msra.mxu0 0
    %2033 = vmatprep.subr.bf16.mxu0 0
    %2034 = vmatpush1.bf16.msra.mxu0 0
    %2035 = vmatprep.subr.bf16.mxu0 0
    %2036 = vmatpush1.bf16.msra.mxu0 0
    %2037 = vmatprep.subr.bf16.mxu0 0
    %2038 = vmatpush1.bf16.msra.mxu0 0
    %2039 = vmatprep.subr.bf16.mxu0 0
    %2040 = vmatpush1.bf16.msra.mxu0 0
    %2041 = vmatprep.subr.bf16.mxu0 0
    %2042 = vmatpush1.bf16.msra.mxu0 0
    %2043 = vmatprep.subr.bf16.mxu0 0
    %2044 = vmatpush1.bf16.msra.mxu0 0
    %2045 = vmatprep.subr.bf16.mxu0 0
    %2046 = vmatpush1.bf16.msra.mxu0 0
    %2047 = vmatprep.subr.bf16.mxu0 0
    %2048 = vmatpush1.bf16.msra.mxu0 0
    %2049 = vmatprep.subr.bf16.mxu0 0
    %2050 = vmatpush1.bf16.msra.mxu0 0
    %2051 = vmatprep.subr.bf16.mxu0 0
    %2052 = vmatpush1.bf16.msra.mxu0 0
    %2053 = vmatprep.subr.bf16.mxu0 0
    %2054 = vmatpush1.bf16.msra.mxu0 0
    %2055 = vmatprep.subr.bf16.mxu0 0
    %2056 = vmatpush1.bf16.msra.mxu0 0
    %2057 = vmatprep.mubr.bf16.mxu0 0
    %2058 = vmatmul.mubr.bf16.gmra.mrb[0].mxu0 %v2023
    %v2059 = vpop.f32.mrb[0].mxu0
    %v2060 = vadd.f32 0.0, %v2059
    %v2061 = vpop.f32.mrb[0].mxu0
    %v2062 = vpop.f32.mrb[0].mxu0
    %v2063 = vpop.f32.mrb[0].mxu0
    %2064 = vdwg.mxu0
    %2065 = vmatprep.subr.bf16.mxu0 0
    %2066 = vmatpush1.bf16.msra.mxu0 %v397
    %2067 = vmatprep.subr.bf16.mxu0 0
    %2068 = vmatpush1.bf16.msra.mxu0 %v398
    %2069 = vmatprep.subr.bf16.mxu0 0
    %2070 = vmatpush1.bf16.msra.mxu0 0
    %2071 = vmatprep.subr.bf16.mxu0 0
    %2072 = vmatpush1.bf16.msra.mxu0 0
    %2073 = vmatprep.subr.bf16.mxu0 0
    %2074 = vmatpush1.bf16.msra.mxu0 0
    %2075 = vmatprep.subr.bf16.mxu0 0
    %2076 = vmatpush1.bf16.msra.mxu0 0
    %2077 = vmatprep.subr.bf16.mxu0 0
    %2078 = vmatpush1.bf16.msra.mxu0 0
    %2079 = vmatprep.subr.bf16.mxu0 0
    %2080 = vmatpush1.bf16.msra.mxu0 0
    %2081 = vmatprep.subr.bf16.mxu0 0
    %2082 = vmatpush1.bf16.msra.mxu0 0
    %2083 = vmatprep.subr.bf16.mxu0 0
    %2084 = vmatpush1.bf16.msra.mxu0 0
    %2085 = vmatprep.subr.bf16.mxu0 0
    %2086 = vmatpush1.bf16.msra.mxu0 0
    %2087 = vmatprep.subr.bf16.mxu0 0
    %2088 = vmatpush1.bf16.msra.mxu0 0
    %2089 = vmatprep.subr.bf16.mxu0 0
    %2090 = vmatpush1.bf16.msra.mxu0 0
    %2091 = vmatprep.subr.bf16.mxu0 0
    %2092 = vmatpush1.bf16.msra.mxu0 0
    %2093 = vmatprep.subr.bf16.mxu0 0
    %2094 = vmatpush1.bf16.msra.mxu0 0
    %2095 = vmatprep.subr.bf16.mxu0 0
    %2096 = vmatpush1.bf16.msra.mxu0 0
    %2097 = vmatprep.mubr.bf16.mxu0 0
    %2098 = vmatmul.mubr.bf16.gmra.mrb[0].mxu0 %v1952
    %v2099 = vpop.f32.mrb[0].mxu0
    %v2100 = vadd.f32 %v2060, %v2099
    %v2101 = vpop.f32.mrb[0].mxu0
    %v2102 = vpop.f32.mrb[0].mxu0
    %v2103 = vpop.f32.mrb[0].mxu0
    %2104 = vdwg.mxu0
    %v2105 = vadd.f32 %v2100, %v54
    %v2106 = vsub.f32 0.0, %v2105
    %v2107 = vmul.f32 %v2106, 1.442695
    %v2108 = vpow.pop %v2107
    %v2109 = vadd.f32 %v2108, 1.0
    %v2110 = vrcp.pop %v2109
    %v2111 = vtanh.pop %v2105
    %v2112 = vmul.f32 %v2110, %v1829
    %2114 = vrot.lane.b32.xlu0 %v2111, 64
    %v2115 = vpop.permute.xlu0 %2114
    %v2117 = vmul.f32 %v2110, %v2115
    %2119 = vrot.lane.b32.xlu0 %v2117, 32
    %v2120 = vpop.permute.xlu0 %2119
    %v2122 = vadd.f32 %v2112, %v2120
    %v2123 = vtanh.pop %v2122
    %2125 = vrot.lane.b32.xlu0 %v2123, 64
    %v2126 = vpop.permute.xlu0 %2125
    %v2128 = vmul.f32 %v2110, %v2126
    %v2129 = vpack.c.bf16 %v1946, %v1946
    %2131 = vrot.lane.b32.xlu0 %v2129, 32
    %v2132 = vpop.permute.xlu0 %2131
    %v2134 = vsel %vm109, %v2132, 0
    %2136 = vmatprep.subr.bf16.mxu0 0
    %2137 = vmatpush1.bf16.msra.mxu0 %v655
    %2138 = vmatprep.subr.bf16.mxu0 0
    %2139 = vmatpush1.bf16.msra.mxu0 %v656
    %2140 = vmatprep.subr.bf16.mxu0 0
    %2141 = vmatpush1.bf16.msra.mxu0 0
    %2142 = vmatprep.subr.bf16.mxu0 0
    %2143 = vmatpush1.bf16.msra.mxu0 0
    %2144 = vmatprep.subr.bf16.mxu0 0
    %2145 = vmatpush1.bf16.msra.mxu0 0
    %2146 = vmatprep.subr.bf16.mxu0 0
    %2147 = vmatpush1.bf16.msra.mxu0 0
    %2148 = vmatprep.subr.bf16.mxu0 0
    %2149 = vmatpush1.bf16.msra.mxu0 0
    %2150 = vmatprep.subr.bf16.mxu0 0
    %2151 = vmatpush1.bf16.msra.mxu0 0
    %2152 = vmatprep.subr.bf16.mxu0 0
    %2153 = vmatpush1.bf16.msra.mxu0 0
    %2154 = vmatprep.subr.bf16.mxu0 0
    %2155 = vmatpush1.bf16.msra.mxu0 0
    %2156 = vmatprep.subr.bf16.mxu0 0
    %2157 = vmatpush1.bf16.msra.mxu0 0
    %2158 = vmatprep.subr.bf16.mxu0 0
    %2159 = vmatpush1.bf16.msra.mxu0 0
    %2160 = vmatprep.subr.bf16.mxu0 0
    %2161 = vmatpush1.bf16.msra.mxu0 0
    %2162 = vmatprep.subr.bf16.mxu0 0
    %2163 = vmatpush1.bf16.msra.mxu0 0
    %2164 = vmatprep.subr.bf16.mxu0 0
    %2165 = vmatpush1.bf16.msra.mxu0 0
    %2166 = vmatprep.subr.bf16.mxu0 0
    %2167 = vmatpush1.bf16.msra.mxu0 0
    %2168 = vmatprep.mubr.bf16.mxu0 0
    %2169 = vmatmul.mubr.bf16.gmra.mrb[0].mxu0 %v2134
    %v2170 = vpop.f32.mrb[0].mxu0
    %v2171 = vadd.f32 0.0, %v2170
    %v2172 = vpop.f32.mrb[0].mxu0
    %v2173 = vpop.f32.mrb[0].mxu0
    %v2174 = vpop.f32.mrb[0].mxu0
    %2175 = vdwg.mxu0
    %2176 = vmatprep.subr.bf16.mxu0 0
    %2177 = vmatpush1.bf16.msra.mxu0 %v707
    %2178 = vmatprep.subr.bf16.mxu0 0
    %2179 = vmatpush1.bf16.msra.mxu0 %v708
    %2180 = vmatprep.subr.bf16.mxu0 0
    %2181 = vmatpush1.bf16.msra.mxu0 0
    %2182 = vmatprep.subr.bf16.mxu0 0
    %2183 = vmatpush1.bf16.msra.mxu0 0
    %2184 = vmatprep.subr.bf16.mxu0 0
    %2185 = vmatpush1.bf16.msra.mxu0 0
    %2186 = vmatprep.subr.bf16.mxu0 0
    %2187 = vmatpush1.bf16.msra.mxu0 0
    %2188 = vmatprep.subr.bf16.mxu0 0
    %2189 = vmatpush1.bf16.msra.mxu0 0
    %2190 = vmatprep.subr.bf16.mxu0 0
    %2191 = vmatpush1.bf16.msra.mxu0 0
    %2192 = vmatprep.subr.bf16.mxu0 0
    %2193 = vmatpush1.bf16.msra.mxu0 0
    %2194 = vmatprep.subr.bf16.mxu0 0
    %2195 = vmatpush1.bf16.msra.mxu0 0
    %2196 = vmatprep.subr.bf16.mxu0 0
    %2197 = vmatpush1.bf16.msra.mxu0 0
    %2198 = vmatprep.subr.bf16.mxu0 0
    %2199 = vmatpush1.bf16.msra.mxu0 0
    %2200 = vmatprep.subr.bf16.mxu0 0
    %2201 = vmatpush1.bf16.msra.mxu0 0
    %2202 = vmatprep.subr.bf16.mxu0 0
    %2203 = vmatpush1.bf16.msra.mxu0 0
    %2204 = vmatprep.subr.bf16.mxu0 0
    %2205 = vmatpush1.bf16.msra.mxu0 0
    %2206 = vmatprep.subr.bf16.mxu0 0
    %2207 = vmatpush1.bf16.msra.mxu0 0
    %2208 = vmatprep.mubr.bf16.mxu0 0
    %2209 = vmatmul.mubr.bf16.gmra.mrb[0].mxu0 %v2023
    %v2210 = vpop.f32.mrb[0].mxu0
    %v2211 = vadd.f32 %v2171, %v2210
    %v2212 = vpop.f32.mrb[0].mxu0
    %v2213 = vpop.f32.mrb[0].mxu0
    %v2214 = vpop.f32.mrb[0].mxu0
    %2215 = vdwg.mxu0
    %v2216 = vadd.f32 %v2211, %v59
    %v2217 = vsub.f32 0.0, %v2216
    %v2218 = vmul.f32 %v2217, 1.442695
    %v2219 = vpow.pop %v2218
    %v2220 = vadd.f32 %v2219, 1.0
    %v2221 = vrcp.pop %v2220
    %v2222 = vtanh.pop %v2216
    %v2223 = vmul.f32 %v2221, %v1940
    %2225 = vrot.lane.b32.xlu0 %v2222, 64
    %v2226 = vpop.permute.xlu0 %2225
    %v2228 = vmul.f32 %v2221, %v2226
    %2230 = vrot.lane.b32.xlu0 %v2228, 32
    %v2231 = vpop.permute.xlu0 %2230
    %v2233 = vadd.f32 %v2223, %v2231
    %v2234 = vtanh.pop %v2233
    %2236 = vrot.lane.b32.xlu0 %v2234, 64
    %v2237 = vpop.permute.xlu0 %2236
    %v2239 = vmul.f32 %v2221, %v2237
    %v2240 = vpack.c.bf16 %v2017, %v2017
    %v2241 = vpack.c.bf16 %v2128, %v2128
    %2243 = vrot.lane.b32.xlu0 %v2241, 32
    %v2244 = vpop.permute.xlu0 %2243
    %v2246 = vsel %vm109, %v2244, 0
    %2248 = vmatprep.subr.bf16.mxu0 0
    %2249 = vmatpush1.bf16.msra.mxu0 %v345
    %2250 = vmatprep.subr.bf16.mxu0 0
    %2251 = vmatpush1.bf16.msra.mxu0 %v346
    %2252 = vmatprep.subr.bf16.mxu0 0
    %2253 = vmatpush1.bf16.msra.mxu0 0
    %2254 = vmatprep.subr.bf16.mxu0 0
    %2255 = vmatpush1.bf16.msra.mxu0 0
    %2256 = vmatprep.subr.bf16.mxu0 0
    %2257 = vmatpush1.bf16.msra.mxu0 0
    %2258 = vmatprep.subr.bf16.mxu0 0
    %2259 = vmatpush1.bf16.msra.mxu0 0
    %2260 = vmatprep.subr.bf16.mxu0 0
    %2261 = vmatpush1.bf16.msra.mxu0 0
    %2262 = vmatprep.subr.bf16.mxu0 0
    %2263 = vmatpush1.bf16.msra.mxu0 0
    %2264 = vmatprep.subr.bf16.mxu0 0
    %2265 = vmatpush1.bf16.msra.mxu0 0
    %2266 = vmatprep.subr.bf16.mxu0 0
    %2267 = vmatpush1.bf16.msra.mxu0 0
    %2268 = vmatprep.subr.bf16.mxu0 0
    %2269 = vmatpush1.bf16.msra.mxu0 0
    %2270 = vmatprep.subr.bf16.mxu0 0
    %2271 = vmatpush1.bf16.msra.mxu0 0
    %2272 = vmatprep.subr.bf16.mxu0 0
    %2273 = vmatpush1.bf16.msra.mxu0 0
    %2274 = vmatprep.subr.bf16.mxu0 0
    %2275 = vmatpush1.bf16.msra.mxu0 0
    %2276 = vmatprep.subr.bf16.mxu0 0
    %2277 = vmatpush1.bf16.msra.mxu0 0
    %2278 = vmatprep.subr.bf16.mxu0 0
    %2279 = vmatpush1.bf16.msra.mxu0 0
    %2280 = vmatprep.mubr.bf16.mxu0 0
    %2281 = vmatmul.mubr.bf16.gmra.mrb[0].mxu0 %v2246
    %v2282 = vpop.f32.mrb[0].mxu0
    %v2283 = vadd.f32 0.0, %v2282
    %v2284 = vpop.f32.mrb[0].mxu0
    %v2285 = vpop.f32.mrb[0].mxu0
    %v2286 = vpop.f32.mrb[0].mxu0
    %2287 = vdwg.mxu0
    %2289 = vrot.lane.b32.xlu0 %v2240, 32
    %v2290 = vpop.permute.xlu0 %2289
    %v2292 = vsel %vm109, %v2290, 0
    %2294 = vmatprep.subr.bf16.mxu0 0
    %2295 = vmatpush1.bf16.msra.mxu0 %v397
    %2296 = vmatprep.subr.bf16.mxu0 0
    %2297 = vmatpush1.bf16.msra.mxu0 %v398
    %2298 = vmatprep.subr.bf16.mxu0 0
    %2299 = vmatpush1.bf16.msra.mxu0 0
    %2300 = vmatprep.subr.bf16.mxu0 0
    %2301 = vmatpush1.bf16.msra.mxu0 0
    %2302 = vmatprep.subr.bf16.mxu0 0
    %2303 = vmatpush1.bf16.msra.mxu0 0
    %2304 = vmatprep.subr.bf16.mxu0 0
    %2305 = vmatpush1.bf16.msra.mxu0 0
    %2306 = vmatprep.subr.bf16.mxu0 0
    %2307 = vmatpush1.bf16.msra.mxu0 0
    %2308 = vmatprep.subr.bf16.mxu0 0
    %2309 = vmatpush1.bf16.msra.mxu0 0
    %2310 = vmatprep.subr.bf16.mxu0 0
    %2311 = vmatpush1.bf16.msra.mxu0 0
    %2312 = vmatprep.subr.bf16.mxu0 0
    %2313 = vmatpush1.bf16.msra.mxu0 0
    %2314 = vmatprep.subr.bf16.mxu0 0
    %2315 = vmatpush1.bf16.msra.mxu0 0
    %2316 = vmatprep.subr.bf16.mxu0 0
    %2317 = vmatpush1.bf16.msra.mxu0 0
    %2318 = vmatprep.subr.bf16.mxu0 0
    %2319 = vmatpush1.bf16.msra.mxu0 0
    %2320 = vmatprep.subr.bf16.mxu0 0
    %2321 = vmatpush1.bf16.msra.mxu0 0
    %2322 = vmatprep.subr.bf16.mxu0 0
    %2323 = vmatpush1.bf16.msra.mxu0 0
    %2324 = vmatprep.subr.bf16.mxu0 0
    %2325 = vmatpush1.bf16.msra.mxu0 0
    %2326 = vmatprep.mubr.bf16.mxu0 0
    %2327 = vmatmul.mubr.bf16.gmra.mrb[0].mxu0 %v2292
    %v2328 = vpop.f32.mrb[0].mxu0
    %v2329 = vadd.f32 %v2283, %v2328
    %v2330 = vpop.f32.mrb[0].mxu0
    %v2331 = vpop.f32.mrb[0].mxu0
    %v2332 = vpop.f32.mrb[0].mxu0
    %2333 = vdwg.mxu0
    %v2334 = vadd.f32 %v2329, %v54
    %v2335 = vsub.f32 0.0, %v2334
    %v2336 = vmul.f32 %v2335, 1.442695
    %v2337 = vpow.pop %v2336
    %v2338 = vadd.f32 %v2337, 1.0
    %v2339 = vrcp.pop %v2338
    %v2340 = vtanh.pop %v2334
    %v2341 = vmul.f32 %v2339, %v2122
    %2343 = vrot.lane.b32.xlu0 %v2340, 64
    %v2344 = vpop.permute.xlu0 %2343
    %v2346 = vmul.f32 %v2339, %v2344
    %2348 = vrot.lane.b32.xlu0 %v2346, 32
    %v2349 = vpop.permute.xlu0 %2348
    %v2351 = vadd.f32 %v2341, %v2349
    %v2352 = vtanh.pop %v2351
    %2354 = vrot.lane.b32.xlu0 %v2352, 64
    %v2355 = vpop.permute.xlu0 %2354
    %v2357 = vmul.f32 %v2339, %v2355
    %v2358 = vpack.c.bf16 %v2239, %v2239
    %2360 = vrot.lane.b32.xlu0 %v2358, 32
    %v2361 = vpop.permute.xlu0 %2360
    %v2363 = vsel %vm109, %v2361, 0
    %2365 = vmatprep.subr.bf16.mxu0 0
    %2366 = vmatpush1.bf16.msra.mxu0 %v655
    %2367 = vmatprep.subr.bf16.mxu0 0
    %2368 = vmatpush1.bf16.msra.mxu0 %v656
    %2369 = vmatprep.subr.bf16.mxu0 0
    %2370 = vmatpush1.bf16.msra.mxu0 0
    %2371 = vmatprep.subr.bf16.mxu0 0
    %2372 = vmatpush1.bf16.msra.mxu0 0
    %2373 = vmatprep.subr.bf16.mxu0 0
    %2374 = vmatpush1.bf16.msra.mxu0 0
    %2375 = vmatprep.subr.bf16.mxu0 0
    %2376 = vmatpush1.bf16.msra.mxu0 0
    %2377 = vmatprep.subr.bf16.mxu0 0
    %2378 = vmatpush1.bf16.msra.mxu0 0
    %2379 = vmatprep.subr.bf16.mxu0 0
    %2380 = vmatpush1.bf16.msra.mxu0 0
    %2381 = vmatprep.subr.bf16.mxu0 0
    %2382 = vmatpush1.bf16.msra.mxu0 0
    %2383 = vmatprep.subr.bf16.mxu0 0
    %2384 = vmatpush1.bf16.msra.mxu0 0
    %2385 = vmatprep.subr.bf16.mxu0 0
    %2386 = vmatpush1.bf16.msra.mxu0 0
    %2387 = vmatprep.subr.bf16.mxu0 0
    %2388 = vmatpush1.bf16.msra.mxu0 0
    %2389 = vmatprep.subr.bf16.mxu0 0
    %2390 = vmatpush1.bf16.msra.mxu0 0
    %2391 = vmatprep.subr.bf16.mxu0 0
    %2392 = vmatpush1.bf16.msra.mxu0 0
    %2393 = vmatprep.subr.bf16.mxu0 0
    %2394 = vmatpush1.bf16.msra.mxu0 0
    %2395 = vmatprep.subr.bf16.mxu0 0
    %2396 = vmatpush1.bf16.msra.mxu0 0
    %2397 = vmatprep.mubr.bf16.mxu0 0
    %2398 = vmatmul.mubr.bf16.gmra.mrb[0].mxu0 %v2363
    %v2399 = vpop.f32.mrb[0].mxu0
    %v2400 = vadd.f32 0.0, %v2399
    %v2401 = vpop.f32.mrb[0].mxu0
    %v2402 = vpop.f32.mrb[0].mxu0
    %v2403 = vpop.f32.mrb[0].mxu0
    %2404 = vdwg.mxu0
    %2405 = vmatprep.subr.bf16.mxu0 0
    %2406 = vmatpush1.bf16.msra.mxu0 %v707
    %2407 = vmatprep.subr.bf16.mxu0 0
    %2408 = vmatpush1.bf16.msra.mxu0 %v708
    %2409 = vmatprep.subr.bf16.mxu0 0
    %2410 = vmatpush1.bf16.msra.mxu0 0
    %2411 = vmatprep.subr.bf16.mxu0 0
    %2412 = vmatpush1.bf16.msra.mxu0 0
    %2413 = vmatprep.subr.bf16.mxu0 0
    %2414 = vmatpush1.bf16.msra.mxu0 0
    %2415 = vmatprep.subr.bf16.mxu0 0
    %2416 = vmatpush1.bf16.msra.mxu0 0
    %2417 = vmatprep.subr.bf16.mxu0 0
    %2418 = vmatpush1.bf16.msra.mxu0 0
    %2419 = vmatprep.subr.bf16.mxu0 0
    %2420 = vmatpush1.bf16.msra.mxu0 0
    %2421 = vmatprep.subr.bf16.mxu0 0
    %2422 = vmatpush1.bf16.msra.mxu0 0
    %2423 = vmatprep.subr.bf16.mxu0 0
    %2424 = vmatpush1.bf16.msra.mxu0 0
    %2425 = vmatprep.subr.bf16.mxu0 0
    %2426 = vmatpush1.bf16.msra.mxu0 0
    %2427 = vmatprep.subr.bf16.mxu0 0
    %2428 = vmatpush1.bf16.msra.mxu0 0
    %2429 = vmatprep.subr.bf16.mxu0 0
    %2430 = vmatpush1.bf16.msra.mxu0 0
    %2431 = vmatprep.subr.bf16.mxu0 0
    %2432 = vmatpush1.bf16.msra.mxu0 0
    %2433 = vmatprep.subr.bf16.mxu0 0
    %2434 = vmatpush1.bf16.msra.mxu0 0
    %2435 = vmatprep.subr.bf16.mxu0 0
    %2436 = vmatpush1.bf16.msra.mxu0 0
    %2437 = vmatprep.mubr.bf16.mxu0 0
    %2438 = vmatmul.mubr.bf16.gmra.mrb[0].mxu0 %v2246
    %v2439 = vpop.f32.mrb[0].mxu0
    %v2440 = vadd.f32 %v2400, %v2439
    %v2441 = vpop.f32.mrb[0].mxu0
    %v2442 = vpop.f32.mrb[0].mxu0
    %v2443 = vpop.f32.mrb[0].mxu0
    %2444 = vdwg.mxu0
    %v2445 = vadd.f32 %v2440, %v59
    %v2446 = vsub.f32 0.0, %v2445
    %v2447 = vmul.f32 %v2446, 1.442695
    %v2448 = vpow.pop %v2447
    %v2449 = vadd.f32 %v2448, 1.0
    %v2450 = vrcp.pop %v2449
    %v2451 = vtanh.pop %v2445
    %v2452 = vmul.f32 %v2450, %v2233
    %2454 = vrot.lane.b32.xlu0 %v2451, 64
    %v2455 = vpop.permute.xlu0 %2454
    %v2457 = vmul.f32 %v2450, %v2455
    %2459 = vrot.lane.b32.xlu0 %v2457, 32
    %v2460 = vpop.permute.xlu0 %2459
    %v2462 = vadd.f32 %v2452, %v2460
    %v2463 = vtanh.pop %v2462
    %2465 = vrot.lane.b32.xlu0 %v2463, 64
    %v2466 = vpop.permute.xlu0 %2465
    %v2468 = vmul.f32 %v2450, %v2466
    %v2469 = vpack.c.bf16 %v2357, %v2357
    %v2470 = vpack.c.bf16 %v2468, %v2468
    %2472 = vrot.lane.b32.xlu0 %v2470, 32
    %v2473 = vpop.permute.xlu0 %2472
    %v2475 = vsel %vm109, %v2473, 0
    %2477 = vmatprep.subr.bf16.mxu0 0
    %2478 = vmatpush1.bf16.msra.mxu0 %v655
    %2479 = vmatprep.subr.bf16.mxu0 0
    %2480 = vmatpush1.bf16.msra.mxu0 %v656
    %2481 = vmatprep.subr.bf16.mxu0 0
    %2482 = vmatpush1.bf16.msra.mxu0 0
    %2483 = vmatprep.subr.bf16.mxu0 0
    %2484 = vmatpush1.bf16.msra.mxu0 0
    %2485 = vmatprep.subr.bf16.mxu0 0
    %2486 = vmatpush1.bf16.msra.mxu0 0
    %2487 = vmatprep.subr.bf16.mxu0 0
    %2488 = vmatpush1.bf16.msra.mxu0 0
    %2489 = vmatprep.subr.bf16.mxu0 0
    %2490 = vmatpush1.bf16.msra.mxu0 0
    %2491 = vmatprep.subr.bf16.mxu0 0
    %2492 = vmatpush1.bf16.msra.mxu0 0
    %2493 = vmatprep.subr.bf16.mxu0 0
    %2494 = vmatpush1.bf16.msra.mxu0 0
    %2495 = vmatprep.subr.bf16.mxu0 0
    %2496 = vmatpush1.bf16.msra.mxu0 0
    %2497 = vmatprep.subr.bf16.mxu0 0
    %2498 = vmatpush1.bf16.msra.mxu0 0
    %2499 = vmatprep.subr.bf16.mxu0 0
    %2500 = vmatpush1.bf16.msra.mxu0 0
    %2501 = vmatprep.subr.bf16.mxu0 0
    %2502 = vmatpush1.bf16.msra.mxu0 0
    %2503 = vmatprep.subr.bf16.mxu0 0
    %2504 = vmatpush1.bf16.msra.mxu0 0
    %2505 = vmatprep.subr.bf16.mxu0 0
    %2506 = vmatpush1.bf16.msra.mxu0 0
    %2507 = vmatprep.subr.bf16.mxu0 0
    %2508 = vmatpush1.bf16.msra.mxu0 0
    %2509 = vmatprep.mubr.bf16.mxu0 0
    %2510 = vmatmul.mubr.bf16.gmra.mrb[0].mxu0 %v2475
    %v2511 = vpop.f32.mrb[0].mxu0
    %v2512 = vadd.f32 0.0, %v2511
    %v2513 = vpop.f32.mrb[0].mxu0
    %v2514 = vpop.f32.mrb[0].mxu0
    %v2515 = vpop.f32.mrb[0].mxu0
    %2516 = vdwg.mxu0
    %2518 = vrot.lane.b32.xlu0 %v2469, 32
    %v2519 = vpop.permute.xlu0 %2518
    %v2521 = vsel %vm109, %v2519, 0
    %2523 = vmatprep.subr.bf16.mxu0 0
    %2524 = vmatpush1.bf16.msra.mxu0 %v707
    %2525 = vmatprep.subr.bf16.mxu0 0
    %2526 = vmatpush1.bf16.msra.mxu0 %v708
    %2527 = vmatprep.subr.bf16.mxu0 0
    %2528 = vmatpush1.bf16.msra.mxu0 0
    %2529 = vmatprep.subr.bf16.mxu0 0
    %2530 = vmatpush1.bf16.msra.mxu0 0
    %2531 = vmatprep.subr.bf16.mxu0 0
    %2532 = vmatpush1.bf16.msra.mxu0 0
    %2533 = vmatprep.subr.bf16.mxu0 0
    %2534 = vmatpush1.bf16.msra.mxu0 0
    %2535 = vmatprep.subr.bf16.mxu0 0
    %2536 = vmatpush1.bf16.msra.mxu0 0
    %2537 = vmatprep.subr.bf16.mxu0 0
    %2538 = vmatpush1.bf16.msra.mxu0 0
    %2539 = vmatprep.subr.bf16.mxu0 0
    %2540 = vmatpush1.bf16.msra.mxu0 0
    %2541 = vmatprep.subr.bf16.mxu0 0
    %2542 = vmatpush1.bf16.msra.mxu0 0
    %2543 = vmatprep.subr.bf16.mxu0 0
    %2544 = vmatpush1.bf16.msra.mxu0 0
    %2545 = vmatprep.subr.bf16.mxu0 0
    %2546 = vmatpush1.bf16.msra.mxu0 0
    %2547 = vmatprep.subr.bf16.mxu0 0
    %2548 = vmatpush1.bf16.msra.mxu0 0
    %2549 = vmatprep.subr.bf16.mxu0 0
    %2550 = vmatpush1.bf16.msra.mxu0 0
    %2551 = vmatprep.subr.bf16.mxu0 0
    %2552 = vmatpush1.bf16.msra.mxu0 0
    %2553 = vmatprep.subr.bf16.mxu0 0
    %2554 = vmatpush1.bf16.msra.mxu0 0
    %2555 = vmatprep.mubr.bf16.mxu0 0
    %2556 = vmatmul.mubr.bf16.gmra.mrb[0].mxu0 %v2521
    %v2557 = vpop.f32.mrb[0].mxu0
    %v2558 = vadd.f32 %v2512, %v2557
    %v2559 = vpop.f32.mrb[0].mxu0
    %v2560 = vpop.f32.mrb[0].mxu0
    %v2561 = vpop.f32.mrb[0].mxu0
    %2562 = vdwg.mxu0
    %v2563 = vadd.f32 %v2558, %v59
    %v2564 = vsub.f32 0.0, %v2563
    %v2565 = vmul.f32 %v2564, 1.442695
    %v2566 = vpow.pop %v2565
    %v2567 = vadd.f32 %v2566, 1.0
    %v2568 = vrcp.pop %v2567
    %v2569 = vtanh.pop %v2563
    %v2570 = vmul.f32 %v2568, %v2462
    %2572 = vrot.lane.b32.xlu0 %v2569, 64
    %v2573 = vpop.permute.xlu0 %2572
    %v2575 = vmul.f32 %v2568, %v2573
    %2577 = vrot.lane.b32.xlu0 %v2575, 32
    %v2578 = vpop.permute.xlu0 %2577
    %v2580 = vadd.f32 %v2570, %v2578
    %v2581 = vtanh.pop %v2580
    %2583 = vrot.lane.b32.xlu0 %v2581, 64
    %v2584 = vpop.permute.xlu0 %2583
    %v2586 = vmul.f32 %v2568, %v2584
    %v2587 = vld [vmem:[#allocation2 + $0x60] sm:$0xf]
    %v2588 = vld [vmem:[#allocation2 + $0x64] sm:$0xf]
    %v2589 = vld [vmem:[#allocation2 + $0x68] sm:$0xf]
    %v2590 = vld [vmem:[#allocation2 + $0x6c] sm:$0xf]
    %v2591 = vpack.c.bf16 %v2586, %v2586
    %v2592 = vld [vmem:[%s2 + $0x3] sm:$0x1]
    %v2593 = vlaneseq
    %v2594 = vshrl.u32 %v2593, 7
    %v2595 = vsub.s32 0, %v2594
    %v2596 = vrot.slane %v2592, %v2595
    %2598 = vrot.lane.b32.xlu0 %v2591, 32
    %v2599 = vpop.permute.xlu0 %2598
    %v2604 = vunpack.c.l.b16 %v2587
    %v2605 = vunpack.c.l.b16 %v2588
    %v2606 = vunpack.c.l.b16 %v2589
    %v2607 = vunpack.c.l.b16 %v2590
    %v2608 = vpack.c.b16 %v2605, %v2604
    %v2609 = vpack.c.b16 %v2607, %v2606
    %v2613 = vsel %vm109, %v2599, 0
    %2615 = vmatprep.subr.bf16.mxu0 0
    %2616 = vmatpush1.bf16.msra.mxu0 %v2608
    %2617 = vmatprep.subr.bf16.mxu0 0
    %2618 = vmatpush1.bf16.msra.mxu0 %v2609
    %2619 = vmatprep.subr.bf16.mxu0 0
    %2620 = vmatpush1.bf16.msra.mxu0 0
    %2621 = vmatprep.subr.bf16.mxu0 0
    %2622 = vmatpush1.bf16.msra.mxu0 0
    %2623 = vmatprep.subr.bf16.mxu0 0
    %2624 = vmatpush1.bf16.msra.mxu0 0
    %2625 = vmatprep.subr.bf16.mxu0 0
    %2626 = vmatpush1.bf16.msra.mxu0 0
    %2627 = vmatprep.subr.bf16.mxu0 0
    %2628 = vmatpush1.bf16.msra.mxu0 0
    %2629 = vmatprep.subr.bf16.mxu0 0
    %2630 = vmatpush1.bf16.msra.mxu0 0
    %2631 = vmatprep.subr.bf16.mxu0 0
    %2632 = vmatpush1.bf16.msra.mxu0 0
    %2633 = vmatprep.subr.bf16.mxu0 0
    %2634 = vmatpush1.bf16.msra.mxu0 0
    %2635 = vmatprep.subr.bf16.mxu0 0
    %2636 = vmatpush1.bf16.msra.mxu0 0
    %2637 = vmatprep.subr.bf16.mxu0 0
    %2638 = vmatpush1.bf16.msra.mxu0 0
    %2639 = vmatprep.subr.bf16.mxu0 0
    %2640 = vmatpush1.bf16.msra.mxu0 0
    %2641 = vmatprep.subr.bf16.mxu0 0
    %2642 = vmatpush1.bf16.msra.mxu0 0
    %2643 = vmatprep.subr.bf16.mxu0 0
    %2644 = vmatpush1.bf16.msra.mxu0 0
    %2645 = vmatprep.subr.bf16.mxu0 0
    %2646 = vmatpush1.bf16.msra.mxu0 0
    %2647 = vmatprep.mubr.bf16.mxu0 0
    %2648 = vmatmul.mubr.bf16.gmra.mrb[0].mxu0 %v2613
    %v2649 = vpop.f32.mrb[0].mxu0
    %v2650 = vadd.f32 %v2596, %v2649
    %v2651 = vpop.f32.mrb[0].mxu0
    %v2652 = vpop.f32.mrb[0].mxu0
    %v2653 = vpop.f32.mrb[0].mxu0
    %2654 = vdwg.mxu0
    %v2655 = vmax.f32 %v2650, 0.0
    %v2656 = vld [vmem:[#allocation2 + $0x70] sm:$0xf]
    %v2657 = vld [vmem:[#allocation2 + $0x74] sm:$0xf]
    %v2658 = vld [vmem:[#allocation2 + $0x78] sm:$0xf]
    %v2659 = vld [vmem:[#allocation2 + $0x7c] sm:$0xf]
    %v2660 = vld [vmem:[#allocation2 + $0x80] sm:$0xf]
    %v2661 = vld [vmem:[#allocation2 + $0x84] sm:$0xf]
    %v2662 = vld [vmem:[#allocation2 + $0x88] sm:$0xf]
    %v2663 = vld [vmem:[#allocation2 + $0x8c] sm:$0xf]
    %v2664 = vld [vmem:[#allocation2 + $0x90] sm:$0xf]
    %v2665 = vld [vmem:[#allocation2 + $0x94] sm:$0xf]
    %v2666 = vld [vmem:[#allocation2 + $0x98] sm:$0xf]
    %v2667 = vld [vmem:[#allocation2 + $0x9c] sm:$0xf]
    %v2668 = vld [vmem:[#allocation2 + $0xa0] sm:$0xf]
    %v2669 = vld [vmem:[#allocation2 + $0xa4] sm:$0xf]
    %v2670 = vld [vmem:[#allocation2 + $0xa8] sm:$0xf]
    %v2671 = vld [vmem:[#allocation2 + $0xac] sm:$0xf]
    %v2672 = vpack.c.bf16 %v2655, %v2655
    %v2673 = vld [vmem:[%s2 + $0x4] sm:$0x1]
    %v2674 = vlaneseq
    %v2675 = vshrl.u32 %v2674, 7
    %v2676 = vsub.s32 0, %v2675
    %v2677 = vrot.slane %v2673, %v2676
    %v2694 = vunpack.c.l.b16 %v2656
    %v2695 = vunpack.c.l.b16 %v2657
    %v2696 = vunpack.c.l.b16 %v2658
    %v2697 = vunpack.c.l.b16 %v2659
    %v2698 = vunpack.c.l.b16 %v2660
    %v2699 = vunpack.c.l.b16 %v2661
    %v2700 = vunpack.c.l.b16 %v2662
    %v2701 = vunpack.c.l.b16 %v2663
    %v2702 = vunpack.c.l.b16 %v2664
    %v2703 = vunpack.c.l.b16 %v2665
    %v2704 = vunpack.c.l.b16 %v2666
    %v2705 = vunpack.c.l.b16 %v2667
    %v2706 = vunpack.c.l.b16 %v2668
    %v2707 = vunpack.c.l.b16 %v2669
    %v2708 = vunpack.c.l.b16 %v2670
    %v2709 = vunpack.c.l.b16 %v2671
    %v2710 = vpack.c.b16 %v2695, %v2694
    %v2711 = vpack.c.b16 %v2697, %v2696
    %v2712 = vpack.c.b16 %v2699, %v2698
    %v2713 = vpack.c.b16 %v2701, %v2700
    %v2714 = vpack.c.b16 %v2703, %v2702
    %v2715 = vpack.c.b16 %v2705, %v2704
    %v2716 = vpack.c.b16 %v2707, %v2706
    %v2717 = vpack.c.b16 %v2709, %v2708
    %2726 = vmatprep.subr.bf16.mxu0 0
    %2727 = vmatpush1.bf16.msra.mxu0 %v2710
    %2728 = vmatprep.subr.bf16.mxu0 0
    %2729 = vmatpush1.bf16.msra.mxu0 %v2711
    %2730 = vmatprep.subr.bf16.mxu0 0
    %2731 = vmatpush1.bf16.msra.mxu0 %v2712
    %2732 = vmatprep.subr.bf16.mxu0 0
    %2733 = vmatpush1.bf16.msra.mxu0 %v2713
    %2734 = vmatprep.subr.bf16.mxu0 0
    %2735 = vmatpush1.bf16.msra.mxu0 %v2714
    %2736 = vmatprep.subr.bf16.mxu0 0
    %2737 = vmatpush1.bf16.msra.mxu0 %v2715
    %2738 = vmatprep.subr.bf16.mxu0 0
    %2739 = vmatpush1.bf16.msra.mxu0 %v2716
    %2740 = vmatprep.subr.bf16.mxu0 0
    %2741 = vmatpush1.bf16.msra.mxu0 %v2717
    %2742 = vmatprep.subr.bf16.mxu0 0
    %2743 = vmatpush1.bf16.msra.mxu0 0
    %2744 = vmatprep.subr.bf16.mxu0 0
    %2745 = vmatpush1.bf16.msra.mxu0 0
    %2746 = vmatprep.subr.bf16.mxu0 0
    %2747 = vmatpush1.bf16.msra.mxu0 0
    %2748 = vmatprep.subr.bf16.mxu0 0
    %2749 = vmatpush1.bf16.msra.mxu0 0
    %2750 = vmatprep.subr.bf16.mxu0 0
    %2751 = vmatpush1.bf16.msra.mxu0 0
    %2752 = vmatprep.subr.bf16.mxu0 0
    %2753 = vmatpush1.bf16.msra.mxu0 0
    %2754 = vmatprep.subr.bf16.mxu0 0
    %2755 = vmatpush1.bf16.msra.mxu0 0
    %2756 = vmatprep.subr.bf16.mxu0 0
    %2757 = vmatpush1.bf16.msra.mxu0 0
    %2758 = vmatprep.mubr.bf16.mxu0 0
    %2759 = vmatmul.mubr.bf16.gmra.mrb[0].mxu0 %v2672
    %v2760 = vpop.f32.mrb[0].mxu0
    %v2761 = vadd.f32 %v2677, %v2760
    %v2762 = vpop.f32.mrb[0].mxu0
    %v2763 = vpop.f32.mrb[0].mxu0
    %v2764 = vpop.f32.mrb[0].mxu0
    %2765 = vdwg.mxu0
    %2766 = vst [vmem:[#allocation5] sm:$0xff] %v2761
    // Predicated region
    $region18: #{tpu_custom_call.1} parent=1 // pred_check
      _
    $region19: #{tpu_custom_call.1} parent=1 // pred_check_branch
      %2768 = sbr.rel (0) target = $region21
    $region20: #{tpu_custom_call.1} parent=1 // pred_region
      %s2770 = ssub.s32 128, 128
      %2771 = vsyncadd [#allocation4], %s2770
      %s2773 = sshll.u32 [#allocation5], 4
      %s2774 = int_to_ptr.vmem [resolvable:$true] %s2773
      %2776 = dma.vmem_to_hbm [thread:$0]  %s2774, 128, %s3, [#allocation4]
    $region21: #{tpu_custom_call.1} parent=1 // pred_fallthru
      _
    // Predicated region
    $region22: #{tpu_custom_call.1} parent=1 // pred_check
      _
    $region23: #{tpu_custom_call.1} parent=1 // pred_check_branch
      %2778 = sbr.rel (0) target = $region25
    $region24: #{tpu_custom_call.1} parent=1 // pred_region
      %2779 = dma.done [#allocation4], 128
    $region25: #{tpu_custom_call.1} parent=1 // pred_fallthru
      _
    %2780 = vsyncpa [#allocation3], 1
    %2781 = vsyncpa [#allocation4], 1

</llo_original>
